<compile_context>
chip_gen: v7x
topology: tpu7x:2x2x1
jax: 0.10.0
libtpu: 0.0.40
codegen_flags: <defaults>
</compile_context>

<pallas_src>
import numpy as np

import jax
import jax.numpy as jnp
from jax import lax
from jax.experimental import pallas as pl
from jax.experimental.pallas import tpu as pltpu

# ----------------------------------------------------------------------------
# Static problem geometry
# ----------------------------------------------------------------------------
NB = 32              # images per grid step (batch tile)
CIN = 3              # network input channels
C = 32               # conv channel count
H1 = W1 = 12         # conv1 spatial size (fixed by dense1's 32*3*3 features)
H2 = W2 = 6          # after pool1 / conv2 spatial size
H3 = W3 = 3          # after pool2
K1 = 128             # conv1 LHS lanes: 3 kh taps * 12 W * 3 Cin = 108, padded to 128
LP1 = W2 * C         # 192: one lane half of conv1's interleaved output (6 pooled W cols)
N1 = 2 * LP1         # 384: conv1 output lanes (even W cols at 0:192, odd at 192:384)
L2IN = W2 * C        # 192: conv2 input lanes per row (no W padding lanes needed)
LP2 = 128            # one lane half of conv2's interleaved output (W cols 0..3, col 3 unused)
N2 = 2 * LP2         # 256: conv2 output lanes (even W cols 0,2,4,(6) / odd 1,3,5,(7))
NOUT = 128           # dense widths (dense2's 10 logits zero-padded to 128 lanes)
FEAT = C * H3 * W3   # 288 dense1 input features (torch flatten order)


# ----------------------------------------------------------------------------
# Fused forward kernel (one batch tile of NB images)
# ----------------------------------------------------------------------------
def _mynet_kernel(x_ref, w1_ref, b1_ref, w2_ref, b2_ref,
                  d1w_ref, d1b_ref, d2w_ref, d2b_ref,
                  out_ref, y1_ref, x2_ref, y2_ref):
    f32, bf16 = jnp.float32, jnp.bfloat16

    # conv2 H-padding rows (top & bottom NB-row slabs) must be zero; rewrite the two
    # small pad slabs every step so the kernel stays correct even if the "parallel"
    # grid is sharded across TensorCores (each core has its own scratch).
    zpad = jnp.zeros((NB, L2IN), bf16)
    x2_ref[0:NB, :] = zpad
    x2_ref[(H2 + 1) * NB:(H2 + 2) * NB, :] = zpad

    # ---- conv1: ONE banded matmul (kh folded into K=128, kw/Cin folded into the weight);
    # rows are height-major / image-minor: row = h*NB + b. Raw result -> VMEM scratch.
    y1_ref[...] = jnp.dot(x_ref[...], w1_ref[...], preferred_element_type=f32)

    # ---- pool1 (2x2) fused with conv1 bias + ReLU (they commute with max):
    # H-pairs are contiguous NB-row slabs, W-pairs are the even/odd lane halves.
    for hp in range(H2):
        rmax = jnp.maximum(y1_ref[(2 * hp) * NB:(2 * hp + 1) * NB, :],
                           y1_ref[(2 * hp + 1) * NB:(2 * hp + 2) * NB, :])
        pooled = jnp.maximum(rmax[:, 0:LP1], rmax[:, LP1:N1])
        act = jnp.maximum(pooled + b1_ref[...], 0.0)
        x2_ref[(hp + 1) * NB:(hp + 2) * NB, :] = act.astype(bf16)

    # ---- conv2: 3 banded matmuls over kh-shifted contiguous row slabs (K=192, N=256).
    r2 = H2 * NB
    y2 = jnp.dot(x2_ref[0:r2, :], w2_ref[0], preferred_element_type=f32)
    y2 = y2 + jnp.dot(x2_ref[NB:NB + r2, :], w2_ref[1], preferred_element_type=f32)
    y2 = y2 + jnp.dot(x2_ref[2 * NB:2 * NB + r2, :], w2_ref[2], preferred_element_type=f32)
    y2_ref[...] = y2

    # ---- pool2 + conv2 bias/ReLU + dense1, batched over the whole tile:
    # one (NB,128)x(128,128) matmul per pooled row h (the unused w=3 lane group is zero
    # in both the features and the dense1 weight rows).
    hid = jnp.zeros((NB, NOUT), f32)
    for h in range(H3):
        rmax = jnp.maximum(y2_ref[(2 * h) * NB:(2 * h + 1) * NB, :],
                           y2_ref[(2 * h + 1) * NB:(2 * h + 2) * NB, :])
        pooled = jnp.maximum(rmax[:, 0:LP2], rmax[:, LP2:N2])
        feat = jnp.maximum(pooled + b2_ref[...], 0.0)
        hid = hid + jnp.dot(feat.astype(bf16), d1w_ref[h], preferred_element_type=f32)
    hid = hid + d1b_ref[...]

    # ---- dense2 (padded 10 -> 128 output lanes) + single unmasked (NB,128) store.
    out_ref[...] = jnp.dot(hid.astype(bf16), d2w_ref[...],
                           preferred_element_type=f32) + d2b_ref[...]


# ----------------------------------------------------------------------------
# Parameters (deterministic, synthetic, torch layout) and one-time repacking
# ----------------------------------------------------------------------------
def init_params(key):
    k = jax.random.split(key, 8)
    p = {}
    p["conv1_w"] = 0.10 * jax.random.normal(k[0], (32, 3, 3, 3), jnp.float32)
    p["conv1_b"] = 0.10 * jax.random.normal(k[1], (32,), jnp.float32)
    # TODO(synk): __init__ declares conv2 = Conv2d(3, 32, ...), inconsistent with
    # conv1's 32-channel output; using in_channels=32 so the forward dataflow works.
    p["conv2_w"] = 0.05 * jax.random.normal(k[2], (32, 32, 3, 3), jnp.float32)
    p["conv2_b"] = 0.10 * jax.random.normal(k[3], (32,), jnp.float32)
    # Linear weights stored as (in, out) == torch_weight.T; input index order is torch's (C,H,W).
    p["dense1_w"] = 0.05 * jax.random.normal(k[4], (FEAT, 128), jnp.float32)
    p["dense1_b"] = 0.10 * jax.random.normal(k[5], (128,), jnp.float32)
    p["dense2_w"] = 0.05 * jax.random.normal(k[6], (128, 10), jnp.float32)
    p["dense2_b"] = 0.10 * jax.random.normal(k[7], (10,), jnp.float32)
    return p


def prepare_kernel_params(p):
    """One-time repack of torch-layout params into banded / interleaved / padded bf16 layouts."""
    bf16 = jnp.bfloat16

    # conv1 band: row = kh*36 + w_in*3 + ci ; col = (w_out%2)*192 + (w_out//2)*32 + co
    # (even/odd W interleave so 2x2 W-pooling is max(lanes 0:192, lanes 192:384)).
    w1 = np.asarray(p["conv1_w"], np.float32)
    w1b = np.zeros((K1, N1), np.float32)
    for kh in range(3):
        for w_in in range(W1):
            for w_out in range(W1):
                kw = w_in - w_out + 1
                if 0 <= kw <= 2:
                    r = kh * (W1 * CIN) + w_in * CIN
                    c = (w_out % 2) * LP1 + (w_out // 2) * C
                    w1b[r:r + CIN, c:c + C] = w1[:, :, kh, kw].T
    b1p = np.tile(np.asarray(p["conv1_b"], np.float32), W2)[None, :]          # (1, 192)

    # conv2 band per kh: row = w_in*32 + ci ; col = (w_out%2)*128 + (w_out//2)*32 + co;
    # columns for the padded w_out in {6,7} stay zero (so the extra lanes are exact zeros).
    w2 = np.asarray(p["conv2_w"], np.float32)
    w2b = np.zeros((3, L2IN, N2), np.float32)
    for kh in range(3):
        for w_in in range(W2):
            for w_out in range(W2):
                kw = w_in - w_out + 1
                if 0 <= kw <= 2:
                    r = w_in * C
                    c = (w_out % 2) * LP2 + (w_out // 2) * C
                    w2b[kh, r:r + C, c:c + C] = w2[:, :, kh, kw].T
    b2p = np.zeros((1, LP2), np.float32)
    b2p[0, :W3 * C] = np.tile(np.asarray(p["conv2_b"], np.float32), W3)

    # dense1: fold the torch (C,H,W) flatten order into the kernel's (h, w*32+c) feature
    # lanes; rows for the padded w=3 lane group stay zero.
    d1 = np.asarray(p["dense1_w"], np.float32)                                # (288, 128)
    d1w = np.zeros((H3, LP2, NOUT), np.float32)
    for h in range(H3):
        for w in range(W3):
            for co in range(C):
                d1w[h, w * C + co, :] = d1[co * (H3 * W3) + h * W3 + w, :]
    d1b = np.asarray(p["dense1_b"], np.float32)[None, :]

    # dense2: zero-pad 10 -> 128 output lanes for an unmasked lane-dense store.
    d2w = np.zeros((NOUT, NOUT), np.float32)
    d2w[:, :10] = np.asarray(p["dense2_w"], np.float32)
    d2b = np.zeros((1, NOUT), np.float32)
    d2b[0, :10] = np.asarray(p["dense2_b"], np.float32)

    return {
        "w1": jnp.asarray(w1b, bf16), "b1": jnp.asarray(b1p),
        "w2": jnp.asarray(w2b, bf16), "b2": jnp.asarray(b2p),
        "d1w": jnp.asarray(d1w, bf16), "d1b": jnp.asarray(d1b),
        "d2w": jnp.asarray(d2w, bf16), "d2b": jnp.asarray(d2b),
    }


# ----------------------------------------------------------------------------
# Forward pass: one fused pallas_call, grid = batch tiles (parallel)
# ----------------------------------------------------------------------------
@jax.jit
def mynet_forward(kp, x_nchw):
    n = x_nchw.shape[0]
    if n % NB != 0:
        raise ValueError(f"batch must be a multiple of {NB}")
    ng = n // NB

    # Layout plumbing in XLA on the tiny input: NCHW -> (W,Cin) lanes per row, zero-pad H
    # by 1, concat the 3 kh-shifted row windows along lanes (K=108 -> 128), and order rows
    # height-major / image-minor inside each batch tile. Cast to bf16 for the MXU.
    x = jnp.transpose(x_nchw.astype(jnp.float32), (0, 2, 3, 1))          # (N, 12, 12, 3)
    x = jnp.pad(x, ((0, 0), (1, 1), (0, 0), (0, 0)))                     # (N, 14, 12, 3)
    rows = x.reshape(n, H1 + 2, W1 * CIN)                                # (N, 14, 36)
    lhs = jnp.concatenate([rows[:, kh:kh + H1, :] for kh in range(3)], axis=-1)
    lhs = jnp.pad(lhs, ((0, 0), (0, 0), (0, K1 - 3 * W1 * CIN)))         # (N, 12, 128)
    lhs = lhs.reshape(ng, NB, H1, K1).transpose(0, 2, 1, 3)              # (ng, 12, NB, 128)
    lhs = lhs.reshape(ng, H1 * NB, K1).astype(jnp.bfloat16)

    flops = 2 * n * (H1 * K1 * N1 + 3 * H2 * L2IN * N2 + H3 * LP2 * NOUT + NOUT * NOUT)
    bytes_accessed = (lhs.size * 2 + n * NOUT * 4 +
                      2 * (K1 * N1 + 3 * L2IN * N2 + H3 * LP2 * NOUT + NOUT * NOUT))

    out = pl.pallas_call(
        _mynet_kernel,
        out_shape=jax.ShapeDtypeStruct((ng, NB, NOUT), jnp.float32),
        grid=(ng,),
        in_specs=[
            pl.BlockSpec((None, H1 * NB, K1), lambda i: (i, 0, 0)),   # conv1 LHS batch tile
            pl.BlockSpec((K1, N1), lambda i: (0, 0)),                 # conv1 banded weight
            pl.BlockSpec((1, LP1), lambda i: (0, 0)),                 # conv1 bias (pooled layout)
            pl.BlockSpec((3, L2IN, N2), lambda i: (0, 0, 0)),         # conv2 banded weights
            pl.BlockSpec((1, LP2), lambda i: (0, 0)),                 # conv2 bias (pooled layout)
            pl.BlockSpec((H3, LP2, NOUT), lambda i: (0, 0, 0)),       # dense1 weight (permuted)
            pl.BlockSpec((1, NOUT), lambda i: (0, 0)),                # dense1 bias
            pl.BlockSpec((NOUT, NOUT), lambda i: (0, 0)),             # dense2 weight (padded)
            pl.BlockSpec((1, NOUT), lambda i: (0, 0)),                # dense2 bias (padded)
        ],
        out_specs=pl.BlockSpec((None, NB, NOUT), lambda i: (i, 0, 0)),
        scratch_shapes=[
            pltpu.VMEM((H1 * NB, N1), jnp.float32),           # conv1 raw output (explicit spill)
            pltpu.VMEM(((H2 + 2) * NB, L2IN), jnp.bfloat16),  # H-padded conv2 input
            pltpu.VMEM((H2 * NB, N2), jnp.float32),           # conv2 raw output
        ],
        compiler_params=pltpu.CompilerParams(
            dimension_semantics=("parallel",)),
        cost_estimate=pl.CostEstimate(flops=flops, transcendentals=0,
                                      bytes_accessed=bytes_accessed),
    )(lhs, kp["w1"], kp["b1"], kp["w2"], kp["b2"],
      kp["d1w"], kp["d1b"], kp["d2w"], kp["d2b"])

    return out.reshape(n, NOUT)[:, :10]


# ----------------------------------------------------------------------------
# Pure-JAX reference with torch semantics (for a correctness self-check)
# ----------------------------------------------------------------------------
def torch_reference(p, x_nchw):
    dn = ("NCHW", "OIHW", "NCHW")
    x = x_nchw.astype(jnp.float32)
    x = lax.conv_general_dilated(x, p["conv1_w"], (1, 1), ((1, 1), (1, 1)),
                                 dimension_numbers=dn)
    x = jax.nn.relu(x + p["conv1_b"][None, :, None, None])
    n, c, h, w = x.shape
    x = x.reshape(n, c, h // 2, 2, w // 2, 2).max(axis=(3, 5))
    x = lax.conv_general_dilated(x, p["conv2_w"], (1, 1), ((1, 1), (1, 1)),
                                 dimension_numbers=dn)
    x = jax.nn.relu(x + p["conv2_b"][None, :, None, None])
    n, c, h, w = x.shape
    x = x.reshape(n, c, h // 2, 2, w // 2, 2).max(axis=(3, 5))
    x = x.reshape(n, -1)                       # torch (C,H,W) flatten order
    x = x @ p["dense1_w"] + p["dense1_b"]
    x = x @ p["dense2_w"] + p["dense2_b"]
    return x


if __name__ == "__main__":
    key = jax.random.PRNGKey(0)
    pkey, xkey = jax.random.split(key)
    params = init_params(pkey)
    kparams = prepare_kernel_params(params)

    # Spatial 12x12 is fixed by dense1's 288-feature input; batch 64 = two grid steps of
    # NB=32 images (fills the MXU M dimension and keeps >=2 "parallel" steps for v7x).
    x = jax.random.normal(xkey, (2 * NB, 3, H1, W1), jnp.float32)

    out = jax.block_until_ready(mynet_forward(kparams, x))
    assert out.shape == (2 * NB, 10), out.shape
    assert out.dtype == jnp.float32, out.dtype
    assert bool(jnp.all(jnp.isfinite(out)))

    ref = jax.block_until_ready(torch_reference(params, x))
    np.testing.assert_allclose(np.asarray(out), np.asarray(ref), rtol=5e-2, atol=5e-2)

    print("KERNEL_OK")
</pallas_src>

<mosaic_0001>
module attributes {stable_mosaic.version = 11 : i64} {
  func.func @_mynet_kernel(%arg0: i32, %arg1: memref<1x384x128xbf16, #tpu.memory_space<vmem>>, %arg2: memref<128x384xbf16, #tpu.memory_space<vmem>>, %arg3: memref<1x192xf32, #tpu.memory_space<vmem>>, %arg4: memref<3x192x256xbf16, #tpu.memory_space<vmem>>, %arg5: memref<1x128xf32, #tpu.memory_space<vmem>>, %arg6: memref<3x128x128xbf16, #tpu.memory_space<vmem>>, %arg7: memref<1x128xf32, #tpu.memory_space<vmem>>, %arg8: memref<128x128xbf16, #tpu.memory_space<vmem>>, %arg9: memref<1x128xf32, #tpu.memory_space<vmem>>, %arg10: memref<1x32x128xf32, #tpu.memory_space<vmem>>, %arg11: memref<384x384xf32, #tpu.memory_space<vmem>>, %arg12: memref<256x192xbf16, #tpu.memory_space<vmem>>, %arg13: memref<192x256xf32, #tpu.memory_space<vmem>>) attributes {dimension_semantics = [#tpu.dimension_semantics<parallel>], iteration_bounds = array<i64: 2>, scalar_prefetch = 0 : i64, scratch_operands = 3 : i64, tpu.core_type = #tpu.core_type<tc>, window_params = [{transform_indices = @transform_0, window_bounds = array<i64: 1, 384, 128>}, {pipeline_mode = #tpu.pipeline_mode<synchronous>, transform_indices = @transform_1, window_bounds = array<i64: 128, 384>}, {pipeline_mode = #tpu.pipeline_mode<synchronous>, transform_indices = @transform_2, window_bounds = array<i64: 1, 192>}, {pipeline_mode = #tpu.pipeline_mode<synchronous>, transform_indices = @transform_3, window_bounds = array<i64: 3, 192, 256>}, {pipeline_mode = #tpu.pipeline_mode<synchronous>, transform_indices = @transform_4, window_bounds = array<i64: 1, 128>}, {pipeline_mode = #tpu.pipeline_mode<synchronous>, transform_indices = @transform_5, window_bounds = array<i64: 3, 128, 128>}, {pipeline_mode = #tpu.pipeline_mode<synchronous>, transform_indices = @transform_6, window_bounds = array<i64: 1, 128>}, {pipeline_mode = #tpu.pipeline_mode<synchronous>, transform_indices = @transform_7, window_bounds = array<i64: 128, 128>}, {pipeline_mode = #tpu.pipeline_mode<synchronous>, transform_indices = @transform_8, window_bounds = array<i64: 1, 128>}, {transform_indices = @transform_9, window_bounds = array<i64: 1, 32, 128>}]} {
    %cst = arith.constant 0.000000e+00 : bf16
    %0 = vector.broadcast %cst : bf16 to vector<32x192xbf16>
    %c0 = arith.constant 0 : index
    %c0_0 = arith.constant 0 : index
    %1 = vector.load %arg12[%c0, %c0_0] : memref<256x192xbf16, #tpu.memory_space<vmem>>, vector<32x192xbf16>
    tpu.vector_store %arg12[%c0, %c0_0], %0 {strides = array<i32>} : memref<256x192xbf16, #tpu.memory_space<vmem>>, vector<32x192xbf16>,
    %c224 = arith.constant 224 : index
    %c0_1 = arith.constant 0 : index
    %2 = vector.load %arg12[%c224, %c0_1] : memref<256x192xbf16, #tpu.memory_space<vmem>>, vector<32x192xbf16>
    tpu.vector_store %arg12[%c224, %c0_1], %0 {strides = array<i32>} : memref<256x192xbf16, #tpu.memory_space<vmem>>, vector<32x192xbf16>,
    %c0_2 = arith.constant 0 : index
    %c0_3 = arith.constant 0 : index
    %c0_4 = arith.constant 0 : index
    %3 = vector.load %arg1[%c0_2, %c0_3, %c0_4] : memref<1x384x128xbf16, #tpu.memory_space<vmem>>, vector<1x384x128xbf16>
    %4 = vector.shape_cast %3 : vector<1x384x128xbf16> to vector<384x128xbf16>
    %c0_5 = arith.constant 0 : index
    %c0_6 = arith.constant 0 : index
    %5 = vector.load %arg2[%c0_5, %c0_6] : memref<128x384xbf16, #tpu.memory_space<vmem>>, vector<128x384xbf16>
    %cst_7 = arith.constant dense<0.000000e+00> : vector<384x384xf32>
    %6 = tpu.matmul %4, %5, %cst_7 {dimension_numbers = #tpu.dot_dimension_numbers<[1], [0], [0], [1], [0, 0, 1, 1], [], []>} : vector<384x128xbf16>, vector<128x384xbf16>, vector<384x384xf32> -> vector<384x384xf32>
    %c0_8 = arith.constant 0 : index
    %c0_9 = arith.constant 0 : index
    %7 = vector.load %arg11[%c0_8, %c0_9] : memref<384x384xf32, #tpu.memory_space<vmem>>, vector<384x384xf32>
    tpu.vector_store %arg11[%c0_8, %c0_9], %6 {strides = array<i32>} : memref<384x384xf32, #tpu.memory_space<vmem>>, vector<384x384xf32>,
    %c0_10 = arith.constant 0 : index
    %c0_11 = arith.constant 0 : index
    %8 = vector.load %arg11[%c0_10, %c0_11] : memref<384x384xf32, #tpu.memory_space<vmem>>, vector<32x384xf32>
    %c32 = arith.constant 32 : index
    %c0_12 = arith.constant 0 : index
    %9 = vector.load %arg11[%c32, %c0_12] : memref<384x384xf32, #tpu.memory_space<vmem>>, vector<32x384xf32>
    %10 = arith.maximumf %8, %9 : vector<32x384xf32>
    %11 = vector.extract_strided_slice %10 {offsets = [0, 0], sizes = [32, 192], strides = [1, 1]} : vector<32x384xf32> to vector<32x192xf32>
    %12 = vector.extract_strided_slice %10 {offsets = [0, 192], sizes = [32, 192], strides = [1, 1]} : vector<32x384xf32> to vector<32x192xf32>
    %13 = arith.maximumf %11, %12 : vector<32x192xf32>
    %c0_13 = arith.constant 0 : index
    %c0_14 = arith.constant 0 : index
    %14 = vector.load %arg3[%c0_13, %c0_14] : memref<1x192xf32, #tpu.memory_space<vmem>>, vector<1x192xf32>
    %15 = vector.broadcast %14 : vector<1x192xf32> to vector<32x192xf32>
    %16 = arith.addf %13, %15 : vector<32x192xf32>
    %cst_15 = arith.constant 0.000000e+00 : f32
    %17 = vector.broadcast %cst_15 : f32 to vector<32x192xf32>
    %18 = arith.maximumf %16, %17 : vector<32x192xf32>
    %19 = arith.truncf %18 : vector<32x192xf32> to vector<32x192xbf16>
    %c32_16 = arith.constant 32 : index
    %c0_17 = arith.constant 0 : index
    %20 = vector.load %arg12[%c32_16, %c0_17] : memref<256x192xbf16, #tpu.memory_space<vmem>>, vector<32x192xbf16>
    tpu.vector_store %arg12[%c32_16, %c0_17], %19 {strides = array<i32>} : memref<256x192xbf16, #tpu.memory_space<vmem>>, vector<32x192xbf16>,
    %c64 = arith.constant 64 : index
    %c0_18 = arith.constant 0 : index
    %21 = vector.load %arg11[%c64, %c0_18] : memref<384x384xf32, #tpu.memory_space<vmem>>, vector<32x384xf32>
    %c96 = arith.constant 96 : index
    %c0_19 = arith.constant 0 : index
    %22 = vector.load %arg11[%c96, %c0_19] : memref<384x384xf32, #tpu.memory_space<vmem>>, vector<32x384xf32>
    %23 = arith.maximumf %21, %22 : vector<32x384xf32>
    %24 = vector.extract_strided_slice %23 {offsets = [0, 0], sizes = [32, 192], strides = [1, 1]} : vector<32x384xf32> to vector<32x192xf32>
    %25 = vector.extract_strided_slice %23 {offsets = [0, 192], sizes = [32, 192], strides = [1, 1]} : vector<32x384xf32> to vector<32x192xf32>
    %26 = arith.maximumf %24, %25 : vector<32x192xf32>
    %c0_20 = arith.constant 0 : index
    %c0_21 = arith.constant 0 : index
    %27 = vector.load %arg3[%c0_20, %c0_21] : memref<1x192xf32, #tpu.memory_space<vmem>>, vector<1x192xf32>
    %28 = vector.broadcast %27 : vector<1x192xf32> to vector<32x192xf32>
    %29 = arith.addf %26, %28 : vector<32x192xf32>
    %cst_22 = arith.constant 0.000000e+00 : f32
    %30 = vector.broadcast %cst_22 : f32 to vector<32x192xf32>
    %31 = arith.maximumf %29, %30 : vector<32x192xf32>
    %32 = arith.truncf %31 : vector<32x192xf32> to vector<32x192xbf16>
    %c64_23 = arith.constant 64 : index
    %c0_24 = arith.constant 0 : index
    %33 = vector.load %arg12[%c64_23, %c0_24] : memref<256x192xbf16, #tpu.memory_space<vmem>>, vector<32x192xbf16>
    tpu.vector_store %arg12[%c64_23, %c0_24], %32 {strides = array<i32>} : memref<256x192xbf16, #tpu.memory_space<vmem>>, vector<32x192xbf16>,
    %c128 = arith.constant 128 : index
    %c0_25 = arith.constant 0 : index
    %34 = vector.load %arg11[%c128, %c0_25] : memref<384x384xf32, #tpu.memory_space<vmem>>, vector<32x384xf32>
    %c160 = arith.constant 160 : index
    %c0_26 = arith.constant 0 : index
    %35 = vector.load %arg11[%c160, %c0_26] : memref<384x384xf32, #tpu.memory_space<vmem>>, vector<32x384xf32>
    %36 = arith.maximumf %34, %35 : vector<32x384xf32>
    %37 = vector.extract_strided_slice %36 {offsets = [0, 0], sizes = [32, 192], strides = [1, 1]} : vector<32x384xf32> to vector<32x192xf32>
    %38 = vector.extract_strided_slice %36 {offsets = [0, 192], sizes = [32, 192], strides = [1, 1]} : vector<32x384xf32> to vector<32x192xf32>
    %39 = arith.maximumf %37, %38 : vector<32x192xf32>
    %c0_27 = arith.constant 0 : index
    %c0_28 = arith.constant 0 : index
    %40 = vector.load %arg3[%c0_27, %c0_28] : memref<1x192xf32, #tpu.memory_space<vmem>>, vector<1x192xf32>
    %41 = vector.broadcast %40 : vector<1x192xf32> to vector<32x192xf32>
    %42 = arith.addf %39, %41 : vector<32x192xf32>
    %cst_29 = arith.constant 0.000000e+00 : f32
    %43 = vector.broadcast %cst_29 : f32 to vector<32x192xf32>
    %44 = arith.maximumf %42, %43 : vector<32x192xf32>
    %45 = arith.truncf %44 : vector<32x192xf32> to vector<32x192xbf16>
    %c96_30 = arith.constant 96 : index
    %c0_31 = arith.constant 0 : index
    %46 = vector.load %arg12[%c96_30, %c0_31] : memref<256x192xbf16, #tpu.memory_space<vmem>>, vector<32x192xbf16>
    tpu.vector_store %arg12[%c96_30, %c0_31], %45 {strides = array<i32>} : memref<256x192xbf16, #tpu.memory_space<vmem>>, vector<32x192xbf16>,
    %c192 = arith.constant 192 : index
    %c0_32 = arith.constant 0 : index
    %47 = vector.load %arg11[%c192, %c0_32] : memref<384x384xf32, #tpu.memory_space<vmem>>, vector<32x384xf32>
    %c224_33 = arith.constant 224 : index
    %c0_34 = arith.constant 0 : index
    %48 = vector.load %arg11[%c224_33, %c0_34] : memref<384x384xf32, #tpu.memory_space<vmem>>, vector<32x384xf32>
    %49 = arith.maximumf %47, %48 : vector<32x384xf32>
    %50 = vector.extract_strided_slice %49 {offsets = [0, 0], sizes = [32, 192], strides = [1, 1]} : vector<32x384xf32> to vector<32x192xf32>
    %51 = vector.extract_strided_slice %49 {offsets = [0, 192], sizes = [32, 192], strides = [1, 1]} : vector<32x384xf32> to vector<32x192xf32>
    %52 = arith.maximumf %50, %51 : vector<32x192xf32>
    %c0_35 = arith.constant 0 : index
    %c0_36 = arith.constant 0 : index
    %53 = vector.load %arg3[%c0_35, %c0_36] : memref<1x192xf32, #tpu.memory_space<vmem>>, vector<1x192xf32>
    %54 = vector.broadcast %53 : vector<1x192xf32> to vector<32x192xf32>
    %55 = arith.addf %52, %54 : vector<32x192xf32>
    %cst_37 = arith.constant 0.000000e+00 : f32
    %56 = vector.broadcast %cst_37 : f32 to vector<32x192xf32>
    %57 = arith.maximumf %55, %56 : vector<32x192xf32>
    %58 = arith.truncf %57 : vector<32x192xf32> to vector<32x192xbf16>
    %c128_38 = arith.constant 128 : index
    %c0_39 = arith.constant 0 : index
    %59 = vector.load %arg12[%c128_38, %c0_39] : memref<256x192xbf16, #tpu.memory_space<vmem>>, vector<32x192xbf16>
    tpu.vector_store %arg12[%c128_38, %c0_39], %58 {strides = array<i32>} : memref<256x192xbf16, #tpu.memory_space<vmem>>, vector<32x192xbf16>,
    %c256 = arith.constant 256 : index
    %c0_40 = arith.constant 0 : index
    %60 = vector.load %arg11[%c256, %c0_40] : memref<384x384xf32, #tpu.memory_space<vmem>>, vector<32x384xf32>
    %c288 = arith.constant 288 : index
    %c0_41 = arith.constant 0 : index
    %61 = vector.load %arg11[%c288, %c0_41] : memref<384x384xf32, #tpu.memory_space<vmem>>, vector<32x384xf32>
    %62 = arith.maximumf %60, %61 : vector<32x384xf32>
    %63 = vector.extract_strided_slice %62 {offsets = [0, 0], sizes = [32, 192], strides = [1, 1]} : vector<32x384xf32> to vector<32x192xf32>
    %64 = vector.extract_strided_slice %62 {offsets = [0, 192], sizes = [32, 192], strides = [1, 1]} : vector<32x384xf32> to vector<32x192xf32>
    %65 = arith.maximumf %63, %64 : vector<32x192xf32>
    %c0_42 = arith.constant 0 : index
    %c0_43 = arith.constant 0 : index
    %66 = vector.load %arg3[%c0_42, %c0_43] : memref<1x192xf32, #tpu.memory_space<vmem>>, vector<1x192xf32>
    %67 = vector.broadcast %66 : vector<1x192xf32> to vector<32x192xf32>
    %68 = arith.addf %65, %67 : vector<32x192xf32>
    %cst_44 = arith.constant 0.000000e+00 : f32
    %69 = vector.broadcast %cst_44 : f32 to vector<32x192xf32>
    %70 = arith.maximumf %68, %69 : vector<32x192xf32>
    %71 = arith.truncf %70 : vector<32x192xf32> to vector<32x192xbf16>
    %c160_45 = arith.constant 160 : index
    %c0_46 = arith.constant 0 : index
    %72 = vector.load %arg12[%c160_45, %c0_46] : memref<256x192xbf16, #tpu.memory_space<vmem>>, vector<32x192xbf16>
    tpu.vector_store %arg12[%c160_45, %c0_46], %71 {strides = array<i32>} : memref<256x192xbf16, #tpu.memory_space<vmem>>, vector<32x192xbf16>,
    %c320 = arith.constant 320 : index
    %c0_47 = arith.constant 0 : index
    %73 = vector.load %arg11[%c320, %c0_47] : memref<384x384xf32, #tpu.memory_space<vmem>>, vector<32x384xf32>
    %c352 = arith.constant 352 : index
    %c0_48 = arith.constant 0 : index
    %74 = vector.load %arg11[%c352, %c0_48] : memref<384x384xf32, #tpu.memory_space<vmem>>, vector<32x384xf32>
    %75 = arith.maximumf %73, %74 : vector<32x384xf32>
    %76 = vector.extract_strided_slice %75 {offsets = [0, 0], sizes = [32, 192], strides = [1, 1]} : vector<32x384xf32> to vector<32x192xf32>
    %77 = vector.extract_strided_slice %75 {offsets = [0, 192], sizes = [32, 192], strides = [1, 1]} : vector<32x384xf32> to vector<32x192xf32>
    %78 = arith.maximumf %76, %77 : vector<32x192xf32>
    %c0_49 = arith.constant 0 : index
    %c0_50 = arith.constant 0 : index
    %79 = vector.load %arg3[%c0_49, %c0_50] : memref<1x192xf32, #tpu.memory_space<vmem>>, vector<1x192xf32>
    %80 = vector.broadcast %79 : vector<1x192xf32> to vector<32x192xf32>
    %81 = arith.addf %78, %80 : vector<32x192xf32>
    %cst_51 = arith.constant 0.000000e+00 : f32
    %82 = vector.broadcast %cst_51 : f32 to vector<32x192xf32>
    %83 = arith.maximumf %81, %82 : vector<32x192xf32>
    %84 = arith.truncf %83 : vector<32x192xf32> to vector<32x192xbf16>
    %c192_52 = arith.constant 192 : index
    %c0_53 = arith.constant 0 : index
    %85 = vector.load %arg12[%c192_52, %c0_53] : memref<256x192xbf16, #tpu.memory_space<vmem>>, vector<32x192xbf16>
    tpu.vector_store %arg12[%c192_52, %c0_53], %84 {strides = array<i32>} : memref<256x192xbf16, #tpu.memory_space<vmem>>, vector<32x192xbf16>,
    %c0_54 = arith.constant 0 : index
    %c0_55 = arith.constant 0 : index
    %86 = vector.load %arg12[%c0_54, %c0_55] : memref<256x192xbf16, #tpu.memory_space<vmem>>, vector<192x192xbf16>
    %c0_56 = arith.constant 0 : index
    %c0_57 = arith.constant 0 : index
    %c0_58 = arith.constant 0 : index
    %87 = vector.load %arg4[%c0_56, %c0_57, %c0_58] : memref<3x192x256xbf16, #tpu.memory_space<vmem>>, vector<1x192x256xbf16>
    %88 = vector.shape_cast %87 : vector<1x192x256xbf16> to vector<192x256xbf16>
    %cst_59 = arith.constant dense<0.000000e+00> : vector<192x256xf32>
    %89 = tpu.matmul %86, %88, %cst_59 {dimension_numbers = #tpu.dot_dimension_numbers<[1], [0], [0], [1], [0, 0, 1, 1], [], []>} : vector<192x192xbf16>, vector<192x256xbf16>, vector<192x256xf32> -> vector<192x256xf32>
    %c32_60 = arith.constant 32 : index
    %c0_61 = arith.constant 0 : index
    %90 = vector.load %arg12[%c32_60, %c0_61] : memref<256x192xbf16, #tpu.memory_space<vmem>>, vector<192x192xbf16>
    %c1 = arith.constant 1 : index
    %c0_62 = arith.constant 0 : index
    %c0_63 = arith.constant 0 : index
    %91 = vector.load %arg4[%c1, %c0_62, %c0_63] : memref<3x192x256xbf16, #tpu.memory_space<vmem>>, vector<1x192x256xbf16>
    %92 = vector.shape_cast %91 : vector<1x192x256xbf16> to vector<192x256xbf16>
    %cst_64 = arith.constant dense<0.000000e+00> : vector<192x256xf32>
    %93 = tpu.matmul %90, %92, %cst_64 {dimension_numbers = #tpu.dot_dimension_numbers<[1], [0], [0], [1], [0, 0, 1, 1], [], []>} : vector<192x192xbf16>, vector<192x256xbf16>, vector<192x256xf32> -> vector<192x256xf32>
    %94 = arith.addf %89, %93 : vector<192x256xf32>
    %c64_65 = arith.constant 64 : index
    %c0_66 = arith.constant 0 : index
    %95 = vector.load %arg12[%c64_65, %c0_66] : memref<256x192xbf16, #tpu.memory_space<vmem>>, vector<192x192xbf16>
    %c2 = arith.constant 2 : index
    %c0_67 = arith.constant 0 : index
    %c0_68 = arith.constant 0 : index
    %96 = vector.load %arg4[%c2, %c0_67, %c0_68] : memref<3x192x256xbf16, #tpu.memory_space<vmem>>, vector<1x192x256xbf16>
    %97 = vector.shape_cast %96 : vector<1x192x256xbf16> to vector<192x256xbf16>
    %cst_69 = arith.constant dense<0.000000e+00> : vector<192x256xf32>
    %98 = tpu.matmul %95, %97, %cst_69 {dimension_numbers = #tpu.dot_dimension_numbers<[1], [0], [0], [1], [0, 0, 1, 1], [], []>} : vector<192x192xbf16>, vector<192x256xbf16>, vector<192x256xf32> -> vector<192x256xf32>
    %99 = arith.addf %94, %98 : vector<192x256xf32>
    %c0_70 = arith.constant 0 : index
    %c0_71 = arith.constant 0 : index
    %100 = vector.load %arg13[%c0_70, %c0_71] : memref<192x256xf32, #tpu.memory_space<vmem>>, vector<192x256xf32>
    tpu.vector_store %arg13[%c0_70, %c0_71], %99 {strides = array<i32>} : memref<192x256xf32, #tpu.memory_space<vmem>>, vector<192x256xf32>,
    %cst_72 = arith.constant 0.000000e+00 : f32
    %101 = vector.broadcast %cst_72 : f32 to vector<32x128xf32>
    %c0_73 = arith.constant 0 : index
    %c0_74 = arith.constant 0 : index
    %102 = vector.load %arg13[%c0_73, %c0_74] : memref<192x256xf32, #tpu.memory_space<vmem>>, vector<32x256xf32>
    %c32_75 = arith.constant 32 : index
    %c0_76 = arith.constant 0 : index
    %103 = vector.load %arg13[%c32_75, %c0_76] : memref<192x256xf32, #tpu.memory_space<vmem>>, vector<32x256xf32>
    %104 = arith.maximumf %102, %103 : vector<32x256xf32>
    %105 = vector.extract_strided_slice %104 {offsets = [0, 0], sizes = [32, 128], strides = [1, 1]} : vector<32x256xf32> to vector<32x128xf32>
    %106 = vector.extract_strided_slice %104 {offsets = [0, 128], sizes = [32, 128], strides = [1, 1]} : vector<32x256xf32> to vector<32x128xf32>
    %107 = arith.maximumf %105, %106 : vector<32x128xf32>
    %c0_77 = arith.constant 0 : index
    %c0_78 = arith.constant 0 : index
    %108 = vector.load %arg5[%c0_77, %c0_78] : memref<1x128xf32, #tpu.memory_space<vmem>>, vector<1x128xf32>
    %109 = vector.broadcast %108 : vector<1x128xf32> to vector<32x128xf32>
    %110 = arith.addf %107, %109 : vector<32x128xf32>
    %cst_79 = arith.constant 0.000000e+00 : f32
    %111 = vector.broadcast %cst_79 : f32 to vector<32x128xf32>
    %112 = arith.maximumf %110, %111 : vector<32x128xf32>
    %113 = arith.truncf %112 : vector<32x128xf32> to vector<32x128xbf16>
    %c0_80 = arith.constant 0 : index
    %c0_81 = arith.constant 0 : index
    %c0_82 = arith.constant 0 : index
    %114 = vector.load %arg6[%c0_80, %c0_81, %c0_82] : memref<3x128x128xbf16, #tpu.memory_space<vmem>>, vector<1x128x128xbf16>
    %115 = vector.shape_cast %114 : vector<1x128x128xbf16> to vector<128x128xbf16>
    %cst_83 = arith.constant dense<0.000000e+00> : vector<32x128xf32>
    %116 = tpu.matmul %113, %115, %cst_83 {dimension_numbers = #tpu.dot_dimension_numbers<[1], [0], [0], [1], [0, 0, 1, 1], [], []>} : vector<32x128xbf16>, vector<128x128xbf16>, vector<32x128xf32> -> vector<32x128xf32>
    %117 = arith.addf %101, %116 : vector<32x128xf32>
    %c64_84 = arith.constant 64 : index
    %c0_85 = arith.constant 0 : index
    %118 = vector.load %arg13[%c64_84, %c0_85] : memref<192x256xf32, #tpu.memory_space<vmem>>, vector<32x256xf32>
    %c96_86 = arith.constant 96 : index
    %c0_87 = arith.constant 0 : index
    %119 = vector.load %arg13[%c96_86, %c0_87] : memref<192x256xf32, #tpu.memory_space<vmem>>, vector<32x256xf32>
    %120 = arith.maximumf %118, %119 : vector<32x256xf32>
    %121 = vector.extract_strided_slice %120 {offsets = [0, 0], sizes = [32, 128], strides = [1, 1]} : vector<32x256xf32> to vector<32x128xf32>
    %122 = vector.extract_strided_slice %120 {offsets = [0, 128], sizes = [32, 128], strides = [1, 1]} : vector<32x256xf32> to vector<32x128xf32>
    %123 = arith.maximumf %121, %122 : vector<32x128xf32>
    %c0_88 = arith.constant 0 : index
    %c0_89 = arith.constant 0 : index
    %124 = vector.load %arg5[%c0_88, %c0_89] : memref<1x128xf32, #tpu.memory_space<vmem>>, vector<1x128xf32>
    %125 = vector.broadcast %124 : vector<1x128xf32> to vector<32x128xf32>
    %126 = arith.addf %123, %125 : vector<32x128xf32>
    %cst_90 = arith.constant 0.000000e+00 : f32
    %127 = vector.broadcast %cst_90 : f32 to vector<32x128xf32>
    %128 = arith.maximumf %126, %127 : vector<32x128xf32>
    %129 = arith.truncf %128 : vector<32x128xf32> to vector<32x128xbf16>
    %c1_91 = arith.constant 1 : index
    %c0_92 = arith.constant 0 : index
    %c0_93 = arith.constant 0 : index
    %130 = vector.load %arg6[%c1_91, %c0_92, %c0_93] : memref<3x128x128xbf16, #tpu.memory_space<vmem>>, vector<1x128x128xbf16>
    %131 = vector.shape_cast %130 : vector<1x128x128xbf16> to vector<128x128xbf16>
    %cst_94 = arith.constant dense<0.000000e+00> : vector<32x128xf32>
    %132 = tpu.matmul %129, %131, %cst_94 {dimension_numbers = #tpu.dot_dimension_numbers<[1], [0], [0], [1], [0, 0, 1, 1], [], []>} : vector<32x128xbf16>, vector<128x128xbf16>, vector<32x128xf32> -> vector<32x128xf32>
    %133 = arith.addf %117, %132 : vector<32x128xf32>
    %c128_95 = arith.constant 128 : index
    %c0_96 = arith.constant 0 : index
    %134 = vector.load %arg13[%c128_95, %c0_96] : memref<192x256xf32, #tpu.memory_space<vmem>>, vector<32x256xf32>
    %c160_97 = arith.constant 160 : index
    %c0_98 = arith.constant 0 : index
    %135 = vector.load %arg13[%c160_97, %c0_98] : memref<192x256xf32, #tpu.memory_space<vmem>>, vector<32x256xf32>
    %136 = arith.maximumf %134, %135 : vector<32x256xf32>
    %137 = vector.extract_strided_slice %136 {offsets = [0, 0], sizes = [32, 128], strides = [1, 1]} : vector<32x256xf32> to vector<32x128xf32>
    %138 = vector.extract_strided_slice %136 {offsets = [0, 128], sizes = [32, 128], strides = [1, 1]} : vector<32x256xf32> to vector<32x128xf32>
    %139 = arith.maximumf %137, %138 : vector<32x128xf32>
    %c0_99 = arith.constant 0 : index
    %c0_100 = arith.constant 0 : index
    %140 = vector.load %arg5[%c0_99, %c0_100] : memref<1x128xf32, #tpu.memory_space<vmem>>, vector<1x128xf32>
    %141 = vector.broadcast %140 : vector<1x128xf32> to vector<32x128xf32>
    %142 = arith.addf %139, %141 : vector<32x128xf32>
    %cst_101 = arith.constant 0.000000e+00 : f32
    %143 = vector.broadcast %cst_101 : f32 to vector<32x128xf32>
    %144 = arith.maximumf %142, %143 : vector<32x128xf32>
    %145 = arith.truncf %144 : vector<32x128xf32> to vector<32x128xbf16>
    %c2_102 = arith.constant 2 : index
    %c0_103 = arith.constant 0 : index
    %c0_104 = arith.constant 0 : index
    %146 = vector.load %arg6[%c2_102, %c0_103, %c0_104] : memref<3x128x128xbf16, #tpu.memory_space<vmem>>, vector<1x128x128xbf16>
    %147 = vector.shape_cast %146 : vector<1x128x128xbf16> to vector<128x128xbf16>
    %cst_105 = arith.constant dense<0.000000e+00> : vector<32x128xf32>
    %148 = tpu.matmul %145, %147, %cst_105 {dimension_numbers = #tpu.dot_dimension_numbers<[1], [0], [0], [1], [0, 0, 1, 1], [], []>} : vector<32x128xbf16>, vector<128x128xbf16>, vector<32x128xf32> -> vector<32x128xf32>
    %149 = arith.addf %133, %148 : vector<32x128xf32>
    %c0_106 = arith.constant 0 : index
    %c0_107 = arith.constant 0 : index
    %150 = vector.load %arg7[%c0_106, %c0_107] : memref<1x128xf32, #tpu.memory_space<vmem>>, vector<1x128xf32>
    %151 = vector.broadcast %150 : vector<1x128xf32> to vector<32x128xf32>
    %152 = arith.addf %149, %151 : vector<32x128xf32>
    %153 = arith.truncf %152 : vector<32x128xf32> to vector<32x128xbf16>
    %c0_108 = arith.constant 0 : index
    %c0_109 = arith.constant 0 : index
    %154 = vector.load %arg8[%c0_108, %c0_109] : memref<128x128xbf16, #tpu.memory_space<vmem>>, vector<128x128xbf16>
    %cst_110 = arith.constant dense<0.000000e+00> : vector<32x128xf32>
    %155 = tpu.matmul %153, %154, %cst_110 {dimension_numbers = #tpu.dot_dimension_numbers<[1], [0], [0], [1], [0, 0, 1, 1], [], []>} : vector<32x128xbf16>, vector<128x128xbf16>, vector<32x128xf32> -> vector<32x128xf32>
    %c0_111 = arith.constant 0 : index
    %c0_112 = arith.constant 0 : index
    %156 = vector.load %arg9[%c0_111, %c0_112] : memref<1x128xf32, #tpu.memory_space<vmem>>, vector<1x128xf32>
    %157 = vector.broadcast %156 : vector<1x128xf32> to vector<32x128xf32>
    %158 = arith.addf %155, %157 : vector<32x128xf32>
    %c0_113 = arith.constant 0 : index
    %c0_114 = arith.constant 0 : index
    %c0_115 = arith.constant 0 : index
    %159 = vector.load %arg10[%c0_113, %c0_114, %c0_115] : memref<1x32x128xf32, #tpu.memory_space<vmem>>, vector<1x32x128xf32>
    %160 = vector.shape_cast %159 : vector<1x32x128xf32> to vector<32x128xf32>
    %161 = vector.shape_cast %158 : vector<32x128xf32> to vector<1x32x128xf32>
    tpu.vector_store %arg10[%c0_113, %c0_114, %c0_115], %161 {strides = array<i32>} : memref<1x32x128xf32, #tpu.memory_space<vmem>>, vector<1x32x128xf32>,
    return
  }
  func.func @transform_0(%arg0: i32) -> (i32, i32, i32) {
    %c0_i32 = arith.constant 0 : i32
    %c0_i32_0 = arith.constant 0 : i32
    %c0_i32_1 = arith.constant 0 : i32
    return %arg0, %c0_i32, %c0_i32_0 : i32, i32, i32
  }
  func.func @transform_1(%arg0: i32) -> (i32, i32) {
    %c0_i32 = arith.constant 0 : i32
    %c0_i32_0 = arith.constant 0 : i32
    %c0_i32_1 = arith.constant 0 : i32
    return %c0_i32, %c0_i32_0 : i32, i32
  }
  func.func @transform_2(%arg0: i32) -> (i32, i32) {
    %c0_i32 = arith.constant 0 : i32
    %c0_i32_0 = arith.constant 0 : i32
    %c0_i32_1 = arith.constant 0 : i32
    return %c0_i32, %c0_i32_0 : i32, i32
  }
  func.func @transform_3(%arg0: i32) -> (i32, i32, i32) {
    %c0_i32 = arith.constant 0 : i32
    %c0_i32_0 = arith.constant 0 : i32
    %c0_i32_1 = arith.constant 0 : i32
    %c0_i32_2 = arith.constant 0 : i32
    return %c0_i32, %c0_i32_0, %c0_i32_1 : i32, i32, i32
  }
  func.func @transform_4(%arg0: i32) -> (i32, i32) {
    %c0_i32 = arith.constant 0 : i32
    %c0_i32_0 = arith.constant 0 : i32
    %c0_i32_1 = arith.constant 0 : i32
    return %c0_i32, %c0_i32_0 : i32, i32
  }
  func.func @transform_5(%arg0: i32) -> (i32, i32, i32) {
    %c0_i32 = arith.constant 0 : i32
    %c0_i32_0 = arith.constant 0 : i32
    %c0_i32_1 = arith.constant 0 : i32
    %c0_i32_2 = arith.constant 0 : i32
    return %c0_i32, %c0_i32_0, %c0_i32_1 : i32, i32, i32
  }
  func.func @transform_6(%arg0: i32) -> (i32, i32) {
    %c0_i32 = arith.constant 0 : i32
    %c0_i32_0 = arith.constant 0 : i32
    %c0_i32_1 = arith.constant 0 : i32
    return %c0_i32, %c0_i32_0 : i32, i32
  }
  func.func @transform_7(%arg0: i32) -> (i32, i32) {
    %c0_i32 = arith.constant 0 : i32
    %c0_i32_0 = arith.constant 0 : i32
    %c0_i32_1 = arith.constant 0 : i32
    return %c0_i32, %c0_i32_0 : i32, i32
  }
  func.func @transform_8(%arg0: i32) -> (i32, i32) {
    %c0_i32 = arith.constant 0 : i32
    %c0_i32_0 = arith.constant 0 : i32
    %c0_i32_1 = arith.constant 0 : i32
    return %c0_i32, %c0_i32_0 : i32, i32
  }
  func.func @transform_9(%arg0: i32) -> (i32, i32, i32) {
    %c0_i32 = arith.constant 0 : i32
    %c0_i32_0 = arith.constant 0 : i32
    %c0_i32_1 = arith.constant 0 : i32
    return %arg0, %c0_i32, %c0_i32_0 : i32, i32, i32
  }
}

</mosaic_0001>

<llo_original>
// kernel: mynet_forward.1
$region0: #{mynet_forward.1}
  #allocation0 [shape = 'u32[]', space=smem, size = 0x4, offset = 0x4, fixed_abs, tag = 'smem constant byte address 0x4 - core index']
  #allocation1 [shape = 'u32[144,128]{1,0:T(1,128)}', space=vmem, size = 0x12000, scoped, tag = 'internal scratch']
  #allocation2 [shape = 'f32[384,384]{1,0:T(8,128)}', space=vmem, size = 0x90000, scoped, tag = 'scratch operand']
  #allocation3 [shape = 'bf16[256,192]{1,0:T(16,128)(2,1)}', space=vmem, size = 0x20000, scoped, tag = 'scratch operand']
  #allocation4 [shape = 'f32[192,256]{1,0:T(8,128)}', space=vmem, size = 0x30000, scoped, tag = 'scratch operand']
  %s0 = inlined_call_operand.vmem [shape: bf16[2,384,128], index: 0, kind: input, shape index: {}]
  %s1 = inlined_call_operand.vmem [shape: bf16[128,384], index: 1, kind: input, shape index: {}]
  %s2 = inlined_call_operand.vmem [shape: f32[1,192], index: 2, kind: input, shape index: {}]
  %s3 = inlined_call_operand.vmem [shape: bf16[3,192,256], index: 3, kind: input, shape index: {}]
  %s4 = inlined_call_operand.vmem [shape: f32[1,128], index: 4, kind: input, shape index: {}]
  %s5 = inlined_call_operand.vmem [shape: bf16[3,128,128], index: 5, kind: input, shape index: {}]
  %s6 = inlined_call_operand.vmem [shape: f32[1,128], index: 6, kind: input, shape index: {}]
  %s7 = inlined_call_operand.vmem [shape: bf16[128,128], index: 7, kind: input, shape index: {}]
  %s8 = inlined_call_operand.vmem [shape: f32[1,128], index: 8, kind: input, shape index: {}]
  %s9 = inlined_call_operand.vmem [shape: f32[2,32,128], index: 9, kind: output, shape index: {}]
  %s10 = sld [smem:[#allocation0]]
  $region69: #{mynet_forward.1} parent=0
    _
  %s12 = ssub.s32 1, %s10
  %s13 = scalar_select 0, %s12, %s10
  loop: start=0, step=1, limit=4
  $region2: #{mynet_forward.1} parent=0 // loop_pre_header
    _
  $region3: #{mynet_forward.1} parent=0 // loop_header
    %s15 = sphi 0, %s19
    %p16 = scmp.ge.s32.totalorder %s15, 4
    %s25 = sphi 0, %s27
    %s28 = sphi 0, %s25
    %s29 = sphi 0, %s28
    %s45 = sphi 0, %s29
    %s49 = sphi 0, %s49
    %s51 = sphi 0, %s49
    %s52 = sphi 0, %s51
    %s66 = sphi 0, %s52
    %s70 = sphi 0, %s70
    %s72 = sphi 0, %s70
    %s73 = sphi 0, %s72
    %s87 = sphi 0, %s73
    %s91 = sphi 0, %s91
    %s93 = sphi 0, %s91
    %s94 = sphi 0, %s93
    %s108 = sphi 0, %s94
    %s112 = sphi 0, %s112
    %s114 = sphi 0, %s112
    %s115 = sphi 0, %s114
    %s129 = sphi 0, %s115
    %s133 = sphi 0, %s133
    %s135 = sphi 0, %s133
    %s136 = sphi 0, %s135
    %s150 = sphi 0, %s136
    %s154 = sphi 0, %s154
    %s156 = sphi 0, %s154
    %s157 = sphi 0, %s156
    %s171 = sphi 0, %s157
    %s175 = sphi 0, %s175
    %s177 = sphi 0, %s175
    %s178 = sphi 0, %s177
    %s192 = sphi 0, %s178
    %s196 = sphi 0, %s196
    %s198 = sphi 0, %s196
    %s199 = sphi 0, %s198
    %s213 = sphi 0, %s199
    %s219 = sphi 0, %s221
    %s222 = sphi 0, %s219
    %s223 = sphi 0, %s222
    %s239 = sphi 0, %s223
  $region4: #{mynet_forward.1} parent=0 // loop_header_branch
    %18 = sbr.rel (%p16) target = $region8
  $region5: #{mynet_forward.1} parent=0 // loop_body
    %s20 = ssub.s32 %s15, 1
    %s21 = ssub.s32 %s15, 2
    %s22 = sadd.s32 %s15, 1
    %s23 = ssub.s32 %s15, %s22
    %p24 = scmp.eq.s32.totalorder %s23, 0
    %s26 = sadd.s32 %s25, 1
    %s27 = scalar_select %p24, %s25, %s26
    %p30 = pneg %p24
    %p31 = scmp.eq.s32.totalorder %s15, 1
    %p32 = por %p30, %p31
    %p33 = scmp.ne.s32.totalorder %s25, %s28
    %p34 = scmp.eq.s32.totalorder %s15, 0
    %p35 = por %p33, %p34
    %p36 = scmp.ne.s32.totalorder %s25, %s28
    %p37 = scmp.eq.s32.totalorder %s20, 1
    %p38 = por %p36, %p37
    %p39 = scmp.ne.s32.totalorder %s28, %s29
    %p40 = scmp.eq.s32.totalorder %s20, 0
    %p41 = por %p39, %p40
    %p42 = scmp.ne.s32.totalorder %s28, %s29
    %p43 = scmp.eq.s32.totalorder %s21, 1
    %p44 = por %p42, %p43
    %p46 = scmp.ne.s32.totalorder %s29, %s45
    %p47 = scmp.eq.s32.totalorder %s21, 0
    %p48 = por %p46, %p47
    %s50 = sadd.s32 %s49, 1
    %p53 = scmp.eq.s32.totalorder %s15, 1
    %p54 = scmp.ne.s32.totalorder %s49, %s51
    %p55 = scmp.eq.s32.totalorder %s15, 0
    %p56 = por %p54, %p55
    %p57 = scmp.ne.s32.totalorder %s49, %s51
    %p58 = scmp.eq.s32.totalorder %s20, 1
    %p59 = por %p57, %p58
    %p60 = scmp.ne.s32.totalorder %s51, %s52
    %p61 = scmp.eq.s32.totalorder %s20, 0
    %p62 = por %p60, %p61
    %p63 = scmp.ne.s32.totalorder %s51, %s52
    %p64 = scmp.eq.s32.totalorder %s21, 1
    %p65 = por %p63, %p64
    %p67 = scmp.ne.s32.totalorder %s52, %s66
    %p68 = scmp.eq.s32.totalorder %s21, 0
    %p69 = por %p67, %p68
    %s71 = sadd.s32 %s70, 1
    %p74 = scmp.eq.s32.totalorder %s15, 1
    %p75 = scmp.ne.s32.totalorder %s70, %s72
    %p76 = scmp.eq.s32.totalorder %s15, 0
    %p77 = por %p75, %p76
    %p78 = scmp.ne.s32.totalorder %s70, %s72
    %p79 = scmp.eq.s32.totalorder %s20, 1
    %p80 = por %p78, %p79
    %p81 = scmp.ne.s32.totalorder %s72, %s73
    %p82 = scmp.eq.s32.totalorder %s20, 0
    %p83 = por %p81, %p82
    %p84 = scmp.ne.s32.totalorder %s72, %s73
    %p85 = scmp.eq.s32.totalorder %s21, 1
    %p86 = por %p84, %p85
    %p88 = scmp.ne.s32.totalorder %s73, %s87
    %p89 = scmp.eq.s32.totalorder %s21, 0
    %p90 = por %p88, %p89
    %s92 = sadd.s32 %s91, 1
    %p95 = scmp.eq.s32.totalorder %s15, 1
    %p96 = scmp.ne.s32.totalorder %s91, %s93
    %p97 = scmp.eq.s32.totalorder %s15, 0
    %p98 = por %p96, %p97
    %p99 = scmp.ne.s32.totalorder %s91, %s93
    %p100 = scmp.eq.s32.totalorder %s20, 1
    %p101 = por %p99, %p100
    %p102 = scmp.ne.s32.totalorder %s93, %s94
    %p103 = scmp.eq.s32.totalorder %s20, 0
    %p104 = por %p102, %p103
    %p105 = scmp.ne.s32.totalorder %s93, %s94
    %p106 = scmp.eq.s32.totalorder %s21, 1
    %p107 = por %p105, %p106
    %p109 = scmp.ne.s32.totalorder %s94, %s108
    %p110 = scmp.eq.s32.totalorder %s21, 0
    %p111 = por %p109, %p110
    %s113 = sadd.s32 %s112, 1
    %p116 = scmp.eq.s32.totalorder %s15, 1
    %p117 = scmp.ne.s32.totalorder %s112, %s114
    %p118 = scmp.eq.s32.totalorder %s15, 0
    %p119 = por %p117, %p118
    %p120 = scmp.ne.s32.totalorder %s112, %s114
    %p121 = scmp.eq.s32.totalorder %s20, 1
    %p122 = por %p120, %p121
    %p123 = scmp.ne.s32.totalorder %s114, %s115
    %p124 = scmp.eq.s32.totalorder %s20, 0
    %p125 = por %p123, %p124
    %p126 = scmp.ne.s32.totalorder %s114, %s115
    %p127 = scmp.eq.s32.totalorder %s21, 1
    %p128 = por %p126, %p127
    %p130 = scmp.ne.s32.totalorder %s115, %s129
    %p131 = scmp.eq.s32.totalorder %s21, 0
    %p132 = por %p130, %p131
    %s134 = sadd.s32 %s133, 1
    %p137 = scmp.eq.s32.totalorder %s15, 1
    %p138 = scmp.ne.s32.totalorder %s133, %s135
    %p139 = scmp.eq.s32.totalorder %s15, 0
    %p140 = por %p138, %p139
    %p141 = scmp.ne.s32.totalorder %s133, %s135
    %p142 = scmp.eq.s32.totalorder %s20, 1
    %p143 = por %p141, %p142
    %p144 = scmp.ne.s32.totalorder %s135, %s136
    %p145 = scmp.eq.s32.totalorder %s20, 0
    %p146 = por %p144, %p145
    %p147 = scmp.ne.s32.totalorder %s135, %s136
    %p148 = scmp.eq.s32.totalorder %s21, 1
    %p149 = por %p147, %p148
    %p151 = scmp.ne.s32.totalorder %s136, %s150
    %p152 = scmp.eq.s32.totalorder %s21, 0
    %p153 = por %p151, %p152
    %s155 = sadd.s32 %s154, 1
    %p158 = scmp.eq.s32.totalorder %s15, 1
    %p159 = scmp.ne.s32.totalorder %s154, %s156
    %p160 = scmp.eq.s32.totalorder %s15, 0
    %p161 = por %p159, %p160
    %p162 = scmp.ne.s32.totalorder %s154, %s156
    %p163 = scmp.eq.s32.totalorder %s20, 1
    %p164 = por %p162, %p163
    %p165 = scmp.ne.s32.totalorder %s156, %s157
    %p166 = scmp.eq.s32.totalorder %s20, 0
    %p167 = por %p165, %p166
    %p168 = scmp.ne.s32.totalorder %s156, %s157
    %p169 = scmp.eq.s32.totalorder %s21, 1
    %p170 = por %p168, %p169
    %p172 = scmp.ne.s32.totalorder %s157, %s171
    %p173 = scmp.eq.s32.totalorder %s21, 0
    %p174 = por %p172, %p173
    %s176 = sadd.s32 %s175, 1
    %p179 = scmp.eq.s32.totalorder %s15, 1
    %p180 = scmp.ne.s32.totalorder %s175, %s177
    %p181 = scmp.eq.s32.totalorder %s15, 0
    %p182 = por %p180, %p181
    %p183 = scmp.ne.s32.totalorder %s175, %s177
    %p184 = scmp.eq.s32.totalorder %s20, 1
    %p185 = por %p183, %p184
    %p186 = scmp.ne.s32.totalorder %s177, %s178
    %p187 = scmp.eq.s32.totalorder %s20, 0
    %p188 = por %p186, %p187
    %p189 = scmp.ne.s32.totalorder %s177, %s178
    %p190 = scmp.eq.s32.totalorder %s21, 1
    %p191 = por %p189, %p190
    %p193 = scmp.ne.s32.totalorder %s178, %s192
    %p194 = scmp.eq.s32.totalorder %s21, 0
    %p195 = por %p193, %p194
    %s197 = sadd.s32 %s196, 1
    %p200 = scmp.eq.s32.totalorder %s15, 1
    %p201 = scmp.ne.s32.totalorder %s196, %s198
    %p202 = scmp.eq.s32.totalorder %s15, 0
    %p203 = por %p201, %p202
    %p204 = scmp.ne.s32.totalorder %s196, %s198
    %p205 = scmp.eq.s32.totalorder %s20, 1
    %p206 = por %p204, %p205
    %p207 = scmp.ne.s32.totalorder %s198, %s199
    %p208 = scmp.eq.s32.totalorder %s20, 0
    %p209 = por %p207, %p208
    %p210 = scmp.ne.s32.totalorder %s198, %s199
    %p211 = scmp.eq.s32.totalorder %s21, 1
    %p212 = por %p210, %p211
    %p214 = scmp.ne.s32.totalorder %s199, %s213
    %p215 = scmp.eq.s32.totalorder %s21, 0
    %p216 = por %p214, %p215
    %s217 = ssub.s32 %s15, %s22
    %p218 = scmp.eq.s32.totalorder %s217, 0
    %s220 = sadd.s32 %s219, 1
    %s221 = scalar_select %p218, %s219, %s220
    %p224 = pneg %p218
    %p225 = scmp.eq.s32.totalorder %s15, 1
    %p226 = por %p224, %p225
    %p227 = scmp.ne.s32.totalorder %s219, %s222
    %p228 = scmp.eq.s32.totalorder %s15, 0
    %p229 = por %p227, %p228
    %p230 = scmp.ne.s32.totalorder %s219, %s222
    %p231 = scmp.eq.s32.totalorder %s20, 1
    %p232 = por %p230, %p231
    %p233 = scmp.ne.s32.totalorder %s222, %s223
    %p234 = scmp.eq.s32.totalorder %s20, 0
    %p235 = por %p233, %p234
    %p236 = scmp.ne.s32.totalorder %s222, %s223
    %p237 = scmp.eq.s32.totalorder %s21, 1
    %p238 = por %p236, %p237
    %p240 = scmp.ne.s32.totalorder %s223, %s239
    %p241 = scmp.eq.s32.totalorder %s21, 0
    %p242 = por %p240, %p241
    %p243 = scmp.le.s32.totalorder 1, %s15
    %p244 = scmp.lt.s32.totalorder %s15, 3
    %p245 = pnand %p243, %p244
    %p246 = pneg %p245
    // Predicated region
    $region9: #{mynet_forward.1} parent=5 // pred_check
      _
    $region10: #{mynet_forward.1} parent=5 // pred_check_branch
      %248 = sbr.rel (%p245) target = $region12
    $region11: #{mynet_forward.1} parent=5 // pred_region
      %s249 = ssub.s32 %s15, 1
      // Predicated region
      $region13: #{mynet_forward.1} parent=11 // pred_check
        %p250 = pneg %p62
      $region14: #{mynet_forward.1} parent=11 // pred_check_branch
        %252 = sbr.rel (%p250) target = $region16
      $region15: #{mynet_forward.1} parent=11 // pred_region
        _
      $region16: #{mynet_forward.1} parent=11 // pred_fallthru
        _
      // Predicated region
      $region17: #{mynet_forward.1} parent=11 // pred_check
        %p253 = pneg %p83
      $region18: #{mynet_forward.1} parent=11 // pred_check_branch
        %255 = sbr.rel (%p253) target = $region20
      $region19: #{mynet_forward.1} parent=11 // pred_region
        _
      $region20: #{mynet_forward.1} parent=11 // pred_fallthru
        _
      // Predicated region
      $region21: #{mynet_forward.1} parent=11 // pred_check
        %p256 = pneg %p104
      $region22: #{mynet_forward.1} parent=11 // pred_check_branch
        %258 = sbr.rel (%p256) target = $region24
      $region23: #{mynet_forward.1} parent=11 // pred_region
        _
      $region24: #{mynet_forward.1} parent=11 // pred_fallthru
        _
      // Predicated region
      $region25: #{mynet_forward.1} parent=11 // pred_check
        %p259 = pneg %p125
      $region26: #{mynet_forward.1} parent=11 // pred_check_branch
        %261 = sbr.rel (%p259) target = $region28
      $region27: #{mynet_forward.1} parent=11 // pred_region
        _
      $region28: #{mynet_forward.1} parent=11 // pred_fallthru
        _
      // Predicated region
      $region29: #{mynet_forward.1} parent=11 // pred_check
        %p262 = pneg %p146
      $region30: #{mynet_forward.1} parent=11 // pred_check_branch
        %264 = sbr.rel (%p262) target = $region32
      $region31: #{mynet_forward.1} parent=11 // pred_region
        _
      $region32: #{mynet_forward.1} parent=11 // pred_fallthru
        _
      // Predicated region
      $region33: #{mynet_forward.1} parent=11 // pred_check
        %p265 = pneg %p167
      $region34: #{mynet_forward.1} parent=11 // pred_check_branch
        %267 = sbr.rel (%p265) target = $region36
      $region35: #{mynet_forward.1} parent=11 // pred_region
        _
      $region36: #{mynet_forward.1} parent=11 // pred_fallthru
        _
      // Predicated region
      $region37: #{mynet_forward.1} parent=11 // pred_check
        %p268 = pneg %p188
      $region38: #{mynet_forward.1} parent=11 // pred_check_branch
        %270 = sbr.rel (%p268) target = $region40
      $region39: #{mynet_forward.1} parent=11 // pred_region
        _
      $region40: #{mynet_forward.1} parent=11 // pred_fallthru
        _
      // Predicated region
      $region41: #{mynet_forward.1} parent=11 // pred_check
        %p271 = pneg %p209
      $region42: #{mynet_forward.1} parent=11 // pred_check_branch
        %273 = sbr.rel (%p271) target = $region44
      $region43: #{mynet_forward.1} parent=11 // pred_region
        _
      $region44: #{mynet_forward.1} parent=11 // pred_fallthru
        _
    $region12: #{mynet_forward.1} parent=5 // pred_fallthru
      _
    %p274 = scmp.lt.s32.totalorder %s15, 2
    // Predicated region
    $region45: #{mynet_forward.1} parent=5 // pred_check
      %p275 = pneg %p274
    $region46: #{mynet_forward.1} parent=5 // pred_check_branch
      %277 = sbr.rel (%p275) target = $region48
    $region47: #{mynet_forward.1} parent=5 // pred_region
      // Predicated region
      $region49: #{mynet_forward.1} parent=47 // pred_check
        %p278 = pneg %p35
      $region50: #{mynet_forward.1} parent=47 // pred_check_branch
        %280 = sbr.rel (%p278) target = $region52
      $region51: #{mynet_forward.1} parent=47 // pred_region
        %p281 = scmp.lt.s32.totalorder %s15, 1
        %s282 = scalar_select %p281, %s15, 1
        %s283 = smul.addr %s282, 48
        %s284 = smul.addr %s283, 4
        %s285 = scalar_lea.vmem %s0, %s284
      $region52: #{mynet_forward.1} parent=47 // pred_fallthru
        _
    $region48: #{mynet_forward.1} parent=5 // pred_fallthru
      _
    %p286 = scmp.le.s32.totalorder 1, %s15
    %p287 = scmp.lt.s32.totalorder %s15, 3
    %p288 = pnand %p286, %p287
    %p289 = pneg %p288
    // Predicated region
    $region53: #{mynet_forward.1} parent=5 // pred_check
      _
    $region54: #{mynet_forward.1} parent=5 // pred_check_branch
      %291 = sbr.rel (%p288) target = $region56
    $region55: #{mynet_forward.1} parent=5 // pred_region
      %s292 = ssub.s32 %s15, 1
      %p293 = scmp.lt.s32.totalorder %s20, 1
      %s294 = scalar_select %p293, %s20, 1
      %s295 = smul.addr %s294, 48
      %s296 = smul.addr %s295, 4
      %s297 = scalar_lea.vmem %s0, %s296
      %p298 = pneg %p41
      %p299 = pneg %p38
      %p300 = pneg %p62
      %p301 = pneg %p59
      %p302 = pneg %p83
      %p303 = pneg %p80
      %p304 = pneg %p104
      %p305 = pneg %p101
      %p306 = pneg %p125
      %p307 = pneg %p122
      %p308 = pneg %p146
      %p309 = pneg %p143
      %p310 = pneg %p167
      %p311 = pneg %p164
      %p312 = pneg %p188
      %p313 = pneg %p185
      %p314 = pneg %p209
      %p315 = pneg %p206
      %p316 = pneg %p235
      %p317 = pneg %p232
      %p318 = scmp.lt.s32.totalorder %s20, 1
      %s319 = scalar_select %p318, %s20, 1
      %s320 = smul.addr %s319, 4
      %s321 = smul.addr %s320, 8
      %s322 = scalar_lea.vmem %s9, %s321
      %p323 = scmp.lt.s32.totalorder %s20, 1
      %s324 = scalar_select %p323, %s20, 1
      %s325 = smul.addr %s324, 48
      %s326 = smul.addr %s325, 4
      %s327 = scalar_lea.vmem %s0, %s326
      %p328 = scmp.lt.s32.totalorder %s20, 1
      %s329 = scalar_select %p328, %s20, 1
      %s330 = smul.addr %s329, 4
      %s331 = smul.addr %s330, 8
      %s332 = scalar_lea.vmem %s9, %s331
      %334 = vst [vmem:[#allocation3] sm:$0xff] 0
      %vm335 = vcmask 523264
      %336 = vst.msk [vmem:[#allocation3 + $0x8] sm:$0xff] %vm335, 0
      %337 = vst [vmem:[#allocation3 + $0x10] sm:$0xff] 0
      %338 = vst.msk [vmem:[#allocation3 + $0x18] sm:$0xff] %vm335, 0
      %339 = vst [vmem:[#allocation3 + $0xe0] sm:$0xff] 0
      %340 = vst.msk [vmem:[#allocation3 + $0xe8] sm:$0xff] %vm335, 0
      %341 = vst [vmem:[#allocation3 + $0xf0] sm:$0xff] 0
      %342 = vst.msk [vmem:[#allocation3 + $0xf8] sm:$0xff] %vm335, 0
      %v343 = vld [vmem:[%s327] sm:$0xf]
      %v344 = vld [vmem:[%s327 + $0x4] sm:$0xf]
      %v345 = vld [vmem:[%s327 + $0x8] sm:$0xf]
      %v346 = vld [vmem:[%s327 + $0xc] sm:$0xf]
      %v347 = vld [vmem:[%s327 + $0x10] sm:$0xf]
      %v348 = vld [vmem:[%s327 + $0x14] sm:$0xf]
      %v349 = vld [vmem:[%s327 + $0x18] sm:$0xf]
      %v350 = vld [vmem:[%s327 + $0x1c] sm:$0xf]
      %v351 = vld [vmem:[%s327 + $0x20] sm:$0xf]
      %v352 = vld [vmem:[%s327 + $0x24] sm:$0xf]
      %v353 = vld [vmem:[%s327 + $0x28] sm:$0xf]
      %v354 = vld [vmem:[%s327 + $0x2c] sm:$0xf]
      %v355 = vld [vmem:[%s327 + $0x30] sm:$0xf]
      %v356 = vld [vmem:[%s327 + $0x34] sm:$0xf]
      %v357 = vld [vmem:[%s327 + $0x38] sm:$0xf]
      %v358 = vld [vmem:[%s327 + $0x3c] sm:$0xf]
      %v359 = vld [vmem:[%s327 + $0x40] sm:$0xf]
      %v360 = vld [vmem:[%s327 + $0x44] sm:$0xf]
      %v361 = vld [vmem:[%s327 + $0x48] sm:$0xf]
      %v362 = vld [vmem:[%s327 + $0x4c] sm:$0xf]
      %v363 = vld [vmem:[%s327 + $0x50] sm:$0xf]
      %v364 = vld [vmem:[%s327 + $0x54] sm:$0xf]
      %v365 = vld [vmem:[%s327 + $0x58] sm:$0xf]
      %v366 = vld [vmem:[%s327 + $0x5c] sm:$0xf]
      %v367 = vld [vmem:[%s327 + $0x60] sm:$0xf]
      %v368 = vld [vmem:[%s327 + $0x64] sm:$0xf]
      %v369 = vld [vmem:[%s327 + $0x68] sm:$0xf]
      %v370 = vld [vmem:[%s327 + $0x6c] sm:$0xf]
      %v371 = vld [vmem:[%s327 + $0x70] sm:$0xf]
      %v372 = vld [vmem:[%s327 + $0x74] sm:$0xf]
      %v373 = vld [vmem:[%s327 + $0x78] sm:$0xf]
      %v374 = vld [vmem:[%s327 + $0x7c] sm:$0xf]
      %v375 = vld [vmem:[%s327 + $0x80] sm:$0xf]
      %v376 = vld [vmem:[%s327 + $0x84] sm:$0xf]
      %v377 = vld [vmem:[%s327 + $0x88] sm:$0xf]
      %v378 = vld [vmem:[%s327 + $0x8c] sm:$0xf]
      %v379 = vld [vmem:[%s327 + $0x90] sm:$0xf]
      %v380 = vld [vmem:[%s327 + $0x94] sm:$0xf]
      %v381 = vld [vmem:[%s327 + $0x98] sm:$0xf]
      %v382 = vld [vmem:[%s327 + $0x9c] sm:$0xf]
      %v383 = vld [vmem:[%s327 + $0xa0] sm:$0xf]
      %v384 = vld [vmem:[%s327 + $0xa4] sm:$0xf]
      %v385 = vld [vmem:[%s327 + $0xa8] sm:$0xf]
      %v386 = vld [vmem:[%s327 + $0xac] sm:$0xf]
      %v387 = vld [vmem:[%s327 + $0xb0] sm:$0xf]
      %v388 = vld [vmem:[%s327 + $0xb4] sm:$0xf]
      %v389 = vld [vmem:[%s327 + $0xb8] sm:$0xf]
      %v390 = vld [vmem:[%s327 + $0xbc] sm:$0xf]
      %v391 = vld [vmem:[%s1] sm:$0xff]
      %v392 = vld [vmem:[%s1 + $0x8] sm:$0xf]
      %v393 = vld [vmem:[%s1 + $0xc] sm:$0xff]
      %v394 = vld [vmem:[%s1 + $0x14] sm:$0xf]
      %v395 = vld [vmem:[%s1 + $0x18] sm:$0xff]
      %v396 = vld [vmem:[%s1 + $0x20] sm:$0xf]
      %v397 = vld [vmem:[%s1 + $0x24] sm:$0xff]
      %v398 = vld [vmem:[%s1 + $0x2c] sm:$0xf]
      %v399 = vld [vmem:[%s1 + $0x30] sm:$0xff]
      %v400 = vld [vmem:[%s1 + $0x38] sm:$0xf]
      %v401 = vld [vmem:[%s1 + $0x3c] sm:$0xff]
      %v402 = vld [vmem:[%s1 + $0x44] sm:$0xf]
      %v403 = vld [vmem:[%s1 + $0x48] sm:$0xff]
      %v404 = vld [vmem:[%s1 + $0x50] sm:$0xf]
      %v405 = vld [vmem:[%s1 + $0x54] sm:$0xff]
      %v406 = vld [vmem:[%s1 + $0x5c] sm:$0xf]
      %v407 = vld [vmem:[%s1 + $0x60] sm:$0xff]
      %v408 = vld [vmem:[%s1 + $0x68] sm:$0xf]
      %v409 = vld [vmem:[%s1 + $0x6c] sm:$0xff]
      %v410 = vld [vmem:[%s1 + $0x74] sm:$0xf]
      %v411 = vld [vmem:[%s1 + $0x78] sm:$0xff]
      %v412 = vld [vmem:[%s1 + $0x80] sm:$0xf]
      %v413 = vld [vmem:[%s1 + $0x84] sm:$0xff]
      %v414 = vld [vmem:[%s1 + $0x8c] sm:$0xf]
      %v415 = vld [vmem:[%s1 + $0x90] sm:$0xff]
      %v416 = vld [vmem:[%s1 + $0x98] sm:$0xf]
      %v417 = vld [vmem:[%s1 + $0x9c] sm:$0xff]
      %v418 = vld [vmem:[%s1 + $0xa4] sm:$0xf]
      %v419 = vld [vmem:[%s1 + $0xa8] sm:$0xff]
      %v420 = vld [vmem:[%s1 + $0xb0] sm:$0xf]
      %v421 = vld [vmem:[%s1 + $0xb4] sm:$0xff]
      %v422 = vld [vmem:[%s1 + $0xbc] sm:$0xf]
      %v471 = vunpack.c.l.b16 %v343
      %v472 = vunpack.c.l.b16 %v344
      %v473 = vunpack.c.l.b16 %v345
      %v474 = vunpack.c.l.b16 %v346
      %v475 = vunpack.c.l.b16 %v347
      %v476 = vunpack.c.l.b16 %v348
      %v477 = vunpack.c.l.b16 %v349
      %v478 = vunpack.c.l.b16 %v350
      %v479 = vunpack.c.l.b16 %v351
      %v480 = vunpack.c.l.b16 %v352
      %v481 = vunpack.c.l.b16 %v353
      %v482 = vunpack.c.l.b16 %v354
      %v483 = vunpack.c.l.b16 %v355
      %v484 = vunpack.c.l.b16 %v356
      %v485 = vunpack.c.l.b16 %v357
      %v486 = vunpack.c.l.b16 %v358
      %v487 = vunpack.c.l.b16 %v359
      %v488 = vunpack.c.l.b16 %v360
      %v489 = vunpack.c.l.b16 %v361
      %v490 = vunpack.c.l.b16 %v362
      %v491 = vunpack.c.l.b16 %v363
      %v492 = vunpack.c.l.b16 %v364
      %v493 = vunpack.c.l.b16 %v365
      %v494 = vunpack.c.l.b16 %v366
      %v495 = vunpack.c.l.b16 %v367
      %v496 = vunpack.c.l.b16 %v368
      %v497 = vunpack.c.l.b16 %v369
      %v498 = vunpack.c.l.b16 %v370
      %v499 = vunpack.c.l.b16 %v371
      %v500 = vunpack.c.l.b16 %v372
      %v501 = vunpack.c.l.b16 %v373
      %v502 = vunpack.c.l.b16 %v374
      %v503 = vunpack.c.l.b16 %v375
      %v504 = vunpack.c.l.b16 %v376
      %v505 = vunpack.c.l.b16 %v377
      %v506 = vunpack.c.l.b16 %v378
      %v507 = vunpack.c.l.b16 %v379
      %v508 = vunpack.c.l.b16 %v380
      %v509 = vunpack.c.l.b16 %v381
      %v510 = vunpack.c.l.b16 %v382
      %v511 = vunpack.c.l.b16 %v383
      %v512 = vunpack.c.l.b16 %v384
      %v513 = vunpack.c.l.b16 %v385
      %v514 = vunpack.c.l.b16 %v386
      %v515 = vunpack.c.l.b16 %v387
      %v516 = vunpack.c.l.b16 %v388
      %v517 = vunpack.c.l.b16 %v389
      %v518 = vunpack.c.l.b16 %v390
      %v519 = vpack.c.b16 %v472, %v471
      %v520 = vpack.c.b16 %v474, %v473
      %v521 = vpack.c.b16 %v476, %v475
      %v522 = vpack.c.b16 %v478, %v477
      %v523 = vpack.c.b16 %v480, %v479
      %v524 = vpack.c.b16 %v482, %v481
      %v525 = vpack.c.b16 %v484, %v483
      %v526 = vpack.c.b16 %v486, %v485
      %v527 = vpack.c.b16 %v488, %v487
      %v528 = vpack.c.b16 %v490, %v489
      %v529 = vpack.c.b16 %v492, %v491
      %v530 = vpack.c.b16 %v494, %v493
      %v531 = vpack.c.b16 %v496, %v495
      %v532 = vpack.c.b16 %v498, %v497
      %v533 = vpack.c.b16 %v500, %v499
      %v534 = vpack.c.b16 %v502, %v501
      %v535 = vpack.c.b16 %v504, %v503
      %v536 = vpack.c.b16 %v506, %v505
      %v537 = vpack.c.b16 %v508, %v507
      %v538 = vpack.c.b16 %v510, %v509
      %v539 = vpack.c.b16 %v512, %v511
      %v540 = vpack.c.b16 %v514, %v513
      %v541 = vpack.c.b16 %v516, %v515
      %v542 = vpack.c.b16 %v518, %v517
      %v599 = vunpack.c.l.b16 %v391
      %v600 = vunpack.c.h.b16 %v391
      %v601 = vunpack.c.l.b16 %v392
      %v602 = vunpack.c.l.b16 %v393
      %v603 = vunpack.c.h.b16 %v393
      %v604 = vunpack.c.l.b16 %v394
      %v605 = vunpack.c.l.b16 %v395
      %v606 = vunpack.c.h.b16 %v395
      %v607 = vunpack.c.l.b16 %v396
      %v608 = vunpack.c.l.b16 %v397
      %v609 = vunpack.c.h.b16 %v397
      %v610 = vunpack.c.l.b16 %v398
      %v611 = vunpack.c.l.b16 %v399
      %v612 = vunpack.c.h.b16 %v399
      %v613 = vunpack.c.l.b16 %v400
      %v614 = vunpack.c.l.b16 %v401
      %v615 = vunpack.c.h.b16 %v401
      %v616 = vunpack.c.l.b16 %v402
      %v617 = vunpack.c.l.b16 %v403
      %v618 = vunpack.c.h.b16 %v403
      %v619 = vunpack.c.l.b16 %v404
      %v620 = vunpack.c.l.b16 %v405
      %v621 = vunpack.c.h.b16 %v405
      %v622 = vunpack.c.l.b16 %v406
      %v623 = vunpack.c.l.b16 %v407
      %v624 = vunpack.c.h.b16 %v407
      %v625 = vunpack.c.l.b16 %v408
      %v626 = vunpack.c.l.b16 %v409
      %v627 = vunpack.c.h.b16 %v409
      %v628 = vunpack.c.l.b16 %v410
      %v629 = vunpack.c.l.b16 %v411
      %v630 = vunpack.c.h.b16 %v411
      %v631 = vunpack.c.l.b16 %v412
      %v632 = vunpack.c.l.b16 %v413
      %v633 = vunpack.c.h.b16 %v413
      %v634 = vunpack.c.l.b16 %v414
      %v635 = vunpack.c.l.b16 %v415
      %v636 = vunpack.c.h.b16 %v415
      %v637 = vunpack.c.l.b16 %v416
      %v638 = vunpack.c.l.b16 %v417
      %v639 = vunpack.c.h.b16 %v417
      %v640 = vunpack.c.l.b16 %v418
      %v641 = vunpack.c.l.b16 %v419
      %v642 = vunpack.c.h.b16 %v419
      %v643 = vunpack.c.l.b16 %v420
      %v644 = vunpack.c.l.b16 %v421
      %v645 = vunpack.c.h.b16 %v421
      %v646 = vunpack.c.l.b16 %v422
      %v647 = vpack.c.b16 %v602, %v599
      %v648 = vpack.c.b16 %v603, %v600
      %v649 = vpack.c.b16 %v604, %v601
      %v650 = vpack.c.b16 %v608, %v605
      %v651 = vpack.c.b16 %v609, %v606
      %v652 = vpack.c.b16 %v610, %v607
      %v653 = vpack.c.b16 %v614, %v611
      %v654 = vpack.c.b16 %v615, %v612
      %v655 = vpack.c.b16 %v616, %v613
      %v656 = vpack.c.b16 %v620, %v617
      %v657 = vpack.c.b16 %v621, %v618
      %v658 = vpack.c.b16 %v622, %v619
      %v659 = vpack.c.b16 %v626, %v623
      %v660 = vpack.c.b16 %v627, %v624
      %v661 = vpack.c.b16 %v628, %v625
      %v662 = vpack.c.b16 %v632, %v629
      %v663 = vpack.c.b16 %v633, %v630
      %v664 = vpack.c.b16 %v634, %v631
      %v665 = vpack.c.b16 %v638, %v635
      %v666 = vpack.c.b16 %v639, %v636
      %v667 = vpack.c.b16 %v640, %v637
      %v668 = vpack.c.b16 %v644, %v641
      %v669 = vpack.c.b16 %v645, %v642
      %v670 = vpack.c.b16 %v646, %v643
      %695 = vmatprep.subr.bf16.mxu0 %v648
      %696 = vmatpush1.bf16.msra.mxu0 %v647
      %697 = vmatprep.subr.bf16.mxu0 %v651
      %698 = vmatpush1.bf16.msra.mxu0 %v650
      %699 = vmatprep.subr.bf16.mxu0 %v654
      %700 = vmatpush1.bf16.msra.mxu0 %v653
      %701 = vmatprep.subr.bf16.mxu0 %v657
      %702 = vmatpush1.bf16.msra.mxu0 %v656
      %703 = vmatprep.subr.bf16.mxu0 %v660
      %704 = vmatpush1.bf16.msra.mxu0 %v659
      %705 = vmatprep.subr.bf16.mxu0 %v663
      %706 = vmatpush1.bf16.msra.mxu0 %v662
      %707 = vmatprep.subr.bf16.mxu0 %v666
      %708 = vmatpush1.bf16.msra.mxu0 %v665
      %709 = vmatprep.subr.bf16.mxu0 %v669
      %710 = vmatpush1.bf16.msra.mxu0 %v668
      %711 = vmatprep.subr.bf16.mxu0 0
      %712 = vmatpush1.bf16.msra.mxu0 0
      %713 = vmatprep.subr.bf16.mxu0 0
      %714 = vmatpush1.bf16.msra.mxu0 0
      %715 = vmatprep.subr.bf16.mxu0 0
      %716 = vmatpush1.bf16.msra.mxu0 0
      %717 = vmatprep.subr.bf16.mxu0 0
      %718 = vmatpush1.bf16.msra.mxu0 0
      %719 = vmatprep.subr.bf16.mxu0 0
      %720 = vmatpush1.bf16.msra.mxu0 0
      %721 = vmatprep.subr.bf16.mxu0 0
      %722 = vmatpush1.bf16.msra.mxu0 0
      %723 = vmatprep.subr.bf16.mxu0 0
      %724 = vmatpush1.bf16.msra.mxu0 0
      %725 = vmatprep.subr.bf16.mxu0 0
      %726 = vmatpush1.bf16.msra.mxu0 0
      %727 = vmatprep.mubr.bf16.mxu0 0
      %728 = vmatmul.mubr.bf16.gmra.mrb[0].mxu0 %v519
      %v729 = vpop.f32.mrb[0].mxu0
      %v730 = vadd.f32 0.0, %v729
      %v731 = vpop.f32.mrb[0].mxu0
      %v732 = vadd.f32 0.0, %v731
      %v733 = vpop.f32.mrb[0].mxu0
      %v734 = vadd.f32 0.0, %v733
      %v735 = vpop.f32.mrb[0].mxu0
      %v736 = vadd.f32 0.0, %v735
      %737 = vmatprep.mubr.bf16.mxu0 0
      %738 = vmatmul.mubr.bf16.gmra.mrb[0].mxu0 %v520
      %v739 = vpop.f32.mrb[0].mxu0
      %v740 = vadd.f32 0.0, %v739
      %v741 = vpop.f32.mrb[0].mxu0
      %v742 = vadd.f32 0.0, %v741
      %v743 = vpop.f32.mrb[0].mxu0
      %v744 = vadd.f32 0.0, %v743
      %v745 = vpop.f32.mrb[0].mxu0
      %v746 = vadd.f32 0.0, %v745
      %747 = vmatprep.mubr.bf16.mxu0 0
      %748 = vmatmul.mubr.bf16.gmra.mrb[0].mxu0 %v521
      %v749 = vpop.f32.mrb[0].mxu0
      %v750 = vadd.f32 0.0, %v749
      %v751 = vpop.f32.mrb[0].mxu0
      %v752 = vadd.f32 0.0, %v751
      %v753 = vpop.f32.mrb[0].mxu0
      %v754 = vadd.f32 0.0, %v753
      %v755 = vpop.f32.mrb[0].mxu0
      %v756 = vadd.f32 0.0, %v755
      %757 = vmatprep.mubr.bf16.mxu0 0
      %758 = vmatmul.mubr.bf16.gmra.mrb[0].mxu0 %v522
      %v759 = vpop.f32.mrb[0].mxu0
      %v760 = vadd.f32 0.0, %v759
      %v761 = vpop.f32.mrb[0].mxu0
      %v762 = vadd.f32 0.0, %v761
      %v763 = vpop.f32.mrb[0].mxu0
      %v764 = vadd.f32 0.0, %v763
      %v765 = vpop.f32.mrb[0].mxu0
      %v766 = vadd.f32 0.0, %v765
      %767 = vmatprep.mubr.bf16.mxu0 0
      %768 = vmatmul.mubr.bf16.gmra.mrb[0].mxu0 %v523
      %v769 = vpop.f32.mrb[0].mxu0
      %v770 = vadd.f32 0.0, %v769
      %v771 = vpop.f32.mrb[0].mxu0
      %v772 = vadd.f32 0.0, %v771
      %v773 = vpop.f32.mrb[0].mxu0
      %v774 = vadd.f32 0.0, %v773
      %v775 = vpop.f32.mrb[0].mxu0
      %v776 = vadd.f32 0.0, %v775
      %777 = vmatprep.mubr.bf16.mxu0 0
      %778 = vmatmul.mubr.bf16.gmra.mrb[0].mxu0 %v524
      %v779 = vpop.f32.mrb[0].mxu0
      %v780 = vadd.f32 0.0, %v779
      %v781 = vpop.f32.mrb[0].mxu0
      %v782 = vadd.f32 0.0, %v781
      %v783 = vpop.f32.mrb[0].mxu0
      %v784 = vadd.f32 0.0, %v783
      %v785 = vpop.f32.mrb[0].mxu0
      %v786 = vadd.f32 0.0, %v785
      %787 = vmatprep.mubr.bf16.mxu0 0
      %788 = vmatmul.mubr.bf16.gmra.mrb[0].mxu0 %v525
      %v789 = vpop.f32.mrb[0].mxu0
      %v790 = vadd.f32 0.0, %v789
      %v791 = vpop.f32.mrb[0].mxu0
      %v792 = vadd.f32 0.0, %v791
      %v793 = vpop.f32.mrb[0].mxu0
      %v794 = vadd.f32 0.0, %v793
      %v795 = vpop.f32.mrb[0].mxu0
      %v796 = vadd.f32 0.0, %v795
      %797 = vmatprep.mubr.bf16.mxu0 0
      %798 = vmatmul.mubr.bf16.gmra.mrb[0].mxu0 %v526
      %v799 = vpop.f32.mrb[0].mxu0
      %v800 = vadd.f32 0.0, %v799
      %v801 = vpop.f32.mrb[0].mxu0
      %v802 = vadd.f32 0.0, %v801
      %v803 = vpop.f32.mrb[0].mxu0
      %v804 = vadd.f32 0.0, %v803
      %v805 = vpop.f32.mrb[0].mxu0
      %v806 = vadd.f32 0.0, %v805
      %807 = vmatprep.mubr.bf16.mxu0 0
      %808 = vmatmul.mubr.bf16.gmra.mrb[0].mxu0 %v527
      %v809 = vpop.f32.mrb[0].mxu0
      %v810 = vadd.f32 0.0, %v809
      %v811 = vpop.f32.mrb[0].mxu0
      %v812 = vadd.f32 0.0, %v811
      %v813 = vpop.f32.mrb[0].mxu0
      %v814 = vadd.f32 0.0, %v813
      %v815 = vpop.f32.mrb[0].mxu0
      %v816 = vadd.f32 0.0, %v815
      %817 = vmatprep.mubr.bf16.mxu0 0
      %818 = vmatmul.mubr.bf16.gmra.mrb[0].mxu0 %v528
      %v819 = vpop.f32.mrb[0].mxu0
      %v820 = vadd.f32 0.0, %v819
      %v821 = vpop.f32.mrb[0].mxu0
      %v822 = vadd.f32 0.0, %v821
      %v823 = vpop.f32.mrb[0].mxu0
      %v824 = vadd.f32 0.0, %v823
      %v825 = vpop.f32.mrb[0].mxu0
      %v826 = vadd.f32 0.0, %v825
      %827 = vmatprep.mubr.bf16.mxu0 0
      %828 = vmatmul.mubr.bf16.gmra.mrb[0].mxu0 %v529
      %v829 = vpop.f32.mrb[0].mxu0
      %v830 = vadd.f32 0.0, %v829
      %v831 = vpop.f32.mrb[0].mxu0
      %v832 = vadd.f32 0.0, %v831
      %v833 = vpop.f32.mrb[0].mxu0
      %v834 = vadd.f32 0.0, %v833
      %v835 = vpop.f32.mrb[0].mxu0
      %v836 = vadd.f32 0.0, %v835
      %837 = vmatprep.mubr.bf16.mxu0 0
      %838 = vmatmul.mubr.bf16.gmra.mrb[0].mxu0 %v530
      %v839 = vpop.f32.mrb[0].mxu0
      %v840 = vadd.f32 0.0, %v839
      %v841 = vpop.f32.mrb[0].mxu0
      %v842 = vadd.f32 0.0, %v841
      %v843 = vpop.f32.mrb[0].mxu0
      %v844 = vadd.f32 0.0, %v843
      %v845 = vpop.f32.mrb[0].mxu0
      %v846 = vadd.f32 0.0, %v845
      %847 = vmatprep.mubr.bf16.mxu0 0
      %848 = vmatmul.mubr.bf16.gmra.mrb[0].mxu0 %v531
      %v849 = vpop.f32.mrb[0].mxu0
      %v850 = vadd.f32 0.0, %v849
      %v851 = vpop.f32.mrb[0].mxu0
      %v852 = vadd.f32 0.0, %v851
      %v853 = vpop.f32.mrb[0].mxu0
      %v854 = vadd.f32 0.0, %v853
      %v855 = vpop.f32.mrb[0].mxu0
      %v856 = vadd.f32 0.0, %v855
      %857 = vmatprep.mubr.bf16.mxu0 0
      %858 = vmatmul.mubr.bf16.gmra.mrb[0].mxu0 %v532
      %v859 = vpop.f32.mrb[0].mxu0
      %v860 = vadd.f32 0.0, %v859
      %v861 = vpop.f32.mrb[0].mxu0
      %v862 = vadd.f32 0.0, %v861
      %v863 = vpop.f32.mrb[0].mxu0
      %v864 = vadd.f32 0.0, %v863
      %v865 = vpop.f32.mrb[0].mxu0
      %v866 = vadd.f32 0.0, %v865
      %867 = vmatprep.mubr.bf16.mxu0 0
      %868 = vmatmul.mubr.bf16.gmra.mrb[0].mxu0 %v533
      %v869 = vpop.f32.mrb[0].mxu0
      %v870 = vadd.f32 0.0, %v869
      %v871 = vpop.f32.mrb[0].mxu0
      %v872 = vadd.f32 0.0, %v871
      %v873 = vpop.f32.mrb[0].mxu0
      %v874 = vadd.f32 0.0, %v873
      %v875 = vpop.f32.mrb[0].mxu0
      %v876 = vadd.f32 0.0, %v875
      %877 = vmatprep.mubr.bf16.mxu0 0
      %878 = vmatmul.mubr.bf16.gmra.mrb[0].mxu0 %v534
      %v879 = vpop.f32.mrb[0].mxu0
      %v880 = vadd.f32 0.0, %v879
      %v881 = vpop.f32.mrb[0].mxu0
      %v882 = vadd.f32 0.0, %v881
      %v883 = vpop.f32.mrb[0].mxu0
      %v884 = vadd.f32 0.0, %v883
      %v885 = vpop.f32.mrb[0].mxu0
      %v886 = vadd.f32 0.0, %v885
      %887 = vmatprep.mubr.bf16.mxu0 0
      %888 = vmatmul.mubr.bf16.gmra.mrb[0].mxu0 %v535
      %v889 = vpop.f32.mrb[0].mxu0
      %v890 = vadd.f32 0.0, %v889
      %v891 = vpop.f32.mrb[0].mxu0
      %v892 = vadd.f32 0.0, %v891
      %v893 = vpop.f32.mrb[0].mxu0
      %v894 = vadd.f32 0.0, %v893
      %v895 = vpop.f32.mrb[0].mxu0
      %v896 = vadd.f32 0.0, %v895
      %897 = vmatprep.mubr.bf16.mxu0 0
      %898 = vmatmul.mubr.bf16.gmra.mrb[0].mxu0 %v536
      %v899 = vpop.f32.mrb[0].mxu0
      %v900 = vadd.f32 0.0, %v899
      %v901 = vpop.f32.mrb[0].mxu0
      %v902 = vadd.f32 0.0, %v901
      %v903 = vpop.f32.mrb[0].mxu0
      %v904 = vadd.f32 0.0, %v903
      %v905 = vpop.f32.mrb[0].mxu0
      %v906 = vadd.f32 0.0, %v905
      %907 = vmatprep.mubr.bf16.mxu0 0
      %908 = vmatmul.mubr.bf16.gmra.mrb[0].mxu0 %v537
      %v909 = vpop.f32.mrb[0].mxu0
      %v910 = vadd.f32 0.0, %v909
      %v911 = vpop.f32.mrb[0].mxu0
      %v912 = vadd.f32 0.0, %v911
      %v913 = vpop.f32.mrb[0].mxu0
      %v914 = vadd.f32 0.0, %v913
      %v915 = vpop.f32.mrb[0].mxu0
      %v916 = vadd.f32 0.0, %v915
      %917 = vmatprep.mubr.bf16.mxu0 0
      %918 = vmatmul.mubr.bf16.gmra.mrb[0].mxu0 %v538
      %v919 = vpop.f32.mrb[0].mxu0
      %v920 = vadd.f32 0.0, %v919
      %v921 = vpop.f32.mrb[0].mxu0
      %v922 = vadd.f32 0.0, %v921
      %v923 = vpop.f32.mrb[0].mxu0
      %v924 = vadd.f32 0.0, %v923
      %v925 = vpop.f32.mrb[0].mxu0
      %v926 = vadd.f32 0.0, %v925
      %927 = vmatprep.mubr.bf16.mxu0 0
      %928 = vmatmul.mubr.bf16.gmra.mrb[0].mxu0 %v539
      %v929 = vpop.f32.mrb[0].mxu0
      %v930 = vadd.f32 0.0, %v929
      %v931 = vpop.f32.mrb[0].mxu0
      %v932 = vadd.f32 0.0, %v931
      %v933 = vpop.f32.mrb[0].mxu0
      %v934 = vadd.f32 0.0, %v933
      %v935 = vpop.f32.mrb[0].mxu0
      %v936 = vadd.f32 0.0, %v935
      %937 = vmatprep.mubr.bf16.mxu0 0
      %938 = vmatmul.mubr.bf16.gmra.mrb[0].mxu0 %v540
      %v939 = vpop.f32.mrb[0].mxu0
      %v940 = vadd.f32 0.0, %v939
      %v941 = vpop.f32.mrb[0].mxu0
      %v942 = vadd.f32 0.0, %v941
      %v943 = vpop.f32.mrb[0].mxu0
      %v944 = vadd.f32 0.0, %v943
      %v945 = vpop.f32.mrb[0].mxu0
      %v946 = vadd.f32 0.0, %v945
      %947 = vmatprep.mubr.bf16.mxu0 0
      %948 = vmatmul.mubr.bf16.gmra.mrb[0].mxu0 %v541
      %v949 = vpop.f32.mrb[0].mxu0
      %v950 = vadd.f32 0.0, %v949
      %v951 = vpop.f32.mrb[0].mxu0
      %v952 = vadd.f32 0.0, %v951
      %v953 = vpop.f32.mrb[0].mxu0
      %v954 = vadd.f32 0.0, %v953
      %v955 = vpop.f32.mrb[0].mxu0
      %v956 = vadd.f32 0.0, %v955
      %957 = vmatprep.mubr.bf16.mxu0 0
      %958 = vmatmul.mubr.bf16.gmra.mrb[0].mxu0 %v542
      %v959 = vpop.f32.mrb[0].mxu0
      %v960 = vadd.f32 0.0, %v959
      %v961 = vpop.f32.mrb[0].mxu0
      %v962 = vadd.f32 0.0, %v961
      %v963 = vpop.f32.mrb[0].mxu0
      %v964 = vadd.f32 0.0, %v963
      %v965 = vpop.f32.mrb[0].mxu0
      %v966 = vadd.f32 0.0, %v965
      %967 = vdwg.mxu0
      %968 = vmatprep.subr.bf16.mxu0 0
      %969 = vmatpush1.bf16.msra.mxu0 %v649
      %970 = vmatprep.subr.bf16.mxu0 0
      %971 = vmatpush1.bf16.msra.mxu0 %v652
      %972 = vmatprep.subr.bf16.mxu0 0
      %973 = vmatpush1.bf16.msra.mxu0 %v655
      %974 = vmatprep.subr.bf16.mxu0 0
      %975 = vmatpush1.bf16.msra.mxu0 %v658
      %976 = vmatprep.subr.bf16.mxu0 0
      %977 = vmatpush1.bf16.msra.mxu0 %v661
      %978 = vmatprep.subr.bf16.mxu0 0
      %979 = vmatpush1.bf16.msra.mxu0 %v664
      %980 = vmatprep.subr.bf16.mxu0 0
      %981 = vmatpush1.bf16.msra.mxu0 %v667
      %982 = vmatprep.subr.bf16.mxu0 0
      %983 = vmatpush1.bf16.msra.mxu0 %v670
      %984 = vmatprep.subr.bf16.mxu0 0
      %985 = vmatpush1.bf16.msra.mxu0 0
      %986 = vmatprep.subr.bf16.mxu0 0
      %987 = vmatpush1.bf16.msra.mxu0 0
      %988 = vmatprep.subr.bf16.mxu0 0
      %989 = vmatpush1.bf16.msra.mxu0 0
      %990 = vmatprep.subr.bf16.mxu0 0
      %991 = vmatpush1.bf16.msra.mxu0 0
      %992 = vmatprep.subr.bf16.mxu0 0
      %993 = vmatpush1.bf16.msra.mxu0 0
      %994 = vmatprep.subr.bf16.mxu0 0
      %995 = vmatpush1.bf16.msra.mxu0 0
      %996 = vmatprep.subr.bf16.mxu0 0
      %997 = vmatpush1.bf16.msra.mxu0 0
      %998 = vmatprep.subr.bf16.mxu0 0
      %999 = vmatpush1.bf16.msra.mxu0 0
      %1000 = vmatprep.mubr.bf16.mxu0 0
      %1001 = vmatmul.mubr.bf16.gmra.mrb[0].mxu0 %v519
      %v1002 = vpop.f32.mrb[0].mxu0
      %v1003 = vadd.f32 0.0, %v1002
      %v1004 = vpop.f32.mrb[0].mxu0
      %v1005 = vpop.f32.mrb[0].mxu0
      %v1006 = vadd.f32 0.0, %v1005
      %v1007 = vpop.f32.mrb[0].mxu0
      %1008 = vmatprep.mubr.bf16.mxu0 0
      %1009 = vmatmul.mubr.bf16.gmra.mrb[0].mxu0 %v520
      %v1010 = vpop.f32.mrb[0].mxu0
      %v1011 = vadd.f32 0.0, %v1010
      %v1012 = vpop.f32.mrb[0].mxu0
      %v1013 = vpop.f32.mrb[0].mxu0
      %v1014 = vadd.f32 0.0, %v1013
      %v1015 = vpop.f32.mrb[0].mxu0
      %1016 = vmatprep.mubr.bf16.mxu0 0
      %1017 = vmatmul.mubr.bf16.gmra.mrb[0].mxu0 %v521
      %v1018 = vpop.f32.mrb[0].mxu0
      %v1019 = vadd.f32 0.0, %v1018
      %v1020 = vpop.f32.mrb[0].mxu0
      %v1021 = vpop.f32.mrb[0].mxu0
      %v1022 = vadd.f32 0.0, %v1021
      %v1023 = vpop.f32.mrb[0].mxu0
      %1024 = vmatprep.mubr.bf16.mxu0 0
      %1025 = vmatmul.mubr.bf16.gmra.mrb[0].mxu0 %v522
      %v1026 = vpop.f32.mrb[0].mxu0
      %v1027 = vadd.f32 0.0, %v1026
      %v1028 = vpop.f32.mrb[0].mxu0
      %v1029 = vpop.f32.mrb[0].mxu0
      %v1030 = vadd.f32 0.0, %v1029
      %v1031 = vpop.f32.mrb[0].mxu0
      %1032 = vmatprep.mubr.bf16.mxu0 0
      %1033 = vmatmul.mubr.bf16.gmra.mrb[0].mxu0 %v523
      %v1034 = vpop.f32.mrb[0].mxu0
      %v1035 = vadd.f32 0.0, %v1034
      %v1036 = vpop.f32.mrb[0].mxu0
      %v1037 = vpop.f32.mrb[0].mxu0
      %v1038 = vadd.f32 0.0, %v1037
      %v1039 = vpop.f32.mrb[0].mxu0
      %1040 = vmatprep.mubr.bf16.mxu0 0
      %1041 = vmatmul.mubr.bf16.gmra.mrb[0].mxu0 %v524
      %v1042 = vpop.f32.mrb[0].mxu0
      %v1043 = vadd.f32 0.0, %v1042
      %v1044 = vpop.f32.mrb[0].mxu0
      %v1045 = vpop.f32.mrb[0].mxu0
      %v1046 = vadd.f32 0.0, %v1045
      %v1047 = vpop.f32.mrb[0].mxu0
      %1048 = vmatprep.mubr.bf16.mxu0 0
      %1049 = vmatmul.mubr.bf16.gmra.mrb[0].mxu0 %v525
      %v1050 = vpop.f32.mrb[0].mxu0
      %v1051 = vadd.f32 0.0, %v1050
      %v1052 = vpop.f32.mrb[0].mxu0
      %v1053 = vpop.f32.mrb[0].mxu0
      %v1054 = vadd.f32 0.0, %v1053
      %v1055 = vpop.f32.mrb[0].mxu0
      %1056 = vmatprep.mubr.bf16.mxu0 0
      %1057 = vmatmul.mubr.bf16.gmra.mrb[0].mxu0 %v526
      %v1058 = vpop.f32.mrb[0].mxu0
      %v1059 = vadd.f32 0.0, %v1058
      %v1060 = vpop.f32.mrb[0].mxu0
      %v1061 = vpop.f32.mrb[0].mxu0
      %v1062 = vadd.f32 0.0, %v1061
      %v1063 = vpop.f32.mrb[0].mxu0
      %1064 = vmatprep.mubr.bf16.mxu0 0
      %1065 = vmatmul.mubr.bf16.gmra.mrb[0].mxu0 %v527
      %v1066 = vpop.f32.mrb[0].mxu0
      %v1067 = vadd.f32 0.0, %v1066
      %v1068 = vpop.f32.mrb[0].mxu0
      %v1069 = vpop.f32.mrb[0].mxu0
      %v1070 = vadd.f32 0.0, %v1069
      %v1071 = vpop.f32.mrb[0].mxu0
      %1072 = vmatprep.mubr.bf16.mxu0 0
      %1073 = vmatmul.mubr.bf16.gmra.mrb[0].mxu0 %v528
      %v1074 = vpop.f32.mrb[0].mxu0
      %v1075 = vadd.f32 0.0, %v1074
      %v1076 = vpop.f32.mrb[0].mxu0
      %v1077 = vpop.f32.mrb[0].mxu0
      %v1078 = vadd.f32 0.0, %v1077
      %v1079 = vpop.f32.mrb[0].mxu0
      %1080 = vmatprep.mubr.bf16.mxu0 0
      %1081 = vmatmul.mubr.bf16.gmra.mrb[0].mxu0 %v529
      %v1082 = vpop.f32.mrb[0].mxu0
      %v1083 = vadd.f32 0.0, %v1082
      %v1084 = vpop.f32.mrb[0].mxu0
      %v1085 = vpop.f32.mrb[0].mxu0
      %v1086 = vadd.f32 0.0, %v1085
      %v1087 = vpop.f32.mrb[0].mxu0
      %1088 = vmatprep.mubr.bf16.mxu0 0
      %1089 = vmatmul.mubr.bf16.gmra.mrb[0].mxu0 %v530
      %v1090 = vpop.f32.mrb[0].mxu0
      %v1091 = vadd.f32 0.0, %v1090
      %v1092 = vpop.f32.mrb[0].mxu0
      %v1093 = vpop.f32.mrb[0].mxu0
      %v1094 = vadd.f32 0.0, %v1093
      %v1095 = vpop.f32.mrb[0].mxu0
      %1096 = vmatprep.mubr.bf16.mxu0 0
      %1097 = vmatmul.mubr.bf16.gmra.mrb[0].mxu0 %v531
      %v1098 = vpop.f32.mrb[0].mxu0
      %v1099 = vadd.f32 0.0, %v1098
      %v1100 = vpop.f32.mrb[0].mxu0
      %v1101 = vpop.f32.mrb[0].mxu0
      %v1102 = vadd.f32 0.0, %v1101
      %v1103 = vpop.f32.mrb[0].mxu0
      %1104 = vmatprep.mubr.bf16.mxu0 0
      %1105 = vmatmul.mubr.bf16.gmra.mrb[0].mxu0 %v532
      %v1106 = vpop.f32.mrb[0].mxu0
      %v1107 = vadd.f32 0.0, %v1106
      %v1108 = vpop.f32.mrb[0].mxu0
      %v1109 = vpop.f32.mrb[0].mxu0
      %v1110 = vadd.f32 0.0, %v1109
      %v1111 = vpop.f32.mrb[0].mxu0
      %1112 = vmatprep.mubr.bf16.mxu0 0
      %1113 = vmatmul.mubr.bf16.gmra.mrb[0].mxu0 %v533
      %v1114 = vpop.f32.mrb[0].mxu0
      %v1115 = vadd.f32 0.0, %v1114
      %v1116 = vpop.f32.mrb[0].mxu0
      %v1117 = vpop.f32.mrb[0].mxu0
      %v1118 = vadd.f32 0.0, %v1117
      %v1119 = vpop.f32.mrb[0].mxu0
      %1120 = vmatprep.mubr.bf16.mxu0 0
      %1121 = vmatmul.mubr.bf16.gmra.mrb[0].mxu0 %v534
      %v1122 = vpop.f32.mrb[0].mxu0
      %v1123 = vadd.f32 0.0, %v1122
      %v1124 = vpop.f32.mrb[0].mxu0
      %v1125 = vpop.f32.mrb[0].mxu0
      %v1126 = vadd.f32 0.0, %v1125
      %v1127 = vpop.f32.mrb[0].mxu0
      %1128 = vmatprep.mubr.bf16.mxu0 0
      %1129 = vmatmul.mubr.bf16.gmra.mrb[0].mxu0 %v535
      %v1130 = vpop.f32.mrb[0].mxu0
      %v1131 = vadd.f32 0.0, %v1130
      %v1132 = vpop.f32.mrb[0].mxu0
      %v1133 = vpop.f32.mrb[0].mxu0
      %v1134 = vadd.f32 0.0, %v1133
      %v1135 = vpop.f32.mrb[0].mxu0
      %1136 = vmatprep.mubr.bf16.mxu0 0
      %1137 = vmatmul.mubr.bf16.gmra.mrb[0].mxu0 %v536
      %v1138 = vpop.f32.mrb[0].mxu0
      %v1139 = vadd.f32 0.0, %v1138
      %v1140 = vpop.f32.mrb[0].mxu0
      %v1141 = vpop.f32.mrb[0].mxu0
      %v1142 = vadd.f32 0.0, %v1141
      %v1143 = vpop.f32.mrb[0].mxu0
      %1144 = vmatprep.mubr.bf16.mxu0 0
      %1145 = vmatmul.mubr.bf16.gmra.mrb[0].mxu0 %v537
      %v1146 = vpop.f32.mrb[0].mxu0
      %v1147 = vadd.f32 0.0, %v1146
      %v1148 = vpop.f32.mrb[0].mxu0
      %v1149 = vpop.f32.mrb[0].mxu0
      %v1150 = vadd.f32 0.0, %v1149
      %v1151 = vpop.f32.mrb[0].mxu0
      %1152 = vmatprep.mubr.bf16.mxu0 0
      %1153 = vmatmul.mubr.bf16.gmra.mrb[0].mxu0 %v538
      %v1154 = vpop.f32.mrb[0].mxu0
      %v1155 = vadd.f32 0.0, %v1154
      %v1156 = vpop.f32.mrb[0].mxu0
      %v1157 = vpop.f32.mrb[0].mxu0
      %v1158 = vadd.f32 0.0, %v1157
      %v1159 = vpop.f32.mrb[0].mxu0
      %1160 = vmatprep.mubr.bf16.mxu0 0
      %1161 = vmatmul.mubr.bf16.gmra.mrb[0].mxu0 %v539
      %v1162 = vpop.f32.mrb[0].mxu0
      %v1163 = vadd.f32 0.0, %v1162
      %v1164 = vpop.f32.mrb[0].mxu0
      %v1165 = vpop.f32.mrb[0].mxu0
      %v1166 = vadd.f32 0.0, %v1165
      %v1167 = vpop.f32.mrb[0].mxu0
      %1168 = vmatprep.mubr.bf16.mxu0 0
      %1169 = vmatmul.mubr.bf16.gmra.mrb[0].mxu0 %v540
      %v1170 = vpop.f32.mrb[0].mxu0
      %v1171 = vadd.f32 0.0, %v1170
      %v1172 = vpop.f32.mrb[0].mxu0
      %v1173 = vpop.f32.mrb[0].mxu0
      %v1174 = vadd.f32 0.0, %v1173
      %v1175 = vpop.f32.mrb[0].mxu0
      %1176 = vmatprep.mubr.bf16.mxu0 0
      %1177 = vmatmul.mubr.bf16.gmra.mrb[0].mxu0 %v541
      %v1178 = vpop.f32.mrb[0].mxu0
      %v1179 = vadd.f32 0.0, %v1178
      %v1180 = vpop.f32.mrb[0].mxu0
      %v1181 = vpop.f32.mrb[0].mxu0
      %v1182 = vadd.f32 0.0, %v1181
      %v1183 = vpop.f32.mrb[0].mxu0
      %1184 = vmatprep.mubr.bf16.mxu0 0
      %1185 = vmatmul.mubr.bf16.gmra.mrb[0].mxu0 %v542
      %v1186 = vpop.f32.mrb[0].mxu0
      %v1187 = vadd.f32 0.0, %v1186
      %v1188 = vpop.f32.mrb[0].mxu0
      %v1189 = vpop.f32.mrb[0].mxu0
      %v1190 = vadd.f32 0.0, %v1189
      %v1191 = vpop.f32.mrb[0].mxu0
      %1192 = vdwg.mxu0
      %1193 = vst [vmem:[#allocation2] sm:$0xff] %v730
      %1194 = vst [vmem:[#allocation2 + $0x8] sm:$0xff] %v732
      %1195 = vst [vmem:[#allocation2 + $0x10] sm:$0xff] %v1003
      %1196 = vst [vmem:[#allocation2 + $0x18] sm:$0xff] %v734
      %1197 = vst [vmem:[#allocation2 + $0x20] sm:$0xff] %v736
      %1198 = vst [vmem:[#allocation2 + $0x28] sm:$0xff] %v1006
      %1199 = vst [vmem:[#allocation2 + $0x30] sm:$0xff] %v740
      %1200 = vst [vmem:[#allocation2 + $0x38] sm:$0xff] %v742
      %1201 = vst [vmem:[#allocation2 + $0x40] sm:$0xff] %v1011
      %1202 = vst [vmem:[#allocation2 + $0x48] sm:$0xff] %v744
      %1203 = vst [vmem:[#allocation2 + $0x50] sm:$0xff] %v746
      %1204 = vst [vmem:[#allocation2 + $0x58] sm:$0xff] %v1014
      %1205 = vst [vmem:[#allocation2 + $0x60] sm:$0xff] %v750
      %1206 = vst [vmem:[#allocation2 + $0x68] sm:$0xff] %v752
      %1207 = vst [vmem:[#allocation2 + $0x70] sm:$0xff] %v1019
      %1208 = vst [vmem:[#allocation2 + $0x78] sm:$0xff] %v754
      %1209 = vst [vmem:[#allocation2 + $0x80] sm:$0xff] %v756
      %1210 = vst [vmem:[#allocation2 + $0x88] sm:$0xff] %v1022
      %1211 = vst [vmem:[#allocation2 + $0x90] sm:$0xff] %v760
      %1212 = vst [vmem:[#allocation2 + $0x98] sm:$0xff] %v762
      %1213 = vst [vmem:[#allocation2 + $0xa0] sm:$0xff] %v1027
      %1214 = vst [vmem:[#allocation2 + $0xa8] sm:$0xff] %v764
      %1215 = vst [vmem:[#allocation2 + $0xb0] sm:$0xff] %v766
      %1216 = vst [vmem:[#allocation2 + $0xb8] sm:$0xff] %v1030
      %1217 = vst [vmem:[#allocation2 + $0xc0] sm:$0xff] %v770
      %1218 = vst [vmem:[#allocation2 + $0xc8] sm:$0xff] %v772
      %1219 = vst [vmem:[#allocation2 + $0xd0] sm:$0xff] %v1035
      %1220 = vst [vmem:[#allocation2 + $0xd8] sm:$0xff] %v774
      %1221 = vst [vmem:[#allocation2 + $0xe0] sm:$0xff] %v776
      %1222 = vst [vmem:[#allocation2 + $0xe8] sm:$0xff] %v1038
      %1223 = vst [vmem:[#allocation2 + $0xf0] sm:$0xff] %v780
      %1224 = vst [vmem:[#allocation2 + $0xf8] sm:$0xff] %v782
      %1225 = vst [vmem:[#allocation2 + $0x100] sm:$0xff] %v1043
      %1226 = vst [vmem:[#allocation2 + $0x108] sm:$0xff] %v784
      %1227 = vst [vmem:[#allocation2 + $0x110] sm:$0xff] %v786
      %1228 = vst [vmem:[#allocation2 + $0x118] sm:$0xff] %v1046
      %1229 = vst [vmem:[#allocation2 + $0x120] sm:$0xff] %v790
      %1230 = vst [vmem:[#allocation2 + $0x128] sm:$0xff] %v792
      %1231 = vst [vmem:[#allocation2 + $0x130] sm:$0xff] %v1051
      %1232 = vst [vmem:[#allocation2 + $0x138] sm:$0xff] %v794
      %1233 = vst [vmem:[#allocation2 + $0x140] sm:$0xff] %v796
      %1234 = vst [vmem:[#allocation2 + $0x148] sm:$0xff] %v1054
      %1235 = vst [vmem:[#allocation2 + $0x150] sm:$0xff] %v800
      %1236 = vst [vmem:[#allocation2 + $0x158] sm:$0xff] %v802
      %1237 = vst [vmem:[#allocation2 + $0x160] sm:$0xff] %v1059
      %1238 = vst [vmem:[#allocation2 + $0x168] sm:$0xff] %v804
      %1239 = vst [vmem:[#allocation2 + $0x170] sm:$0xff] %v806
      %1240 = vst [vmem:[#allocation2 + $0x178] sm:$0xff] %v1062
      %1241 = vst [vmem:[#allocation2 + $0x180] sm:$0xff] %v810
      %1242 = vst [vmem:[#allocation2 + $0x188] sm:$0xff] %v812
      %1243 = vst [vmem:[#allocation2 + $0x190] sm:$0xff] %v1067
      %1244 = vst [vmem:[#allocation2 + $0x198] sm:$0xff] %v814
      %1245 = vst [vmem:[#allocation2 + $0x1a0] sm:$0xff] %v816
      %1246 = vst [vmem:[#allocation2 + $0x1a8] sm:$0xff] %v1070
      %1247 = vst [vmem:[#allocation2 + $0x1b0] sm:$0xff] %v820
      %1248 = vst [vmem:[#allocation2 + $0x1b8] sm:$0xff] %v822
      %1249 = vst [vmem:[#allocation2 + $0x1c0] sm:$0xff] %v1075
      %1250 = vst [vmem:[#allocation2 + $0x1c8] sm:$0xff] %v824
      %1251 = vst [vmem:[#allocation2 + $0x1d0] sm:$0xff] %v826
      %1252 = vst [vmem:[#allocation2 + $0x1d8] sm:$0xff] %v1078
      %1253 = vst [vmem:[#allocation2 + $0x1e0] sm:$0xff] %v830
      %1254 = vst [vmem:[#allocation2 + $0x1e8] sm:$0xff] %v832
      %1255 = vst [vmem:[#allocation2 + $0x1f0] sm:$0xff] %v1083
      %1256 = vst [vmem:[#allocation2 + $0x1f8] sm:$0xff] %v834
      %1257 = vst [vmem:[#allocation2 + $0x200] sm:$0xff] %v836
      %1258 = vst [vmem:[#allocation2 + $0x208] sm:$0xff] %v1086
      %1259 = vst [vmem:[#allocation2 + $0x210] sm:$0xff] %v840
      %1260 = vst [vmem:[#allocation2 + $0x218] sm:$0xff] %v842
      %1261 = vst [vmem:[#allocation2 + $0x220] sm:$0xff] %v1091
      %1262 = vst [vmem:[#allocation2 + $0x228] sm:$0xff] %v844
      %1263 = vst [vmem:[#allocation2 + $0x230] sm:$0xff] %v846
      %1264 = vst [vmem:[#allocation2 + $0x238] sm:$0xff] %v1094
      %1265 = vst [vmem:[#allocation2 + $0x240] sm:$0xff] %v850
      %1266 = vst [vmem:[#allocation2 + $0x248] sm:$0xff] %v852
      %1267 = vst [vmem:[#allocation2 + $0x250] sm:$0xff] %v1099
      %1268 = vst [vmem:[#allocation2 + $0x258] sm:$0xff] %v854
      %1269 = vst [vmem:[#allocation2 + $0x260] sm:$0xff] %v856
      %1270 = vst [vmem:[#allocation2 + $0x268] sm:$0xff] %v1102
      %1271 = vst [vmem:[#allocation2 + $0x270] sm:$0xff] %v860
      %1272 = vst [vmem:[#allocation2 + $0x278] sm:$0xff] %v862
      %1273 = vst [vmem:[#allocation2 + $0x280] sm:$0xff] %v1107
      %1274 = vst [vmem:[#allocation2 + $0x288] sm:$0xff] %v864
      %1275 = vst [vmem:[#allocation2 + $0x290] sm:$0xff] %v866
      %1276 = vst [vmem:[#allocation2 + $0x298] sm:$0xff] %v1110
      %1277 = vst [vmem:[#allocation2 + $0x2a0] sm:$0xff] %v870
      %1278 = vst [vmem:[#allocation2 + $0x2a8] sm:$0xff] %v872
      %1279 = vst [vmem:[#allocation2 + $0x2b0] sm:$0xff] %v1115
      %1280 = vst [vmem:[#allocation2 + $0x2b8] sm:$0xff] %v874
      %1281 = vst [vmem:[#allocation2 + $0x2c0] sm:$0xff] %v876
      %1282 = vst [vmem:[#allocation2 + $0x2c8] sm:$0xff] %v1118
      %1283 = vst [vmem:[#allocation2 + $0x2d0] sm:$0xff] %v880
      %1284 = vst [vmem:[#allocation2 + $0x2d8] sm:$0xff] %v882
      %1285 = vst [vmem:[#allocation2 + $0x2e0] sm:$0xff] %v1123
      %1286 = vst [vmem:[#allocation2 + $0x2e8] sm:$0xff] %v884
      %1287 = vst [vmem:[#allocation2 + $0x2f0] sm:$0xff] %v886
      %1288 = vst [vmem:[#allocation2 + $0x2f8] sm:$0xff] %v1126
      %1289 = vst [vmem:[#allocation2 + $0x300] sm:$0xff] %v890
      %1290 = vst [vmem:[#allocation2 + $0x308] sm:$0xff] %v892
      %1291 = vst [vmem:[#allocation2 + $0x310] sm:$0xff] %v1131
      %1292 = vst [vmem:[#allocation2 + $0x318] sm:$0xff] %v894
      %1293 = vst [vmem:[#allocation2 + $0x320] sm:$0xff] %v896
      %1294 = vst [vmem:[#allocation2 + $0x328] sm:$0xff] %v1134
      %1295 = vst [vmem:[#allocation2 + $0x330] sm:$0xff] %v900
      %1296 = vst [vmem:[#allocation2 + $0x338] sm:$0xff] %v902
      %1297 = vst [vmem:[#allocation2 + $0x340] sm:$0xff] %v1139
      %1298 = vst [vmem:[#allocation2 + $0x348] sm:$0xff] %v904
      %1299 = vst [vmem:[#allocation2 + $0x350] sm:$0xff] %v906
      %1300 = vst [vmem:[#allocation2 + $0x358] sm:$0xff] %v1142
      %1301 = vst [vmem:[#allocation2 + $0x360] sm:$0xff] %v910
      %1302 = vst [vmem:[#allocation2 + $0x368] sm:$0xff] %v912
      %1303 = vst [vmem:[#allocation2 + $0x370] sm:$0xff] %v1147
      %1304 = vst [vmem:[#allocation2 + $0x378] sm:$0xff] %v914
      %1305 = vst [vmem:[#allocation2 + $0x380] sm:$0xff] %v916
      %1306 = vst [vmem:[#allocation2 + $0x388] sm:$0xff] %v1150
      %1307 = vst [vmem:[#allocation2 + $0x390] sm:$0xff] %v920
      %1308 = vst [vmem:[#allocation2 + $0x398] sm:$0xff] %v922
      %1309 = vst [vmem:[#allocation2 + $0x3a0] sm:$0xff] %v1155
      %1310 = vst [vmem:[#allocation2 + $0x3a8] sm:$0xff] %v924
      %1311 = vst [vmem:[#allocation2 + $0x3b0] sm:$0xff] %v926
      %1312 = vst [vmem:[#allocation2 + $0x3b8] sm:$0xff] %v1158
      %1313 = vst [vmem:[#allocation2 + $0x3c0] sm:$0xff] %v930
      %1314 = vst [vmem:[#allocation2 + $0x3c8] sm:$0xff] %v932
      %1315 = vst [vmem:[#allocation2 + $0x3d0] sm:$0xff] %v1163
      %1316 = vst [vmem:[#allocation2 + $0x3d8] sm:$0xff] %v934
      %1317 = vst [vmem:[#allocation2 + $0x3e0] sm:$0xff] %v936
      %1318 = vst [vmem:[#allocation2 + $0x3e8] sm:$0xff] %v1166
      %1319 = vst [vmem:[#allocation2 + $0x3f0] sm:$0xff] %v940
      %1320 = vst [vmem:[#allocation2 + $0x3f8] sm:$0xff] %v942
      %1321 = vst [vmem:[#allocation2 + $0x400] sm:$0xff] %v1171
      %1322 = vst [vmem:[#allocation2 + $0x408] sm:$0xff] %v944
      %1323 = vst [vmem:[#allocation2 + $0x410] sm:$0xff] %v946
      %1324 = vst [vmem:[#allocation2 + $0x418] sm:$0xff] %v1174
      %1325 = vst [vmem:[#allocation2 + $0x420] sm:$0xff] %v950
      %1326 = vst [vmem:[#allocation2 + $0x428] sm:$0xff] %v952
      %1327 = vst [vmem:[#allocation2 + $0x430] sm:$0xff] %v1179
      %1328 = vst [vmem:[#allocation2 + $0x438] sm:$0xff] %v954
      %1329 = vst [vmem:[#allocation2 + $0x440] sm:$0xff] %v956
      %1330 = vst [vmem:[#allocation2 + $0x448] sm:$0xff] %v1182
      %1331 = vst [vmem:[#allocation2 + $0x450] sm:$0xff] %v960
      %1332 = vst [vmem:[#allocation2 + $0x458] sm:$0xff] %v962
      %1333 = vst [vmem:[#allocation2 + $0x460] sm:$0xff] %v1187
      %1334 = vst [vmem:[#allocation2 + $0x468] sm:$0xff] %v964
      %1335 = vst [vmem:[#allocation2 + $0x470] sm:$0xff] %v966
      %1336 = vst [vmem:[#allocation2 + $0x478] sm:$0xff] %v1190
      %v1337 = vld [vmem:[#allocation2] sm:$0xff]
      %v1338 = vld [vmem:[#allocation2 + $0x8] sm:$0xff]
      %v1339 = vld [vmem:[#allocation2 + $0x10] sm:$0xff]
      %v1340 = vld [vmem:[#allocation2 + $0x18] sm:$0xff]
      %v1341 = vld [vmem:[#allocation2 + $0x20] sm:$0xff]
      %v1342 = vld [vmem:[#allocation2 + $0x28] sm:$0xff]
      %v1343 = vld [vmem:[#allocation2 + $0x30] sm:$0xff]
      %v1344 = vld [vmem:[#allocation2 + $0x38] sm:$0xff]
      %v1345 = vld [vmem:[#allocation2 + $0x40] sm:$0xff]
      %v1346 = vld [vmem:[#allocation2 + $0x48] sm:$0xff]
      %v1347 = vld [vmem:[#allocation2 + $0x50] sm:$0xff]
      %v1348 = vld [vmem:[#allocation2 + $0x58] sm:$0xff]
      %v1349 = vld [vmem:[#allocation2 + $0x60] sm:$0xff]
      %v1350 = vld [vmem:[#allocation2 + $0x68] sm:$0xff]
      %v1351 = vld [vmem:[#allocation2 + $0x70] sm:$0xff]
      %v1352 = vld [vmem:[#allocation2 + $0x78] sm:$0xff]
      %v1353 = vld [vmem:[#allocation2 + $0x80] sm:$0xff]
      %v1354 = vld [vmem:[#allocation2 + $0x88] sm:$0xff]
      %v1355 = vld [vmem:[#allocation2 + $0x90] sm:$0xff]
      %v1356 = vld [vmem:[#allocation2 + $0x98] sm:$0xff]
      %v1357 = vld [vmem:[#allocation2 + $0xa0] sm:$0xff]
      %v1358 = vld [vmem:[#allocation2 + $0xa8] sm:$0xff]
      %v1359 = vld [vmem:[#allocation2 + $0xb0] sm:$0xff]
      %v1360 = vld [vmem:[#allocation2 + $0xb8] sm:$0xff]
      %v1361 = vmax.f32 %v1337, %v1349
      %v1362 = vmax.f32 %v1338, %v1350
      %v1363 = vmax.f32 %v1339, %v1351
      %v1364 = vmax.f32 %v1340, %v1352
      %v1365 = vmax.f32 %v1341, %v1353
      %v1366 = vmax.f32 %v1342, %v1354
      %v1367 = vmax.f32 %v1343, %v1355
      %v1368 = vmax.f32 %v1344, %v1356
      %v1369 = vmax.f32 %v1345, %v1357
      %v1370 = vmax.f32 %v1346, %v1358
      %v1371 = vmax.f32 %v1347, %v1359
      %v1372 = vmax.f32 %v1348, %v1360
      %1381 = vrot.lane.b32.xlu0 %v1362, 64
      %v1382 = vpop.permute.xlu0 %1381
      %1383 = vrot.lane.b32.xlu0 %v1363, 64
      %v1384 = vpop.permute.xlu0 %1383
      %1385 = vrot.lane.b32.xlu0 %v1365, 64
      %v1386 = vpop.permute.xlu0 %1385
      %1387 = vrot.lane.b32.xlu0 %v1366, 64
      %v1388 = vpop.permute.xlu0 %1387
      %1389 = vrot.lane.b32.xlu0 %v1368, 64
      %v1390 = vpop.permute.xlu0 %1389
      %1391 = vrot.lane.b32.xlu0 %v1369, 64
      %v1392 = vpop.permute.xlu0 %1391
      %1393 = vrot.lane.b32.xlu0 %v1371, 64
      %v1394 = vpop.permute.xlu0 %1393
      %1395 = vrot.lane.b32.xlu0 %v1372, 64
      %v1396 = vpop.permute.xlu0 %1395
      %v1397 = vsel %vm335, %v1382, %v1384
      %v1398 = vsel %vm335, %v1386, %v1388
      %v1399 = vsel %vm335, %v1390, %v1392
      %v1400 = vsel %vm335, %v1394, %v1396
      %v1409 = vmax.f32 %v1361, %v1397
      %v1410 = vmax.f32 %v1362, %v1384
      %v1411 = vmax.f32 %v1364, %v1398
      %v1412 = vmax.f32 %v1365, %v1388
      %v1413 = vmax.f32 %v1367, %v1399
      %v1414 = vmax.f32 %v1368, %v1392
      %v1415 = vmax.f32 %v1370, %v1400
      %v1416 = vmax.f32 %v1371, %v1396
      %v1417 = vld [vmem:[%s2] sm:$0x3]
      %v1419 = vlaneseq
      %v1420 = vshrl.u32 %v1419, 7
      %v1421 = vsub.s32 0, %v1420
      %v1422 = vrot.slane %v1417, %v1421
      %v1423 = vlaneseq
      %v1424 = vshrl.u32 %v1423, 7
      %v1425 = vsub.s32 1, %v1424
      %v1426 = vrot.slane %v1417, %v1425
      %v1429 = vadd.f32 %v1409, %v1422
      %v1430 = vadd.f32 %v1410, %v1426
      %v1431 = vadd.f32 %v1411, %v1422
      %v1432 = vadd.f32 %v1412, %v1426
      %v1433 = vadd.f32 %v1413, %v1422
      %v1434 = vadd.f32 %v1414, %v1426
      %v1435 = vadd.f32 %v1415, %v1422
      %v1436 = vadd.f32 %v1416, %v1426
      %v1437 = vmax.f32 %v1429, 0.0
      %v1438 = vmax.f32 %v1430, 0.0
      %v1439 = vmax.f32 %v1431, 0.0
      %v1440 = vmax.f32 %v1432, 0.0
      %v1441 = vmax.f32 %v1433, 0.0
      %v1442 = vmax.f32 %v1434, 0.0
      %v1443 = vmax.f32 %v1435, 0.0
      %v1444 = vmax.f32 %v1436, 0.0
      %v1445 = vpack.c.bf16 %v1439, %v1437
      %v1446 = vpack.c.bf16 %v1440, %v1438
      %v1447 = vpack.c.bf16 %v1443, %v1441
      %v1448 = vpack.c.bf16 %v1444, %v1442
      %1449 = vst [vmem:[#allocation3 + $0x20] sm:$0xff] %v1445
      %1450 = vst.msk [vmem:[#allocation3 + $0x28] sm:$0xff] %vm335, %v1446
      %1451 = vst [vmem:[#allocation3 + $0x30] sm:$0xff] %v1447
      %1452 = vst.msk [vmem:[#allocation3 + $0x38] sm:$0xff] %vm335, %v1448
      %v1453 = vld [vmem:[#allocation2 + $0xc0] sm:$0xff]
      %v1454 = vld [vmem:[#allocation2 + $0xc8] sm:$0xff]
      %v1455 = vld [vmem:[#allocation2 + $0xd0] sm:$0xff]
      %v1456 = vld [vmem:[#allocation2 + $0xd8] sm:$0xff]
      %v1457 = vld [vmem:[#allocation2 + $0xe0] sm:$0xff]
      %v1458 = vld [vmem:[#allocation2 + $0xe8] sm:$0xff]
      %v1459 = vld [vmem:[#allocation2 + $0xf0] sm:$0xff]
      %v1460 = vld [vmem:[#allocation2 + $0xf8] sm:$0xff]
      %v1461 = vld [vmem:[#allocation2 + $0x100] sm:$0xff]
      %v1462 = vld [vmem:[#allocation2 + $0x108] sm:$0xff]
      %v1463 = vld [vmem:[#allocation2 + $0x110] sm:$0xff]
      %v1464 = vld [vmem:[#allocation2 + $0x118] sm:$0xff]
      %v1465 = vld [vmem:[#allocation2 + $0x120] sm:$0xff]
      %v1466 = vld [vmem:[#allocation2 + $0x128] sm:$0xff]
      %v1467 = vld [vmem:[#allocation2 + $0x130] sm:$0xff]
      %v1468 = vld [vmem:[#allocation2 + $0x138] sm:$0xff]
      %v1469 = vld [vmem:[#allocation2 + $0x140] sm:$0xff]
      %v1470 = vld [vmem:[#allocation2 + $0x148] sm:$0xff]
      %v1471 = vld [vmem:[#allocation2 + $0x150] sm:$0xff]
      %v1472 = vld [vmem:[#allocation2 + $0x158] sm:$0xff]
      %v1473 = vld [vmem:[#allocation2 + $0x160] sm:$0xff]
      %v1474 = vld [vmem:[#allocation2 + $0x168] sm:$0xff]
      %v1475 = vld [vmem:[#allocation2 + $0x170] sm:$0xff]
      %v1476 = vld [vmem:[#allocation2 + $0x178] sm:$0xff]
      %v1477 = vmax.f32 %v1453, %v1465
      %v1478 = vmax.f32 %v1454, %v1466
      %v1479 = vmax.f32 %v1455, %v1467
      %v1480 = vmax.f32 %v1456, %v1468
      %v1481 = vmax.f32 %v1457, %v1469
      %v1482 = vmax.f32 %v1458, %v1470
      %v1483 = vmax.f32 %v1459, %v1471
      %v1484 = vmax.f32 %v1460, %v1472
      %v1485 = vmax.f32 %v1461, %v1473
      %v1486 = vmax.f32 %v1462, %v1474
      %v1487 = vmax.f32 %v1463, %v1475
      %v1488 = vmax.f32 %v1464, %v1476
      %1497 = vrot.lane.b32.xlu0 %v1478, 64
      %v1498 = vpop.permute.xlu0 %1497
      %1499 = vrot.lane.b32.xlu0 %v1479, 64
      %v1500 = vpop.permute.xlu0 %1499
      %1501 = vrot.lane.b32.xlu0 %v1481, 64
      %v1502 = vpop.permute.xlu0 %1501
      %1503 = vrot.lane.b32.xlu0 %v1482, 64
      %v1504 = vpop.permute.xlu0 %1503
      %1505 = vrot.lane.b32.xlu0 %v1484, 64
      %v1506 = vpop.permute.xlu0 %1505
      %1507 = vrot.lane.b32.xlu0 %v1485, 64
      %v1508 = vpop.permute.xlu0 %1507
      %1509 = vrot.lane.b32.xlu0 %v1487, 64
      %v1510 = vpop.permute.xlu0 %1509
      %1511 = vrot.lane.b32.xlu0 %v1488, 64
      %v1512 = vpop.permute.xlu0 %1511
      %v1513 = vsel %vm335, %v1498, %v1500
      %v1514 = vsel %vm335, %v1502, %v1504
      %v1515 = vsel %vm335, %v1506, %v1508
      %v1516 = vsel %vm335, %v1510, %v1512
      %v1525 = vmax.f32 %v1477, %v1513
      %v1526 = vmax.f32 %v1478, %v1500
      %v1527 = vmax.f32 %v1480, %v1514
      %v1528 = vmax.f32 %v1481, %v1504
      %v1529 = vmax.f32 %v1483, %v1515
      %v1530 = vmax.f32 %v1484, %v1508
      %v1531 = vmax.f32 %v1486, %v1516
      %v1532 = vmax.f32 %v1487, %v1512
      %v1533 = vld [vmem:[%s2] sm:$0x3]
      %v1535 = vlaneseq
      %v1536 = vshrl.u32 %v1535, 7
      %v1537 = vsub.s32 0, %v1536
      %v1538 = vrot.slane %v1533, %v1537
      %v1539 = vlaneseq
      %v1540 = vshrl.u32 %v1539, 7
      %v1541 = vsub.s32 1, %v1540
      %v1542 = vrot.slane %v1533, %v1541
      %v1545 = vadd.f32 %v1525, %v1538
      %v1546 = vadd.f32 %v1526, %v1542
      %v1547 = vadd.f32 %v1527, %v1538
      %v1548 = vadd.f32 %v1528, %v1542
      %v1549 = vadd.f32 %v1529, %v1538
      %v1550 = vadd.f32 %v1530, %v1542
      %v1551 = vadd.f32 %v1531, %v1538
      %v1552 = vadd.f32 %v1532, %v1542
      %v1553 = vmax.f32 %v1545, 0.0
      %v1554 = vmax.f32 %v1546, 0.0
      %v1555 = vmax.f32 %v1547, 0.0
      %v1556 = vmax.f32 %v1548, 0.0
      %v1557 = vmax.f32 %v1549, 0.0
      %v1558 = vmax.f32 %v1550, 0.0
      %v1559 = vmax.f32 %v1551, 0.0
      %v1560 = vmax.f32 %v1552, 0.0
      %v1561 = vpack.c.bf16 %v1555, %v1553
      %v1562 = vpack.c.bf16 %v1556, %v1554
      %v1563 = vpack.c.bf16 %v1559, %v1557
      %v1564 = vpack.c.bf16 %v1560, %v1558
      %1565 = vst [vmem:[#allocation3 + $0x40] sm:$0xff] %v1561
      %1566 = vst.msk [vmem:[#allocation3 + $0x48] sm:$0xff] %vm335, %v1562
      %1567 = vst [vmem:[#allocation3 + $0x50] sm:$0xff] %v1563
      %1568 = vst.msk [vmem:[#allocation3 + $0x58] sm:$0xff] %vm335, %v1564
      %v1569 = vld [vmem:[#allocation2 + $0x180] sm:$0xff]
      %v1570 = vld [vmem:[#allocation2 + $0x188] sm:$0xff]
      %v1571 = vld [vmem:[#allocation2 + $0x190] sm:$0xff]
      %v1572 = vld [vmem:[#allocation2 + $0x198] sm:$0xff]
      %v1573 = vld [vmem:[#allocation2 + $0x1a0] sm:$0xff]
      %v1574 = vld [vmem:[#allocation2 + $0x1a8] sm:$0xff]
      %v1575 = vld [vmem:[#allocation2 + $0x1b0] sm:$0xff]
      %v1576 = vld [vmem:[#allocation2 + $0x1b8] sm:$0xff]
      %v1577 = vld [vmem:[#allocation2 + $0x1c0] sm:$0xff]
      %v1578 = vld [vmem:[#allocation2 + $0x1c8] sm:$0xff]
      %v1579 = vld [vmem:[#allocation2 + $0x1d0] sm:$0xff]
      %v1580 = vld [vmem:[#allocation2 + $0x1d8] sm:$0xff]
      %v1581 = vld [vmem:[#allocation2 + $0x1e0] sm:$0xff]
      %v1582 = vld [vmem:[#allocation2 + $0x1e8] sm:$0xff]
      %v1583 = vld [vmem:[#allocation2 + $0x1f0] sm:$0xff]
      %v1584 = vld [vmem:[#allocation2 + $0x1f8] sm:$0xff]
      %v1585 = vld [vmem:[#allocation2 + $0x200] sm:$0xff]
      %v1586 = vld [vmem:[#allocation2 + $0x208] sm:$0xff]
      %v1587 = vld [vmem:[#allocation2 + $0x210] sm:$0xff]
      %v1588 = vld [vmem:[#allocation2 + $0x218] sm:$0xff]
      %v1589 = vld [vmem:[#allocation2 + $0x220] sm:$0xff]
      %v1590 = vld [vmem:[#allocation2 + $0x228] sm:$0xff]
      %v1591 = vld [vmem:[#allocation2 + $0x230] sm:$0xff]
      %v1592 = vld [vmem:[#allocation2 + $0x238] sm:$0xff]
      %v1593 = vmax.f32 %v1569, %v1581
      %v1594 = vmax.f32 %v1570, %v1582
      %v1595 = vmax.f32 %v1571, %v1583
      %v1596 = vmax.f32 %v1572, %v1584
      %v1597 = vmax.f32 %v1573, %v1585
      %v1598 = vmax.f32 %v1574, %v1586
      %v1599 = vmax.f32 %v1575, %v1587
      %v1600 = vmax.f32 %v1576, %v1588
      %v1601 = vmax.f32 %v1577, %v1589
      %v1602 = vmax.f32 %v1578, %v1590
      %v1603 = vmax.f32 %v1579, %v1591
      %v1604 = vmax.f32 %v1580, %v1592
      %1613 = vrot.lane.b32.xlu0 %v1594, 64
      %v1614 = vpop.permute.xlu0 %1613
      %1615 = vrot.lane.b32.xlu0 %v1595, 64
      %v1616 = vpop.permute.xlu0 %1615
      %1617 = vrot.lane.b32.xlu0 %v1597, 64
      %v1618 = vpop.permute.xlu0 %1617
      %1619 = vrot.lane.b32.xlu0 %v1598, 64
      %v1620 = vpop.permute.xlu0 %1619
      %1621 = vrot.lane.b32.xlu0 %v1600, 64
      %v1622 = vpop.permute.xlu0 %1621
      %1623 = vrot.lane.b32.xlu0 %v1601, 64
      %v1624 = vpop.permute.xlu0 %1623
      %1625 = vrot.lane.b32.xlu0 %v1603, 64
      %v1626 = vpop.permute.xlu0 %1625
      %1627 = vrot.lane.b32.xlu0 %v1604, 64
      %v1628 = vpop.permute.xlu0 %1627
      %v1629 = vsel %vm335, %v1614, %v1616
      %v1630 = vsel %vm335, %v1618, %v1620
      %v1631 = vsel %vm335, %v1622, %v1624
      %v1632 = vsel %vm335, %v1626, %v1628
      %v1641 = vmax.f32 %v1593, %v1629
      %v1642 = vmax.f32 %v1594, %v1616
      %v1643 = vmax.f32 %v1596, %v1630
      %v1644 = vmax.f32 %v1597, %v1620
      %v1645 = vmax.f32 %v1599, %v1631
      %v1646 = vmax.f32 %v1600, %v1624
      %v1647 = vmax.f32 %v1602, %v1632
      %v1648 = vmax.f32 %v1603, %v1628
      %v1649 = vld [vmem:[%s2] sm:$0x3]
      %v1651 = vlaneseq
      %v1652 = vshrl.u32 %v1651, 7
      %v1653 = vsub.s32 0, %v1652
      %v1654 = vrot.slane %v1649, %v1653
      %v1655 = vlaneseq
      %v1656 = vshrl.u32 %v1655, 7
      %v1657 = vsub.s32 1, %v1656
      %v1658 = vrot.slane %v1649, %v1657
      %v1661 = vadd.f32 %v1641, %v1654
      %v1662 = vadd.f32 %v1642, %v1658
      %v1663 = vadd.f32 %v1643, %v1654
      %v1664 = vadd.f32 %v1644, %v1658
      %v1665 = vadd.f32 %v1645, %v1654
      %v1666 = vadd.f32 %v1646, %v1658
      %v1667 = vadd.f32 %v1647, %v1654
      %v1668 = vadd.f32 %v1648, %v1658
      %v1669 = vmax.f32 %v1661, 0.0
      %v1670 = vmax.f32 %v1662, 0.0
      %v1671 = vmax.f32 %v1663, 0.0
      %v1672 = vmax.f32 %v1664, 0.0
      %v1673 = vmax.f32 %v1665, 0.0
      %v1674 = vmax.f32 %v1666, 0.0
      %v1675 = vmax.f32 %v1667, 0.0
      %v1676 = vmax.f32 %v1668, 0.0
      %v1677 = vpack.c.bf16 %v1671, %v1669
      %v1678 = vpack.c.bf16 %v1672, %v1670
      %v1679 = vpack.c.bf16 %v1675, %v1673
      %v1680 = vpack.c.bf16 %v1676, %v1674
      %1681 = vst [vmem:[#allocation3 + $0x60] sm:$0xff] %v1677
      %1682 = vst.msk [vmem:[#allocation3 + $0x68] sm:$0xff] %vm335, %v1678
      %1683 = vst [vmem:[#allocation3 + $0x70] sm:$0xff] %v1679
      %1684 = vst.msk [vmem:[#allocation3 + $0x78] sm:$0xff] %vm335, %v1680
      %v1685 = vld [vmem:[#allocation2 + $0x240] sm:$0xff]
      %v1686 = vld [vmem:[#allocation2 + $0x248] sm:$0xff]
      %v1687 = vld [vmem:[#allocation2 + $0x250] sm:$0xff]
      %v1688 = vld [vmem:[#allocation2 + $0x258] sm:$0xff]
      %v1689 = vld [vmem:[#allocation2 + $0x260] sm:$0xff]
      %v1690 = vld [vmem:[#allocation2 + $0x268] sm:$0xff]
      %v1691 = vld [vmem:[#allocation2 + $0x270] sm:$0xff]
      %v1692 = vld [vmem:[#allocation2 + $0x278] sm:$0xff]
      %v1693 = vld [vmem:[#allocation2 + $0x280] sm:$0xff]
      %v1694 = vld [vmem:[#allocation2 + $0x288] sm:$0xff]
      %v1695 = vld [vmem:[#allocation2 + $0x290] sm:$0xff]
      %v1696 = vld [vmem:[#allocation2 + $0x298] sm:$0xff]
      %v1697 = vld [vmem:[#allocation2 + $0x2a0] sm:$0xff]
      %v1698 = vld [vmem:[#allocation2 + $0x2a8] sm:$0xff]
      %v1699 = vld [vmem:[#allocation2 + $0x2b0] sm:$0xff]
      %v1700 = vld [vmem:[#allocation2 + $0x2b8] sm:$0xff]
      %v1701 = vld [vmem:[#allocation2 + $0x2c0] sm:$0xff]
      %v1702 = vld [vmem:[#allocation2 + $0x2c8] sm:$0xff]
      %v1703 = vld [vmem:[#allocation2 + $0x2d0] sm:$0xff]
      %v1704 = vld [vmem:[#allocation2 + $0x2d8] sm:$0xff]
      %v1705 = vld [vmem:[#allocation2 + $0x2e0] sm:$0xff]
      %v1706 = vld [vmem:[#allocation2 + $0x2e8] sm:$0xff]
      %v1707 = vld [vmem:[#allocation2 + $0x2f0] sm:$0xff]
      %v1708 = vld [vmem:[#allocation2 + $0x2f8] sm:$0xff]
      %v1709 = vmax.f32 %v1685, %v1697
      %v1710 = vmax.f32 %v1686, %v1698
      %v1711 = vmax.f32 %v1687, %v1699
      %v1712 = vmax.f32 %v1688, %v1700
      %v1713 = vmax.f32 %v1689, %v1701
      %v1714 = vmax.f32 %v1690, %v1702
      %v1715 = vmax.f32 %v1691, %v1703
      %v1716 = vmax.f32 %v1692, %v1704
      %v1717 = vmax.f32 %v1693, %v1705
      %v1718 = vmax.f32 %v1694, %v1706
      %v1719 = vmax.f32 %v1695, %v1707
      %v1720 = vmax.f32 %v1696, %v1708
      %1729 = vrot.lane.b32.xlu0 %v1710, 64
      %v1730 = vpop.permute.xlu0 %1729
      %1731 = vrot.lane.b32.xlu0 %v1711, 64
      %v1732 = vpop.permute.xlu0 %1731
      %1733 = vrot.lane.b32.xlu0 %v1713, 64
      %v1734 = vpop.permute.xlu0 %1733
      %1735 = vrot.lane.b32.xlu0 %v1714, 64
      %v1736 = vpop.permute.xlu0 %1735
      %1737 = vrot.lane.b32.xlu0 %v1716, 64
      %v1738 = vpop.permute.xlu0 %1737
      %1739 = vrot.lane.b32.xlu0 %v1717, 64
      %v1740 = vpop.permute.xlu0 %1739
      %1741 = vrot.lane.b32.xlu0 %v1719, 64
      %v1742 = vpop.permute.xlu0 %1741
      %1743 = vrot.lane.b32.xlu0 %v1720, 64
      %v1744 = vpop.permute.xlu0 %1743
      %v1745 = vsel %vm335, %v1730, %v1732
      %v1746 = vsel %vm335, %v1734, %v1736
      %v1747 = vsel %vm335, %v1738, %v1740
      %v1748 = vsel %vm335, %v1742, %v1744
      %v1757 = vmax.f32 %v1709, %v1745
      %v1758 = vmax.f32 %v1710, %v1732
      %v1759 = vmax.f32 %v1712, %v1746
      %v1760 = vmax.f32 %v1713, %v1736
      %v1761 = vmax.f32 %v1715, %v1747
      %v1762 = vmax.f32 %v1716, %v1740
      %v1763 = vmax.f32 %v1718, %v1748
      %v1764 = vmax.f32 %v1719, %v1744
      %v1765 = vld [vmem:[%s2] sm:$0x3]
      %v1767 = vlaneseq
      %v1768 = vshrl.u32 %v1767, 7
      %v1769 = vsub.s32 0, %v1768
      %v1770 = vrot.slane %v1765, %v1769
      %v1771 = vlaneseq
      %v1772 = vshrl.u32 %v1771, 7
      %v1773 = vsub.s32 1, %v1772
      %v1774 = vrot.slane %v1765, %v1773
      %v1777 = vadd.f32 %v1757, %v1770
      %v1778 = vadd.f32 %v1758, %v1774
      %v1779 = vadd.f32 %v1759, %v1770
      %v1780 = vadd.f32 %v1760, %v1774
      %v1781 = vadd.f32 %v1761, %v1770
      %v1782 = vadd.f32 %v1762, %v1774
      %v1783 = vadd.f32 %v1763, %v1770
      %v1784 = vadd.f32 %v1764, %v1774
      %v1785 = vmax.f32 %v1777, 0.0
      %v1786 = vmax.f32 %v1778, 0.0
      %v1787 = vmax.f32 %v1779, 0.0
      %v1788 = vmax.f32 %v1780, 0.0
      %v1789 = vmax.f32 %v1781, 0.0
      %v1790 = vmax.f32 %v1782, 0.0
      %v1791 = vmax.f32 %v1783, 0.0
      %v1792 = vmax.f32 %v1784, 0.0
      %v1793 = vpack.c.bf16 %v1787, %v1785
      %v1794 = vpack.c.bf16 %v1788, %v1786
      %v1795 = vpack.c.bf16 %v1791, %v1789
      %v1796 = vpack.c.bf16 %v1792, %v1790
      %1797 = vst [vmem:[#allocation3 + $0x80] sm:$0xff] %v1793
      %1798 = vst.msk [vmem:[#allocation3 + $0x88] sm:$0xff] %vm335, %v1794
      %1799 = vst [vmem:[#allocation3 + $0x90] sm:$0xff] %v1795
      %1800 = vst.msk [vmem:[#allocation3 + $0x98] sm:$0xff] %vm335, %v1796
      %v1801 = vld [vmem:[#allocation2 + $0x300] sm:$0xff]
      %v1802 = vld [vmem:[#allocation2 + $0x308] sm:$0xff]
      %v1803 = vld [vmem:[#allocation2 + $0x310] sm:$0xff]
      %v1804 = vld [vmem:[#allocation2 + $0x318] sm:$0xff]
      %v1805 = vld [vmem:[#allocation2 + $0x320] sm:$0xff]
      %v1806 = vld [vmem:[#allocation2 + $0x328] sm:$0xff]
      %v1807 = vld [vmem:[#allocation2 + $0x330] sm:$0xff]
      %v1808 = vld [vmem:[#allocation2 + $0x338] sm:$0xff]
      %v1809 = vld [vmem:[#allocation2 + $0x340] sm:$0xff]
      %v1810 = vld [vmem:[#allocation2 + $0x348] sm:$0xff]
      %v1811 = vld [vmem:[#allocation2 + $0x350] sm:$0xff]
      %v1812 = vld [vmem:[#allocation2 + $0x358] sm:$0xff]
      %v1813 = vld [vmem:[#allocation2 + $0x360] sm:$0xff]
      %v1814 = vld [vmem:[#allocation2 + $0x368] sm:$0xff]
      %v1815 = vld [vmem:[#allocation2 + $0x370] sm:$0xff]
      %v1816 = vld [vmem:[#allocation2 + $0x378] sm:$0xff]
      %v1817 = vld [vmem:[#allocation2 + $0x380] sm:$0xff]
      %v1818 = vld [vmem:[#allocation2 + $0x388] sm:$0xff]
      %v1819 = vld [vmem:[#allocation2 + $0x390] sm:$0xff]
      %v1820 = vld [vmem:[#allocation2 + $0x398] sm:$0xff]
      %v1821 = vld [vmem:[#allocation2 + $0x3a0] sm:$0xff]
      %v1822 = vld [vmem:[#allocation2 + $0x3a8] sm:$0xff]
      %v1823 = vld [vmem:[#allocation2 + $0x3b0] sm:$0xff]
      %v1824 = vld [vmem:[#allocation2 + $0x3b8] sm:$0xff]
      %v1825 = vmax.f32 %v1801, %v1813
      %v1826 = vmax.f32 %v1802, %v1814
      %v1827 = vmax.f32 %v1803, %v1815
      %v1828 = vmax.f32 %v1804, %v1816
      %v1829 = vmax.f32 %v1805, %v1817
      %v1830 = vmax.f32 %v1806, %v1818
      %v1831 = vmax.f32 %v1807, %v1819
      %v1832 = vmax.f32 %v1808, %v1820
      %v1833 = vmax.f32 %v1809, %v1821
      %v1834 = vmax.f32 %v1810, %v1822
      %v1835 = vmax.f32 %v1811, %v1823
      %v1836 = vmax.f32 %v1812, %v1824
      %1845 = vrot.lane.b32.xlu0 %v1826, 64
      %v1846 = vpop.permute.xlu0 %1845
      %1847 = vrot.lane.b32.xlu0 %v1827, 64
      %v1848 = vpop.permute.xlu0 %1847
      %1849 = vrot.lane.b32.xlu0 %v1829, 64
      %v1850 = vpop.permute.xlu0 %1849
      %1851 = vrot.lane.b32.xlu0 %v1830, 64
      %v1852 = vpop.permute.xlu0 %1851
      %1853 = vrot.lane.b32.xlu0 %v1832, 64
      %v1854 = vpop.permute.xlu0 %1853
      %1855 = vrot.lane.b32.xlu0 %v1833, 64
      %v1856 = vpop.permute.xlu0 %1855
      %1857 = vrot.lane.b32.xlu0 %v1835, 64
      %v1858 = vpop.permute.xlu0 %1857
      %1859 = vrot.lane.b32.xlu0 %v1836, 64
      %v1860 = vpop.permute.xlu0 %1859
      %v1861 = vsel %vm335, %v1846, %v1848
      %v1862 = vsel %vm335, %v1850, %v1852
      %v1863 = vsel %vm335, %v1854, %v1856
      %v1864 = vsel %vm335, %v1858, %v1860
      %v1873 = vmax.f32 %v1825, %v1861
      %v1874 = vmax.f32 %v1826, %v1848
      %v1875 = vmax.f32 %v1828, %v1862
      %v1876 = vmax.f32 %v1829, %v1852
      %v1877 = vmax.f32 %v1831, %v1863
      %v1878 = vmax.f32 %v1832, %v1856
      %v1879 = vmax.f32 %v1834, %v1864
      %v1880 = vmax.f32 %v1835, %v1860
      %v1881 = vld [vmem:[%s2] sm:$0x3]
      %v1883 = vlaneseq
      %v1884 = vshrl.u32 %v1883, 7
      %v1885 = vsub.s32 0, %v1884
      %v1886 = vrot.slane %v1881, %v1885
      %v1887 = vlaneseq
      %v1888 = vshrl.u32 %v1887, 7
      %v1889 = vsub.s32 1, %v1888
      %v1890 = vrot.slane %v1881, %v1889
      %v1893 = vadd.f32 %v1873, %v1886
      %v1894 = vadd.f32 %v1874, %v1890
      %v1895 = vadd.f32 %v1875, %v1886
      %v1896 = vadd.f32 %v1876, %v1890
      %v1897 = vadd.f32 %v1877, %v1886
      %v1898 = vadd.f32 %v1878, %v1890
      %v1899 = vadd.f32 %v1879, %v1886
      %v1900 = vadd.f32 %v1880, %v1890
      %v1901 = vmax.f32 %v1893, 0.0
      %v1902 = vmax.f32 %v1894, 0.0
      %v1903 = vmax.f32 %v1895, 0.0
      %v1904 = vmax.f32 %v1896, 0.0
      %v1905 = vmax.f32 %v1897, 0.0
      %v1906 = vmax.f32 %v1898, 0.0
      %v1907 = vmax.f32 %v1899, 0.0
      %v1908 = vmax.f32 %v1900, 0.0
      %v1909 = vpack.c.bf16 %v1903, %v1901
      %v1910 = vpack.c.bf16 %v1904, %v1902
      %v1911 = vpack.c.bf16 %v1907, %v1905
      %v1912 = vpack.c.bf16 %v1908, %v1906
      %1913 = vst [vmem:[#allocation3 + $0xa0] sm:$0xff] %v1909
      %1914 = vst.msk [vmem:[#allocation3 + $0xa8] sm:$0xff] %vm335, %v1910
      %1915 = vst [vmem:[#allocation3 + $0xb0] sm:$0xff] %v1911
      %1916 = vst.msk [vmem:[#allocation3 + $0xb8] sm:$0xff] %vm335, %v1912
      %v1917 = vld [vmem:[#allocation2 + $0x3c0] sm:$0xff]
      %v1918 = vld [vmem:[#allocation2 + $0x3c8] sm:$0xff]
      %v1919 = vld [vmem:[#allocation2 + $0x3d0] sm:$0xff]
      %v1920 = vld [vmem:[#allocation2 + $0x3d8] sm:$0xff]
      %v1921 = vld [vmem:[#allocation2 + $0x3e0] sm:$0xff]
      %v1922 = vld [vmem:[#allocation2 + $0x3e8] sm:$0xff]
      %v1923 = vld [vmem:[#allocation2 + $0x3f0] sm:$0xff]
      %v1924 = vld [vmem:[#allocation2 + $0x3f8] sm:$0xff]
      %v1925 = vld [vmem:[#allocation2 + $0x400] sm:$0xff]
      %v1926 = vld [vmem:[#allocation2 + $0x408] sm:$0xff]
      %v1927 = vld [vmem:[#allocation2 + $0x410] sm:$0xff]
      %v1928 = vld [vmem:[#allocation2 + $0x418] sm:$0xff]
      %v1929 = vld [vmem:[#allocation2 + $0x420] sm:$0xff]
      %v1930 = vld [vmem:[#allocation2 + $0x428] sm:$0xff]
      %v1931 = vld [vmem:[#allocation2 + $0x430] sm:$0xff]
      %v1932 = vld [vmem:[#allocation2 + $0x438] sm:$0xff]
      %v1933 = vld [vmem:[#allocation2 + $0x440] sm:$0xff]
      %v1934 = vld [vmem:[#allocation2 + $0x448] sm:$0xff]
      %v1935 = vld [vmem:[#allocation2 + $0x450] sm:$0xff]
      %v1936 = vld [vmem:[#allocation2 + $0x458] sm:$0xff]
      %v1937 = vld [vmem:[#allocation2 + $0x460] sm:$0xff]
      %v1938 = vld [vmem:[#allocation2 + $0x468] sm:$0xff]
      %v1939 = vld [vmem:[#allocation2 + $0x470] sm:$0xff]
      %v1940 = vld [vmem:[#allocation2 + $0x478] sm:$0xff]
      %v1941 = vmax.f32 %v1917, %v1929
      %v1942 = vmax.f32 %v1918, %v1930
      %v1943 = vmax.f32 %v1919, %v1931
      %v1944 = vmax.f32 %v1920, %v1932
      %v1945 = vmax.f32 %v1921, %v1933
      %v1946 = vmax.f32 %v1922, %v1934
      %v1947 = vmax.f32 %v1923, %v1935
      %v1948 = vmax.f32 %v1924, %v1936
      %v1949 = vmax.f32 %v1925, %v1937
      %v1950 = vmax.f32 %v1926, %v1938
      %v1951 = vmax.f32 %v1927, %v1939
      %v1952 = vmax.f32 %v1928, %v1940
      %1961 = vrot.lane.b32.xlu0 %v1942, 64
      %v1962 = vpop.permute.xlu0 %1961
      %1963 = vrot.lane.b32.xlu0 %v1943, 64
      %v1964 = vpop.permute.xlu0 %1963
      %1965 = vrot.lane.b32.xlu0 %v1945, 64
      %v1966 = vpop.permute.xlu0 %1965
      %1967 = vrot.lane.b32.xlu0 %v1946, 64
      %v1968 = vpop.permute.xlu0 %1967
      %1969 = vrot.lane.b32.xlu0 %v1948, 64
      %v1970 = vpop.permute.xlu0 %1969
      %1971 = vrot.lane.b32.xlu0 %v1949, 64
      %v1972 = vpop.permute.xlu0 %1971
      %1973 = vrot.lane.b32.xlu0 %v1951, 64
      %v1974 = vpop.permute.xlu0 %1973
      %1975 = vrot.lane.b32.xlu0 %v1952, 64
      %v1976 = vpop.permute.xlu0 %1975
      %v1977 = vsel %vm335, %v1962, %v1964
      %v1978 = vsel %vm335, %v1966, %v1968
      %v1979 = vsel %vm335, %v1970, %v1972
      %v1980 = vsel %vm335, %v1974, %v1976
      %v1989 = vmax.f32 %v1941, %v1977
      %v1990 = vmax.f32 %v1942, %v1964
      %v1991 = vmax.f32 %v1944, %v1978
      %v1992 = vmax.f32 %v1945, %v1968
      %v1993 = vmax.f32 %v1947, %v1979
      %v1994 = vmax.f32 %v1948, %v1972
      %v1995 = vmax.f32 %v1950, %v1980
      %v1996 = vmax.f32 %v1951, %v1976
      %v1997 = vld [vmem:[%s2] sm:$0x3]
      %v1999 = vlaneseq
      %v2000 = vshrl.u32 %v1999, 7
      %v2001 = vsub.s32 0, %v2000
      %v2002 = vrot.slane %v1997, %v2001
      %v2003 = vlaneseq
      %v2004 = vshrl.u32 %v2003, 7
      %v2005 = vsub.s32 1, %v2004
      %v2006 = vrot.slane %v1997, %v2005
      %v2009 = vadd.f32 %v1989, %v2002
      %v2010 = vadd.f32 %v1990, %v2006
      %v2011 = vadd.f32 %v1991, %v2002
      %v2012 = vadd.f32 %v1992, %v2006
      %v2013 = vadd.f32 %v1993, %v2002
      %v2014 = vadd.f32 %v1994, %v2006
      %v2015 = vadd.f32 %v1995, %v2002
      %v2016 = vadd.f32 %v1996, %v2006
      %v2017 = vmax.f32 %v2009, 0.0
      %v2018 = vmax.f32 %v2010, 0.0
      %v2019 = vmax.f32 %v2011, 0.0
      %v2020 = vmax.f32 %v2012, 0.0
      %v2021 = vmax.f32 %v2013, 0.0
      %v2022 = vmax.f32 %v2014, 0.0
      %v2023 = vmax.f32 %v2015, 0.0
      %v2024 = vmax.f32 %v2016, 0.0
      %v2025 = vpack.c.bf16 %v2019, %v2017
      %v2026 = vpack.c.bf16 %v2020, %v2018
      %v2027 = vpack.c.bf16 %v2023, %v2021
      %v2028 = vpack.c.bf16 %v2024, %v2022
      %2029 = vst [vmem:[#allocation3 + $0xc0] sm:$0xff] %v2025
      %2030 = vst.msk [vmem:[#allocation3 + $0xc8] sm:$0xff] %vm335, %v2026
      %2031 = vst [vmem:[#allocation3 + $0xd0] sm:$0xff] %v2027
      %2032 = vst.msk [vmem:[#allocation3 + $0xd8] sm:$0xff] %vm335, %v2028
      %v2033 = vld [vmem:[#allocation3] sm:$0xff]
      %v2034 = vld [vmem:[#allocation3 + $0x8] sm:$0xff]
      %v2035 = vld [vmem:[#allocation3 + $0x10] sm:$0xff]
      %v2036 = vld [vmem:[#allocation3 + $0x18] sm:$0xff]
      %v2037 = vld [vmem:[#allocation3 + $0x20] sm:$0xff]
      %v2038 = vld [vmem:[#allocation3 + $0x28] sm:$0xff]
      %v2039 = vld [vmem:[#allocation3 + $0x30] sm:$0xff]
      %v2040 = vld [vmem:[#allocation3 + $0x38] sm:$0xff]
      %v2041 = vld [vmem:[#allocation3 + $0x40] sm:$0xff]
      %v2042 = vld [vmem:[#allocation3 + $0x48] sm:$0xff]
      %v2043 = vld [vmem:[#allocation3 + $0x50] sm:$0xff]
      %v2044 = vld [vmem:[#allocation3 + $0x58] sm:$0xff]
      %v2045 = vld [vmem:[#allocation3 + $0x60] sm:$0xff]
      %v2046 = vld [vmem:[#allocation3 + $0x68] sm:$0xff]
      %v2047 = vld [vmem:[#allocation3 + $0x70] sm:$0xff]
      %v2048 = vld [vmem:[#allocation3 + $0x78] sm:$0xff]
      %v2049 = vld [vmem:[#allocation3 + $0x80] sm:$0xff]
      %v2050 = vld [vmem:[#allocation3 + $0x88] sm:$0xff]
      %v2051 = vld [vmem:[#allocation3 + $0x90] sm:$0xff]
      %v2052 = vld [vmem:[#allocation3 + $0x98] sm:$0xff]
      %v2053 = vld [vmem:[#allocation3 + $0xa0] sm:$0xff]
      %v2054 = vld [vmem:[#allocation3 + $0xa8] sm:$0xff]
      %v2055 = vld [vmem:[#allocation3 + $0xb0] sm:$0xff]
      %v2056 = vld [vmem:[#allocation3 + $0xb8] sm:$0xff]
      %v2057 = vld [vmem:[%s3] sm:$0xff]
      %v2058 = vld [vmem:[%s3 + $0x8] sm:$0xff]
      %v2059 = vld [vmem:[%s3 + $0x10] sm:$0xff]
      %v2060 = vld [vmem:[%s3 + $0x18] sm:$0xff]
      %v2061 = vld [vmem:[%s3 + $0x20] sm:$0xff]
      %v2062 = vld [vmem:[%s3 + $0x28] sm:$0xff]
      %v2063 = vld [vmem:[%s3 + $0x30] sm:$0xff]
      %v2064 = vld [vmem:[%s3 + $0x38] sm:$0xff]
      %v2065 = vld [vmem:[%s3 + $0x40] sm:$0xff]
      %v2066 = vld [vmem:[%s3 + $0x48] sm:$0xff]
      %v2067 = vld [vmem:[%s3 + $0x50] sm:$0xff]
      %v2068 = vld [vmem:[%s3 + $0x58] sm:$0xff]
      %v2069 = vld [vmem:[%s3 + $0x60] sm:$0xff]
      %v2070 = vld [vmem:[%s3 + $0x68] sm:$0xff]
      %v2071 = vld [vmem:[%s3 + $0x70] sm:$0xff]
      %v2072 = vld [vmem:[%s3 + $0x78] sm:$0xff]
      %v2073 = vld [vmem:[%s3 + $0x80] sm:$0xff]
      %v2074 = vld [vmem:[%s3 + $0x88] sm:$0xff]
      %v2075 = vld [vmem:[%s3 + $0x90] sm:$0xff]
      %v2076 = vld [vmem:[%s3 + $0x98] sm:$0xff]
      %v2077 = vld [vmem:[%s3 + $0xa0] sm:$0xff]
      %v2078 = vld [vmem:[%s3 + $0xa8] sm:$0xff]
      %v2079 = vld [vmem:[%s3 + $0xb0] sm:$0xff]
      %v2080 = vld [vmem:[%s3 + $0xb8] sm:$0xff]
      %v2081 = vld [vmem:[#allocation3 + $0xc0] sm:$0xff]
      %v2082 = vld [vmem:[#allocation3 + $0xc8] sm:$0xff]
      %v2083 = vld [vmem:[#allocation3 + $0xd0] sm:$0xff]
      %v2084 = vld [vmem:[#allocation3 + $0xd8] sm:$0xff]
      %s2085 = scalar_lea.vmem %s3, 192
      %v2086 = vld [vmem:[%s2085] sm:$0xff]
      %v2087 = vld [vmem:[%s2085 + $0x8] sm:$0xff]
      %v2088 = vld [vmem:[%s2085 + $0x10] sm:$0xff]
      %v2089 = vld [vmem:[%s2085 + $0x18] sm:$0xff]
      %v2090 = vld [vmem:[%s2085 + $0x20] sm:$0xff]
      %v2091 = vld [vmem:[%s2085 + $0x28] sm:$0xff]
      %v2092 = vld [vmem:[%s2085 + $0x30] sm:$0xff]
      %v2093 = vld [vmem:[%s2085 + $0x38] sm:$0xff]
      %v2094 = vld [vmem:[%s2085 + $0x40] sm:$0xff]
      %v2095 = vld [vmem:[%s2085 + $0x48] sm:$0xff]
      %v2096 = vld [vmem:[%s2085 + $0x50] sm:$0xff]
      %v2097 = vld [vmem:[%s2085 + $0x58] sm:$0xff]
      %v2098 = vld [vmem:[%s2085 + $0x60] sm:$0xff]
      %v2099 = vld [vmem:[%s2085 + $0x68] sm:$0xff]
      %v2100 = vld [vmem:[%s2085 + $0x70] sm:$0xff]
      %v2101 = vld [vmem:[%s2085 + $0x78] sm:$0xff]
      %v2102 = vld [vmem:[%s2085 + $0x80] sm:$0xff]
      %v2103 = vld [vmem:[%s2085 + $0x88] sm:$0xff]
      %v2104 = vld [vmem:[%s2085 + $0x90] sm:$0xff]
      %v2105 = vld [vmem:[%s2085 + $0x98] sm:$0xff]
      %v2106 = vld [vmem:[%s2085 + $0xa0] sm:$0xff]
      %v2107 = vld [vmem:[%s2085 + $0xa8] sm:$0xff]
      %v2108 = vld [vmem:[%s2085 + $0xb0] sm:$0xff]
      %v2109 = vld [vmem:[%s2085 + $0xb8] sm:$0xff]
      %v2134 = vunpack.c.l.b16 %v2086
      %v2135 = vunpack.c.h.b16 %v2086
      %v2136 = vunpack.c.l.b16 %v2087
      %v2137 = vunpack.c.h.b16 %v2087
      %v2138 = vunpack.c.l.b16 %v2088
      %v2139 = vunpack.c.h.b16 %v2088
      %v2140 = vunpack.c.l.b16 %v2089
      %v2141 = vunpack.c.h.b16 %v2089
      %v2142 = vunpack.c.l.b16 %v2090
      %v2143 = vunpack.c.h.b16 %v2090
      %v2144 = vunpack.c.l.b16 %v2091
      %v2145 = vunpack.c.h.b16 %v2091
      %v2146 = vunpack.c.l.b16 %v2092
      %v2147 = vunpack.c.h.b16 %v2092
      %v2148 = vunpack.c.l.b16 %v2093
      %v2149 = vunpack.c.h.b16 %v2093
      %v2150 = vunpack.c.l.b16 %v2094
      %v2151 = vunpack.c.h.b16 %v2094
      %v2152 = vunpack.c.l.b16 %v2095
      %v2153 = vunpack.c.h.b16 %v2095
      %v2154 = vunpack.c.l.b16 %v2096
      %v2155 = vunpack.c.h.b16 %v2096
      %v2156 = vunpack.c.l.b16 %v2097
      %v2157 = vunpack.c.h.b16 %v2097
      %v2158 = vunpack.c.l.b16 %v2098
      %v2159 = vunpack.c.h.b16 %v2098
      %v2160 = vunpack.c.l.b16 %v2099
      %v2161 = vunpack.c.h.b16 %v2099
      %v2162 = vunpack.c.l.b16 %v2100
      %v2163 = vunpack.c.h.b16 %v2100
      %v2164 = vunpack.c.l.b16 %v2101
      %v2165 = vunpack.c.h.b16 %v2101
      %v2166 = vunpack.c.l.b16 %v2102
      %v2167 = vunpack.c.h.b16 %v2102
      %v2168 = vunpack.c.l.b16 %v2103
      %v2169 = vunpack.c.h.b16 %v2103
      %v2170 = vunpack.c.l.b16 %v2104
      %v2171 = vunpack.c.h.b16 %v2104
      %v2172 = vunpack.c.l.b16 %v2105
      %v2173 = vunpack.c.h.b16 %v2105
      %v2174 = vunpack.c.l.b16 %v2106
      %v2175 = vunpack.c.h.b16 %v2106
      %v2176 = vunpack.c.l.b16 %v2107
      %v2177 = vunpack.c.h.b16 %v2107
      %v2178 = vunpack.c.l.b16 %v2108
      %v2179 = vunpack.c.h.b16 %v2108
      %v2180 = vunpack.c.l.b16 %v2109
      %v2181 = vunpack.c.h.b16 %v2109
      %v2182 = vpack.c.b16 %v2136, %v2134
      %v2183 = vpack.c.b16 %v2137, %v2135
      %v2184 = vpack.c.b16 %v2140, %v2138
      %v2185 = vpack.c.b16 %v2141, %v2139
      %v2186 = vpack.c.b16 %v2144, %v2142
      %v2187 = vpack.c.b16 %v2145, %v2143
      %v2188 = vpack.c.b16 %v2148, %v2146
      %v2189 = vpack.c.b16 %v2149, %v2147
      %v2190 = vpack.c.b16 %v2152, %v2150
      %v2191 = vpack.c.b16 %v2153, %v2151
      %v2192 = vpack.c.b16 %v2156, %v2154
      %v2193 = vpack.c.b16 %v2157, %v2155
      %v2194 = vpack.c.b16 %v2160, %v2158
      %v2195 = vpack.c.b16 %v2161, %v2159
      %v2196 = vpack.c.b16 %v2164, %v2162
      %v2197 = vpack.c.b16 %v2165, %v2163
      %v2198 = vpack.c.b16 %v2168, %v2166
      %v2199 = vpack.c.b16 %v2169, %v2167
      %v2200 = vpack.c.b16 %v2172, %v2170
      %v2201 = vpack.c.b16 %v2173, %v2171
      %v2202 = vpack.c.b16 %v2176, %v2174
      %v2203 = vpack.c.b16 %v2177, %v2175
      %v2204 = vpack.c.b16 %v2180, %v2178
      %v2205 = vpack.c.b16 %v2181, %v2179
      %v2231 = vsel %vm335, %v2038, 0
      %v2234 = vsel %vm335, %v2040, 0
      %v2237 = vsel %vm335, %v2042, 0
      %v2240 = vsel %vm335, %v2044, 0
      %v2243 = vsel %vm335, %v2046, 0
      %v2246 = vsel %vm335, %v2048, 0
      %v2249 = vsel %vm335, %v2050, 0
      %v2252 = vsel %vm335, %v2052, 0
      %v2255 = vsel %vm335, %v2054, 0
      %v2258 = vsel %vm335, %v2056, 0
      %v2261 = vsel %vm335, %v2082, 0
      %v2264 = vsel %vm335, %v2084, 0
      %2266 = vmatprep.subr.bf16.mxu0 %v2183
      %2267 = vmatpush1.bf16.msra.mxu0 %v2182
      %2268 = vmatprep.subr.bf16.mxu0 %v2185
      %2269 = vmatpush1.bf16.msra.mxu0 %v2184
      %2270 = vmatprep.subr.bf16.mxu0 %v2187
      %2271 = vmatpush1.bf16.msra.mxu0 %v2186
      %2272 = vmatprep.subr.bf16.mxu0 %v2189
      %2273 = vmatpush1.bf16.msra.mxu0 %v2188
      %2274 = vmatprep.subr.bf16.mxu0 %v2191
      %2275 = vmatpush1.bf16.msra.mxu0 %v2190
      %2276 = vmatprep.subr.bf16.mxu0 %v2193
      %2277 = vmatpush1.bf16.msra.mxu0 %v2192
      %2278 = vmatprep.subr.bf16.mxu0 %v2195
      %2279 = vmatpush1.bf16.msra.mxu0 %v2194
      %2280 = vmatprep.subr.bf16.mxu0 %v2197
      %2281 = vmatpush1.bf16.msra.mxu0 %v2196
      %2282 = vmatprep.subr.bf16.mxu0 %v2199
      %2283 = vmatpush1.bf16.msra.mxu0 %v2198
      %2284 = vmatprep.subr.bf16.mxu0 %v2201
      %2285 = vmatpush1.bf16.msra.mxu0 %v2200
      %2286 = vmatprep.subr.bf16.mxu0 %v2203
      %2287 = vmatpush1.bf16.msra.mxu0 %v2202
      %2288 = vmatprep.subr.bf16.mxu0 %v2205
      %2289 = vmatpush1.bf16.msra.mxu0 %v2204
      %2290 = vmatprep.subr.bf16.mxu0 0
      %2291 = vmatpush1.bf16.msra.mxu0 0
      %2292 = vmatprep.subr.bf16.mxu0 0
      %2293 = vmatpush1.bf16.msra.mxu0 0
      %2294 = vmatprep.subr.bf16.mxu0 0
      %2295 = vmatpush1.bf16.msra.mxu0 0
      %2296 = vmatprep.subr.bf16.mxu0 0
      %2297 = vmatpush1.bf16.msra.mxu0 0
      %2298 = vmatprep.mubr.bf16.mxu0 %v2231
      %2299 = vmatmul.mubr.bf16.gmra.mrb[0].mxu0 %v2037
      %v2300 = vpop.f32.mrb[0].mxu0
      %v2301 = vadd.f32 0.0, %v2300
      %v2302 = vpop.f32.mrb[0].mxu0
      %v2303 = vadd.f32 0.0, %v2302
      %v2304 = vpop.f32.mrb[0].mxu0
      %v2305 = vadd.f32 0.0, %v2304
      %v2306 = vpop.f32.mrb[0].mxu0
      %v2307 = vadd.f32 0.0, %v2306
      %2308 = vmatprep.mubr.bf16.mxu0 %v2234
      %2309 = vmatmul.mubr.bf16.gmra.mrb[0].mxu0 %v2039
      %v2310 = vpop.f32.mrb[0].mxu0
      %v2311 = vadd.f32 0.0, %v2310
      %v2312 = vpop.f32.mrb[0].mxu0
      %v2313 = vadd.f32 0.0, %v2312
      %v2314 = vpop.f32.mrb[0].mxu0
      %v2315 = vadd.f32 0.0, %v2314
      %v2316 = vpop.f32.mrb[0].mxu0
      %v2317 = vadd.f32 0.0, %v2316
      %2318 = vmatprep.mubr.bf16.mxu0 %v2237
      %2319 = vmatmul.mubr.bf16.gmra.mrb[0].mxu0 %v2041
      %v2320 = vpop.f32.mrb[0].mxu0
      %v2321 = vadd.f32 0.0, %v2320
      %v2322 = vpop.f32.mrb[0].mxu0
      %v2323 = vadd.f32 0.0, %v2322
      %v2324 = vpop.f32.mrb[0].mxu0
      %v2325 = vadd.f32 0.0, %v2324
      %v2326 = vpop.f32.mrb[0].mxu0
      %v2327 = vadd.f32 0.0, %v2326
      %2328 = vmatprep.mubr.bf16.mxu0 %v2240
      %2329 = vmatmul.mubr.bf16.gmra.mrb[0].mxu0 %v2043
      %v2330 = vpop.f32.mrb[0].mxu0
      %v2331 = vadd.f32 0.0, %v2330
      %v2332 = vpop.f32.mrb[0].mxu0
      %v2333 = vadd.f32 0.0, %v2332
      %v2334 = vpop.f32.mrb[0].mxu0
      %v2335 = vadd.f32 0.0, %v2334
      %v2336 = vpop.f32.mrb[0].mxu0
      %v2337 = vadd.f32 0.0, %v2336
      %2338 = vmatprep.mubr.bf16.mxu0 %v2243
      %2339 = vmatmul.mubr.bf16.gmra.mrb[0].mxu0 %v2045
      %v2340 = vpop.f32.mrb[0].mxu0
      %v2341 = vadd.f32 0.0, %v2340
      %v2342 = vpop.f32.mrb[0].mxu0
      %v2343 = vadd.f32 0.0, %v2342
      %v2344 = vpop.f32.mrb[0].mxu0
      %v2345 = vadd.f32 0.0, %v2344
      %v2346 = vpop.f32.mrb[0].mxu0
      %v2347 = vadd.f32 0.0, %v2346
      %2348 = vmatprep.mubr.bf16.mxu0 %v2246
      %2349 = vmatmul.mubr.bf16.gmra.mrb[0].mxu0 %v2047
      %v2350 = vpop.f32.mrb[0].mxu0
      %v2351 = vadd.f32 0.0, %v2350
      %v2352 = vpop.f32.mrb[0].mxu0
      %v2353 = vadd.f32 0.0, %v2352
      %v2354 = vpop.f32.mrb[0].mxu0
      %v2355 = vadd.f32 0.0, %v2354
      %v2356 = vpop.f32.mrb[0].mxu0
      %v2357 = vadd.f32 0.0, %v2356
      %2358 = vmatprep.mubr.bf16.mxu0 %v2249
      %2359 = vmatmul.mubr.bf16.gmra.mrb[0].mxu0 %v2049
      %v2360 = vpop.f32.mrb[0].mxu0
      %v2361 = vadd.f32 0.0, %v2360
      %v2362 = vpop.f32.mrb[0].mxu0
      %v2363 = vadd.f32 0.0, %v2362
      %v2364 = vpop.f32.mrb[0].mxu0
      %v2365 = vadd.f32 0.0, %v2364
      %v2366 = vpop.f32.mrb[0].mxu0
      %v2367 = vadd.f32 0.0, %v2366
      %2368 = vmatprep.mubr.bf16.mxu0 %v2252
      %2369 = vmatmul.mubr.bf16.gmra.mrb[0].mxu0 %v2051
      %v2370 = vpop.f32.mrb[0].mxu0
      %v2371 = vadd.f32 0.0, %v2370
      %v2372 = vpop.f32.mrb[0].mxu0
      %v2373 = vadd.f32 0.0, %v2372
      %v2374 = vpop.f32.mrb[0].mxu0
      %v2375 = vadd.f32 0.0, %v2374
      %v2376 = vpop.f32.mrb[0].mxu0
      %v2377 = vadd.f32 0.0, %v2376
      %2378 = vmatprep.mubr.bf16.mxu0 %v2255
      %2379 = vmatmul.mubr.bf16.gmra.mrb[0].mxu0 %v2053
      %v2380 = vpop.f32.mrb[0].mxu0
      %v2381 = vadd.f32 0.0, %v2380
      %v2382 = vpop.f32.mrb[0].mxu0
      %v2383 = vadd.f32 0.0, %v2382
      %v2384 = vpop.f32.mrb[0].mxu0
      %v2385 = vadd.f32 0.0, %v2384
      %v2386 = vpop.f32.mrb[0].mxu0
      %v2387 = vadd.f32 0.0, %v2386
      %2388 = vmatprep.mubr.bf16.mxu0 %v2258
      %2389 = vmatmul.mubr.bf16.gmra.mrb[0].mxu0 %v2055
      %v2390 = vpop.f32.mrb[0].mxu0
      %v2391 = vadd.f32 0.0, %v2390
      %v2392 = vpop.f32.mrb[0].mxu0
      %v2393 = vadd.f32 0.0, %v2392
      %v2394 = vpop.f32.mrb[0].mxu0
      %v2395 = vadd.f32 0.0, %v2394
      %v2396 = vpop.f32.mrb[0].mxu0
      %v2397 = vadd.f32 0.0, %v2396
      %2398 = vmatprep.mubr.bf16.mxu0 %v2261
      %2399 = vmatmul.mubr.bf16.gmra.mrb[0].mxu0 %v2081
      %v2400 = vpop.f32.mrb[0].mxu0
      %v2401 = vadd.f32 0.0, %v2400
      %v2402 = vpop.f32.mrb[0].mxu0
      %v2403 = vadd.f32 0.0, %v2402
      %v2404 = vpop.f32.mrb[0].mxu0
      %v2405 = vadd.f32 0.0, %v2404
      %v2406 = vpop.f32.mrb[0].mxu0
      %v2407 = vadd.f32 0.0, %v2406
      %2408 = vmatprep.mubr.bf16.mxu0 %v2264
      %2409 = vmatmul.mubr.bf16.gmra.mrb[0].mxu0 %v2083
      %v2410 = vpop.f32.mrb[0].mxu0
      %v2411 = vadd.f32 0.0, %v2410
      %v2412 = vpop.f32.mrb[0].mxu0
      %v2413 = vadd.f32 0.0, %v2412
      %v2414 = vpop.f32.mrb[0].mxu0
      %v2415 = vadd.f32 0.0, %v2414
      %v2416 = vpop.f32.mrb[0].mxu0
      %v2417 = vadd.f32 0.0, %v2416
      %2418 = vdwg.mxu0
      %v2443 = vunpack.c.l.b16 %v2057
      %v2444 = vunpack.c.h.b16 %v2057
      %v2445 = vunpack.c.l.b16 %v2058
      %v2446 = vunpack.c.h.b16 %v2058
      %v2447 = vunpack.c.l.b16 %v2059
      %v2448 = vunpack.c.h.b16 %v2059
      %v2449 = vunpack.c.l.b16 %v2060
      %v2450 = vunpack.c.h.b16 %v2060
      %v2451 = vunpack.c.l.b16 %v2061
      %v2452 = vunpack.c.h.b16 %v2061
      %v2453 = vunpack.c.l.b16 %v2062
      %v2454 = vunpack.c.h.b16 %v2062
      %v2455 = vunpack.c.l.b16 %v2063
      %v2456 = vunpack.c.h.b16 %v2063
      %v2457 = vunpack.c.l.b16 %v2064
      %v2458 = vunpack.c.h.b16 %v2064
      %v2459 = vunpack.c.l.b16 %v2065
      %v2460 = vunpack.c.h.b16 %v2065
      %v2461 = vunpack.c.l.b16 %v2066
      %v2462 = vunpack.c.h.b16 %v2066
      %v2463 = vunpack.c.l.b16 %v2067
      %v2464 = vunpack.c.h.b16 %v2067
      %v2465 = vunpack.c.l.b16 %v2068
      %v2466 = vunpack.c.h.b16 %v2068
      %v2467 = vunpack.c.l.b16 %v2069
      %v2468 = vunpack.c.h.b16 %v2069
      %v2469 = vunpack.c.l.b16 %v2070
      %v2470 = vunpack.c.h.b16 %v2070
      %v2471 = vunpack.c.l.b16 %v2071
      %v2472 = vunpack.c.h.b16 %v2071
      %v2473 = vunpack.c.l.b16 %v2072
      %v2474 = vunpack.c.h.b16 %v2072
      %v2475 = vunpack.c.l.b16 %v2073
      %v2476 = vunpack.c.h.b16 %v2073
      %v2477 = vunpack.c.l.b16 %v2074
      %v2478 = vunpack.c.h.b16 %v2074
      %v2479 = vunpack.c.l.b16 %v2075
      %v2480 = vunpack.c.h.b16 %v2075
      %v2481 = vunpack.c.l.b16 %v2076
      %v2482 = vunpack.c.h.b16 %v2076
      %v2483 = vunpack.c.l.b16 %v2077
      %v2484 = vunpack.c.h.b16 %v2077
      %v2485 = vunpack.c.l.b16 %v2078
      %v2486 = vunpack.c.h.b16 %v2078
      %v2487 = vunpack.c.l.b16 %v2079
      %v2488 = vunpack.c.h.b16 %v2079
      %v2489 = vunpack.c.l.b16 %v2080
      %v2490 = vunpack.c.h.b16 %v2080
      %v2491 = vpack.c.b16 %v2445, %v2443
      %v2492 = vpack.c.b16 %v2446, %v2444
      %v2493 = vpack.c.b16 %v2449, %v2447
      %v2494 = vpack.c.b16 %v2450, %v2448
      %v2495 = vpack.c.b16 %v2453, %v2451
      %v2496 = vpack.c.b16 %v2454, %v2452
      %v2497 = vpack.c.b16 %v2457, %v2455
      %v2498 = vpack.c.b16 %v2458, %v2456
      %v2499 = vpack.c.b16 %v2461, %v2459
      %v2500 = vpack.c.b16 %v2462, %v2460
      %v2501 = vpack.c.b16 %v2465, %v2463
      %v2502 = vpack.c.b16 %v2466, %v2464
      %v2503 = vpack.c.b16 %v2469, %v2467
      %v2504 = vpack.c.b16 %v2470, %v2468
      %v2505 = vpack.c.b16 %v2473, %v2471
      %v2506 = vpack.c.b16 %v2474, %v2472
      %v2507 = vpack.c.b16 %v2477, %v2475
      %v2508 = vpack.c.b16 %v2478, %v2476
      %v2509 = vpack.c.b16 %v2481, %v2479
      %v2510 = vpack.c.b16 %v2482, %v2480
      %v2511 = vpack.c.b16 %v2485, %v2483
      %v2512 = vpack.c.b16 %v2486, %v2484
      %v2513 = vpack.c.b16 %v2489, %v2487
      %v2514 = vpack.c.b16 %v2490, %v2488
      %v2540 = vsel %vm335, %v2034, 0
      %v2543 = vsel %vm335, %v2036, 0
      %2545 = vmatprep.subr.bf16.mxu0 %v2492
      %2546 = vmatpush1.bf16.msra.mxu0 %v2491
      %2547 = vmatprep.subr.bf16.mxu0 %v2494
      %2548 = vmatpush1.bf16.msra.mxu0 %v2493
      %2549 = vmatprep.subr.bf16.mxu0 %v2496
      %2550 = vmatpush1.bf16.msra.mxu0 %v2495
      %2551 = vmatprep.subr.bf16.mxu0 %v2498
      %2552 = vmatpush1.bf16.msra.mxu0 %v2497
      %2553 = vmatprep.subr.bf16.mxu0 %v2500
      %2554 = vmatpush1.bf16.msra.mxu0 %v2499
      %2555 = vmatprep.subr.bf16.mxu0 %v2502
      %2556 = vmatpush1.bf16.msra.mxu0 %v2501
      %2557 = vmatprep.subr.bf16.mxu0 %v2504
      %2558 = vmatpush1.bf16.msra.mxu0 %v2503
      %2559 = vmatprep.subr.bf16.mxu0 %v2506
      %2560 = vmatpush1.bf16.msra.mxu0 %v2505
      %2561 = vmatprep.subr.bf16.mxu0 %v2508
      %2562 = vmatpush1.bf16.msra.mxu0 %v2507
      %2563 = vmatprep.subr.bf16.mxu0 %v2510
      %2564 = vmatpush1.bf16.msra.mxu0 %v2509
      %2565 = vmatprep.subr.bf16.mxu0 %v2512
      %2566 = vmatpush1.bf16.msra.mxu0 %v2511
      %2567 = vmatprep.subr.bf16.mxu0 %v2514
      %2568 = vmatpush1.bf16.msra.mxu0 %v2513
      %2569 = vmatprep.subr.bf16.mxu0 0
      %2570 = vmatpush1.bf16.msra.mxu0 0
      %2571 = vmatprep.subr.bf16.mxu0 0
      %2572 = vmatpush1.bf16.msra.mxu0 0
      %2573 = vmatprep.subr.bf16.mxu0 0
      %2574 = vmatpush1.bf16.msra.mxu0 0
      %2575 = vmatprep.subr.bf16.mxu0 0
      %2576 = vmatpush1.bf16.msra.mxu0 0
      %2577 = vmatprep.mubr.bf16.mxu0 %v2540
      %2578 = vmatmul.mubr.bf16.gmra.mrb[0].mxu0 %v2033
      %v2579 = vpop.f32.mrb[0].mxu0
      %v2580 = vadd.f32 %v2301, %v2579
      %v2581 = vpop.f32.mrb[0].mxu0
      %v2582 = vadd.f32 %v2303, %v2581
      %v2583 = vpop.f32.mrb[0].mxu0
      %v2584 = vadd.f32 %v2305, %v2583
      %v2585 = vpop.f32.mrb[0].mxu0
      %v2586 = vadd.f32 %v2307, %v2585
      %2587 = vmatprep.mubr.bf16.mxu0 %v2543
      %2588 = vmatmul.mubr.bf16.gmra.mrb[0].mxu0 %v2035
      %v2589 = vpop.f32.mrb[0].mxu0
      %v2590 = vadd.f32 %v2311, %v2589
      %v2591 = vpop.f32.mrb[0].mxu0
      %v2592 = vadd.f32 %v2313, %v2591
      %v2593 = vpop.f32.mrb[0].mxu0
      %v2594 = vadd.f32 %v2315, %v2593
      %v2595 = vpop.f32.mrb[0].mxu0
      %v2596 = vadd.f32 %v2317, %v2595
      %2597 = vmatprep.mubr.bf16.mxu0 %v2231
      %2598 = vmatmul.mubr.bf16.gmra.mrb[0].mxu0 %v2037
      %v2599 = vpop.f32.mrb[0].mxu0
      %v2600 = vadd.f32 %v2321, %v2599
      %v2601 = vpop.f32.mrb[0].mxu0
      %v2602 = vadd.f32 %v2323, %v2601
      %v2603 = vpop.f32.mrb[0].mxu0
      %v2604 = vadd.f32 %v2325, %v2603
      %v2605 = vpop.f32.mrb[0].mxu0
      %v2606 = vadd.f32 %v2327, %v2605
      %2607 = vmatprep.mubr.bf16.mxu0 %v2234
      %2608 = vmatmul.mubr.bf16.gmra.mrb[0].mxu0 %v2039
      %v2609 = vpop.f32.mrb[0].mxu0
      %v2610 = vadd.f32 %v2331, %v2609
      %v2611 = vpop.f32.mrb[0].mxu0
      %v2612 = vadd.f32 %v2333, %v2611
      %v2613 = vpop.f32.mrb[0].mxu0
      %v2614 = vadd.f32 %v2335, %v2613
      %v2615 = vpop.f32.mrb[0].mxu0
      %v2616 = vadd.f32 %v2337, %v2615
      %2617 = vmatprep.mubr.bf16.mxu0 %v2237
      %2618 = vmatmul.mubr.bf16.gmra.mrb[0].mxu0 %v2041
      %v2619 = vpop.f32.mrb[0].mxu0
      %v2620 = vadd.f32 %v2341, %v2619
      %v2621 = vpop.f32.mrb[0].mxu0
      %v2622 = vadd.f32 %v2343, %v2621
      %v2623 = vpop.f32.mrb[0].mxu0
      %v2624 = vadd.f32 %v2345, %v2623
      %v2625 = vpop.f32.mrb[0].mxu0
      %v2626 = vadd.f32 %v2347, %v2625
      %2627 = vmatprep.mubr.bf16.mxu0 %v2240
      %2628 = vmatmul.mubr.bf16.gmra.mrb[0].mxu0 %v2043
      %v2629 = vpop.f32.mrb[0].mxu0
      %v2630 = vadd.f32 %v2351, %v2629
      %v2631 = vpop.f32.mrb[0].mxu0
      %v2632 = vadd.f32 %v2353, %v2631
      %v2633 = vpop.f32.mrb[0].mxu0
      %v2634 = vadd.f32 %v2355, %v2633
      %v2635 = vpop.f32.mrb[0].mxu0
      %v2636 = vadd.f32 %v2357, %v2635
      %2637 = vmatprep.mubr.bf16.mxu0 %v2243
      %2638 = vmatmul.mubr.bf16.gmra.mrb[0].mxu0 %v2045
      %v2639 = vpop.f32.mrb[0].mxu0
      %v2640 = vadd.f32 %v2361, %v2639
      %v2641 = vpop.f32.mrb[0].mxu0
      %v2642 = vadd.f32 %v2363, %v2641
      %v2643 = vpop.f32.mrb[0].mxu0
      %v2644 = vadd.f32 %v2365, %v2643
      %v2645 = vpop.f32.mrb[0].mxu0
      %v2646 = vadd.f32 %v2367, %v2645
      %2647 = vmatprep.mubr.bf16.mxu0 %v2246
      %2648 = vmatmul.mubr.bf16.gmra.mrb[0].mxu0 %v2047
      %v2649 = vpop.f32.mrb[0].mxu0
      %v2650 = vadd.f32 %v2371, %v2649
      %v2651 = vpop.f32.mrb[0].mxu0
      %v2652 = vadd.f32 %v2373, %v2651
      %v2653 = vpop.f32.mrb[0].mxu0
      %v2654 = vadd.f32 %v2375, %v2653
      %v2655 = vpop.f32.mrb[0].mxu0
      %v2656 = vadd.f32 %v2377, %v2655
      %2657 = vmatprep.mubr.bf16.mxu0 %v2249
      %2658 = vmatmul.mubr.bf16.gmra.mrb[0].mxu0 %v2049
      %v2659 = vpop.f32.mrb[0].mxu0
      %v2660 = vadd.f32 %v2381, %v2659
      %v2661 = vpop.f32.mrb[0].mxu0
      %v2662 = vadd.f32 %v2383, %v2661
      %v2663 = vpop.f32.mrb[0].mxu0
      %v2664 = vadd.f32 %v2385, %v2663
      %v2665 = vpop.f32.mrb[0].mxu0
      %v2666 = vadd.f32 %v2387, %v2665
      %2667 = vmatprep.mubr.bf16.mxu0 %v2252
      %2668 = vmatmul.mubr.bf16.gmra.mrb[0].mxu0 %v2051
      %v2669 = vpop.f32.mrb[0].mxu0
      %v2670 = vadd.f32 %v2391, %v2669
      %v2671 = vpop.f32.mrb[0].mxu0
      %v2672 = vadd.f32 %v2393, %v2671
      %v2673 = vpop.f32.mrb[0].mxu0
      %v2674 = vadd.f32 %v2395, %v2673
      %v2675 = vpop.f32.mrb[0].mxu0
      %v2676 = vadd.f32 %v2397, %v2675
      %2677 = vmatprep.mubr.bf16.mxu0 %v2255
      %2678 = vmatmul.mubr.bf16.gmra.mrb[0].mxu0 %v2053
      %v2679 = vpop.f32.mrb[0].mxu0
      %v2680 = vadd.f32 %v2401, %v2679
      %v2681 = vpop.f32.mrb[0].mxu0
      %v2682 = vadd.f32 %v2403, %v2681
      %v2683 = vpop.f32.mrb[0].mxu0
      %v2684 = vadd.f32 %v2405, %v2683
      %v2685 = vpop.f32.mrb[0].mxu0
      %v2686 = vadd.f32 %v2407, %v2685
      %2687 = vmatprep.mubr.bf16.mxu0 %v2258
      %2688 = vmatmul.mubr.bf16.gmra.mrb[0].mxu0 %v2055
      %v2689 = vpop.f32.mrb[0].mxu0
      %v2690 = vadd.f32 %v2411, %v2689
      %v2691 = vpop.f32.mrb[0].mxu0
      %v2692 = vadd.f32 %v2413, %v2691
      %v2693 = vpop.f32.mrb[0].mxu0
      %v2694 = vadd.f32 %v2415, %v2693
      %v2695 = vpop.f32.mrb[0].mxu0
      %v2696 = vadd.f32 %v2417, %v2695
      %2697 = vdwg.mxu0
      %v2698 = vld [vmem:[#allocation3 + $0x40] sm:$0xff]
      %v2699 = vld [vmem:[#allocation3 + $0x48] sm:$0xff]
      %v2700 = vld [vmem:[#allocation3 + $0x50] sm:$0xff]
      %v2701 = vld [vmem:[#allocation3 + $0x58] sm:$0xff]
      %v2702 = vld [vmem:[#allocation3 + $0x60] sm:$0xff]
      %v2703 = vld [vmem:[#allocation3 + $0x68] sm:$0xff]
      %v2704 = vld [vmem:[#allocation3 + $0x70] sm:$0xff]
      %v2705 = vld [vmem:[#allocation3 + $0x78] sm:$0xff]
      %v2706 = vld [vmem:[#allocation3 + $0x80] sm:$0xff]
      %v2707 = vld [vmem:[#allocation3 + $0x88] sm:$0xff]
      %v2708 = vld [vmem:[#allocation3 + $0x90] sm:$0xff]
      %v2709 = vld [vmem:[#allocation3 + $0x98] sm:$0xff]
      %v2710 = vld [vmem:[#allocation3 + $0xa0] sm:$0xff]
      %v2711 = vld [vmem:[#allocation3 + $0xa8] sm:$0xff]
      %v2712 = vld [vmem:[#allocation3 + $0xb0] sm:$0xff]
      %v2713 = vld [vmem:[#allocation3 + $0xb8] sm:$0xff]
      %v2714 = vld [vmem:[#allocation3 + $0xc0] sm:$0xff]
      %v2715 = vld [vmem:[#allocation3 + $0xc8] sm:$0xff]
      %v2716 = vld [vmem:[#allocation3 + $0xd0] sm:$0xff]
      %v2717 = vld [vmem:[#allocation3 + $0xd8] sm:$0xff]
      %v2718 = vld [vmem:[#allocation3 + $0xe0] sm:$0xff]
      %v2719 = vld [vmem:[#allocation3 + $0xe8] sm:$0xff]
      %v2720 = vld [vmem:[#allocation3 + $0xf0] sm:$0xff]
      %v2721 = vld [vmem:[#allocation3 + $0xf8] sm:$0xff]
      %s2722 = scalar_lea.vmem %s3, 384
      %v2723 = vld [vmem:[%s2722] sm:$0xff]
      %v2724 = vld [vmem:[%s2722 + $0x8] sm:$0xff]
      %v2725 = vld [vmem:[%s2722 + $0x10] sm:$0xff]
      %v2726 = vld [vmem:[%s2722 + $0x18] sm:$0xff]
      %v2727 = vld [vmem:[%s2722 + $0x20] sm:$0xff]
      %v2728 = vld [vmem:[%s2722 + $0x28] sm:$0xff]
      %v2729 = vld [vmem:[%s2722 + $0x30] sm:$0xff]
      %v2730 = vld [vmem:[%s2722 + $0x38] sm:$0xff]
      %v2731 = vld [vmem:[%s2722 + $0x40] sm:$0xff]
      %v2732 = vld [vmem:[%s2722 + $0x48] sm:$0xff]
      %v2733 = vld [vmem:[%s2722 + $0x50] sm:$0xff]
      %v2734 = vld [vmem:[%s2722 + $0x58] sm:$0xff]
      %v2735 = vld [vmem:[%s2722 + $0x60] sm:$0xff]
      %v2736 = vld [vmem:[%s2722 + $0x68] sm:$0xff]
      %v2737 = vld [vmem:[%s2722 + $0x70] sm:$0xff]
      %v2738 = vld [vmem:[%s2722 + $0x78] sm:$0xff]
      %v2739 = vld [vmem:[%s2722 + $0x80] sm:$0xff]
      %v2740 = vld [vmem:[%s2722 + $0x88] sm:$0xff]
      %v2741 = vld [vmem:[%s2722 + $0x90] sm:$0xff]
      %v2742 = vld [vmem:[%s2722 + $0x98] sm:$0xff]
      %v2743 = vld [vmem:[%s2722 + $0xa0] sm:$0xff]
      %v2744 = vld [vmem:[%s2722 + $0xa8] sm:$0xff]
      %v2745 = vld [vmem:[%s2722 + $0xb0] sm:$0xff]
      %v2746 = vld [vmem:[%s2722 + $0xb8] sm:$0xff]
      %v2771 = vunpack.c.l.b16 %v2723
      %v2772 = vunpack.c.h.b16 %v2723
      %v2773 = vunpack.c.l.b16 %v2724
      %v2774 = vunpack.c.h.b16 %v2724
      %v2775 = vunpack.c.l.b16 %v2725
      %v2776 = vunpack.c.h.b16 %v2725
      %v2777 = vunpack.c.l.b16 %v2726
      %v2778 = vunpack.c.h.b16 %v2726
      %v2779 = vunpack.c.l.b16 %v2727
      %v2780 = vunpack.c.h.b16 %v2727
      %v2781 = vunpack.c.l.b16 %v2728
      %v2782 = vunpack.c.h.b16 %v2728
      %v2783 = vunpack.c.l.b16 %v2729
      %v2784 = vunpack.c.h.b16 %v2729
      %v2785 = vunpack.c.l.b16 %v2730
      %v2786 = vunpack.c.h.b16 %v2730
      %v2787 = vunpack.c.l.b16 %v2731
      %v2788 = vunpack.c.h.b16 %v2731
      %v2789 = vunpack.c.l.b16 %v2732
      %v2790 = vunpack.c.h.b16 %v2732
      %v2791 = vunpack.c.l.b16 %v2733
      %v2792 = vunpack.c.h.b16 %v2733
      %v2793 = vunpack.c.l.b16 %v2734
      %v2794 = vunpack.c.h.b16 %v2734
      %v2795 = vunpack.c.l.b16 %v2735
      %v2796 = vunpack.c.h.b16 %v2735
      %v2797 = vunpack.c.l.b16 %v2736
      %v2798 = vunpack.c.h.b16 %v2736
      %v2799 = vunpack.c.l.b16 %v2737
      %v2800 = vunpack.c.h.b16 %v2737
      %v2801 = vunpack.c.l.b16 %v2738
      %v2802 = vunpack.c.h.b16 %v2738
      %v2803 = vunpack.c.l.b16 %v2739
      %v2804 = vunpack.c.h.b16 %v2739
      %v2805 = vunpack.c.l.b16 %v2740
      %v2806 = vunpack.c.h.b16 %v2740
      %v2807 = vunpack.c.l.b16 %v2741
      %v2808 = vunpack.c.h.b16 %v2741
      %v2809 = vunpack.c.l.b16 %v2742
      %v2810 = vunpack.c.h.b16 %v2742
      %v2811 = vunpack.c.l.b16 %v2743
      %v2812 = vunpack.c.h.b16 %v2743
      %v2813 = vunpack.c.l.b16 %v2744
      %v2814 = vunpack.c.h.b16 %v2744
      %v2815 = vunpack.c.l.b16 %v2745
      %v2816 = vunpack.c.h.b16 %v2745
      %v2817 = vunpack.c.l.b16 %v2746
      %v2818 = vunpack.c.h.b16 %v2746
      %v2819 = vpack.c.b16 %v2773, %v2771
      %v2820 = vpack.c.b16 %v2774, %v2772
      %v2821 = vpack.c.b16 %v2777, %v2775
      %v2822 = vpack.c.b16 %v2778, %v2776
      %v2823 = vpack.c.b16 %v2781, %v2779
      %v2824 = vpack.c.b16 %v2782, %v2780
      %v2825 = vpack.c.b16 %v2785, %v2783
      %v2826 = vpack.c.b16 %v2786, %v2784
      %v2827 = vpack.c.b16 %v2789, %v2787
      %v2828 = vpack.c.b16 %v2790, %v2788
      %v2829 = vpack.c.b16 %v2793, %v2791
      %v2830 = vpack.c.b16 %v2794, %v2792
      %v2831 = vpack.c.b16 %v2797, %v2795
      %v2832 = vpack.c.b16 %v2798, %v2796
      %v2833 = vpack.c.b16 %v2801, %v2799
      %v2834 = vpack.c.b16 %v2802, %v2800
      %v2835 = vpack.c.b16 %v2805, %v2803
      %v2836 = vpack.c.b16 %v2806, %v2804
      %v2837 = vpack.c.b16 %v2809, %v2807
      %v2838 = vpack.c.b16 %v2810, %v2808
      %v2839 = vpack.c.b16 %v2813, %v2811
      %v2840 = vpack.c.b16 %v2814, %v2812
      %v2841 = vpack.c.b16 %v2817, %v2815
      %v2842 = vpack.c.b16 %v2818, %v2816
      %v2868 = vsel %vm335, %v2699, 0
      %v2871 = vsel %vm335, %v2701, 0
      %v2874 = vsel %vm335, %v2703, 0
      %v2877 = vsel %vm335, %v2705, 0
      %v2880 = vsel %vm335, %v2707, 0
      %v2883 = vsel %vm335, %v2709, 0
      %v2886 = vsel %vm335, %v2711, 0
      %v2889 = vsel %vm335, %v2713, 0
      %v2892 = vsel %vm335, %v2715, 0
      %v2895 = vsel %vm335, %v2717, 0
      %v2898 = vsel %vm335, %v2719, 0
      %v2901 = vsel %vm335, %v2721, 0
      %2903 = vmatprep.subr.bf16.mxu0 %v2820
      %2904 = vmatpush1.bf16.msra.mxu0 %v2819
      %2905 = vmatprep.subr.bf16.mxu0 %v2822
      %2906 = vmatpush1.bf16.msra.mxu0 %v2821
      %2907 = vmatprep.subr.bf16.mxu0 %v2824
      %2908 = vmatpush1.bf16.msra.mxu0 %v2823
      %2909 = vmatprep.subr.bf16.mxu0 %v2826
      %2910 = vmatpush1.bf16.msra.mxu0 %v2825
      %2911 = vmatprep.subr.bf16.mxu0 %v2828
      %2912 = vmatpush1.bf16.msra.mxu0 %v2827
      %2913 = vmatprep.subr.bf16.mxu0 %v2830
      %2914 = vmatpush1.bf16.msra.mxu0 %v2829
      %2915 = vmatprep.subr.bf16.mxu0 %v2832
      %2916 = vmatpush1.bf16.msra.mxu0 %v2831
      %2917 = vmatprep.subr.bf16.mxu0 %v2834
      %2918 = vmatpush1.bf16.msra.mxu0 %v2833
      %2919 = vmatprep.subr.bf16.mxu0 %v2836
      %2920 = vmatpush1.bf16.msra.mxu0 %v2835
      %2921 = vmatprep.subr.bf16.mxu0 %v2838
      %2922 = vmatpush1.bf16.msra.mxu0 %v2837
      %2923 = vmatprep.subr.bf16.mxu0 %v2840
      %2924 = vmatpush1.bf16.msra.mxu0 %v2839
      %2925 = vmatprep.subr.bf16.mxu0 %v2842
      %2926 = vmatpush1.bf16.msra.mxu0 %v2841
      %2927 = vmatprep.subr.bf16.mxu0 0
      %2928 = vmatpush1.bf16.msra.mxu0 0
      %2929 = vmatprep.subr.bf16.mxu0 0
      %2930 = vmatpush1.bf16.msra.mxu0 0
      %2931 = vmatprep.subr.bf16.mxu0 0
      %2932 = vmatpush1.bf16.msra.mxu0 0
      %2933 = vmatprep.subr.bf16.mxu0 0
      %2934 = vmatpush1.bf16.msra.mxu0 0
      %2935 = vmatprep.mubr.bf16.mxu0 %v2868
      %2936 = vmatmul.mubr.bf16.gmra.mrb[0].mxu0 %v2698
      %v2937 = vpop.f32.mrb[0].mxu0
      %v2938 = vadd.f32 0.0, %v2937
      %v2939 = vpop.f32.mrb[0].mxu0
      %v2940 = vadd.f32 0.0, %v2939
      %v2941 = vpop.f32.mrb[0].mxu0
      %v2942 = vadd.f32 0.0, %v2941
      %v2943 = vpop.f32.mrb[0].mxu0
      %v2944 = vadd.f32 0.0, %v2943
      %2945 = vmatprep.mubr.bf16.mxu0 %v2871
      %2946 = vmatmul.mubr.bf16.gmra.mrb[0].mxu0 %v2700
      %v2947 = vpop.f32.mrb[0].mxu0
      %v2948 = vadd.f32 0.0, %v2947
      %v2949 = vpop.f32.mrb[0].mxu0
      %v2950 = vadd.f32 0.0, %v2949
      %v2951 = vpop.f32.mrb[0].mxu0
      %v2952 = vadd.f32 0.0, %v2951
      %v2953 = vpop.f32.mrb[0].mxu0
      %v2954 = vadd.f32 0.0, %v2953
      %2955 = vmatprep.mubr.bf16.mxu0 %v2874
      %2956 = vmatmul.mubr.bf16.gmra.mrb[0].mxu0 %v2702
      %v2957 = vpop.f32.mrb[0].mxu0
      %v2958 = vadd.f32 0.0, %v2957
      %v2959 = vpop.f32.mrb[0].mxu0
      %v2960 = vadd.f32 0.0, %v2959
      %v2961 = vpop.f32.mrb[0].mxu0
      %v2962 = vadd.f32 0.0, %v2961
      %v2963 = vpop.f32.mrb[0].mxu0
      %v2964 = vadd.f32 0.0, %v2963
      %2965 = vmatprep.mubr.bf16.mxu0 %v2877
      %2966 = vmatmul.mubr.bf16.gmra.mrb[0].mxu0 %v2704
      %v2967 = vpop.f32.mrb[0].mxu0
      %v2968 = vadd.f32 0.0, %v2967
      %v2969 = vpop.f32.mrb[0].mxu0
      %v2970 = vadd.f32 0.0, %v2969
      %v2971 = vpop.f32.mrb[0].mxu0
      %v2972 = vadd.f32 0.0, %v2971
      %v2973 = vpop.f32.mrb[0].mxu0
      %v2974 = vadd.f32 0.0, %v2973
      %2975 = vmatprep.mubr.bf16.mxu0 %v2880
      %2976 = vmatmul.mubr.bf16.gmra.mrb[0].mxu0 %v2706
      %v2977 = vpop.f32.mrb[0].mxu0
      %v2978 = vadd.f32 0.0, %v2977
      %v2979 = vpop.f32.mrb[0].mxu0
      %v2980 = vadd.f32 0.0, %v2979
      %v2981 = vpop.f32.mrb[0].mxu0
      %v2982 = vadd.f32 0.0, %v2981
      %v2983 = vpop.f32.mrb[0].mxu0
      %v2984 = vadd.f32 0.0, %v2983
      %2985 = vmatprep.mubr.bf16.mxu0 %v2883
      %2986 = vmatmul.mubr.bf16.gmra.mrb[0].mxu0 %v2708
      %v2987 = vpop.f32.mrb[0].mxu0
      %v2988 = vadd.f32 0.0, %v2987
      %v2989 = vpop.f32.mrb[0].mxu0
      %v2990 = vadd.f32 0.0, %v2989
      %v2991 = vpop.f32.mrb[0].mxu0
      %v2992 = vadd.f32 0.0, %v2991
      %v2993 = vpop.f32.mrb[0].mxu0
      %v2994 = vadd.f32 0.0, %v2993
      %2995 = vmatprep.mubr.bf16.mxu0 %v2886
      %2996 = vmatmul.mubr.bf16.gmra.mrb[0].mxu0 %v2710
      %v2997 = vpop.f32.mrb[0].mxu0
      %v2998 = vadd.f32 0.0, %v2997
      %v2999 = vpop.f32.mrb[0].mxu0
      %v3000 = vadd.f32 0.0, %v2999
      %v3001 = vpop.f32.mrb[0].mxu0
      %v3002 = vadd.f32 0.0, %v3001
      %v3003 = vpop.f32.mrb[0].mxu0
      %v3004 = vadd.f32 0.0, %v3003
      %3005 = vmatprep.mubr.bf16.mxu0 %v2889
      %3006 = vmatmul.mubr.bf16.gmra.mrb[0].mxu0 %v2712
      %v3007 = vpop.f32.mrb[0].mxu0
      %v3008 = vadd.f32 0.0, %v3007
      %v3009 = vpop.f32.mrb[0].mxu0
      %v3010 = vadd.f32 0.0, %v3009
      %v3011 = vpop.f32.mrb[0].mxu0
      %v3012 = vadd.f32 0.0, %v3011
      %v3013 = vpop.f32.mrb[0].mxu0
      %v3014 = vadd.f32 0.0, %v3013
      %3015 = vmatprep.mubr.bf16.mxu0 %v2892
      %3016 = vmatmul.mubr.bf16.gmra.mrb[0].mxu0 %v2714
      %v3017 = vpop.f32.mrb[0].mxu0
      %v3018 = vadd.f32 0.0, %v3017
      %v3019 = vpop.f32.mrb[0].mxu0
      %v3020 = vadd.f32 0.0, %v3019
      %v3021 = vpop.f32.mrb[0].mxu0
      %v3022 = vadd.f32 0.0, %v3021
      %v3023 = vpop.f32.mrb[0].mxu0
      %v3024 = vadd.f32 0.0, %v3023
      %3025 = vmatprep.mubr.bf16.mxu0 %v2895
      %3026 = vmatmul.mubr.bf16.gmra.mrb[0].mxu0 %v2716
      %v3027 = vpop.f32.mrb[0].mxu0
      %v3028 = vadd.f32 0.0, %v3027
      %v3029 = vpop.f32.mrb[0].mxu0
      %v3030 = vadd.f32 0.0, %v3029
      %v3031 = vpop.f32.mrb[0].mxu0
      %v3032 = vadd.f32 0.0, %v3031
      %v3033 = vpop.f32.mrb[0].mxu0
      %v3034 = vadd.f32 0.0, %v3033
      %3035 = vmatprep.mubr.bf16.mxu0 %v2898
      %3036 = vmatmul.mubr.bf16.gmra.mrb[0].mxu0 %v2718
      %v3037 = vpop.f32.mrb[0].mxu0
      %v3038 = vadd.f32 0.0, %v3037
      %v3039 = vpop.f32.mrb[0].mxu0
      %v3040 = vadd.f32 0.0, %v3039
      %v3041 = vpop.f32.mrb[0].mxu0
      %v3042 = vadd.f32 0.0, %v3041
      %v3043 = vpop.f32.mrb[0].mxu0
      %v3044 = vadd.f32 0.0, %v3043
      %3045 = vmatprep.mubr.bf16.mxu0 %v2901
      %3046 = vmatmul.mubr.bf16.gmra.mrb[0].mxu0 %v2720
      %v3047 = vpop.f32.mrb[0].mxu0
      %v3048 = vadd.f32 0.0, %v3047
      %v3049 = vpop.f32.mrb[0].mxu0
      %v3050 = vadd.f32 0.0, %v3049
      %v3051 = vpop.f32.mrb[0].mxu0
      %v3052 = vadd.f32 0.0, %v3051
      %v3053 = vpop.f32.mrb[0].mxu0
      %v3054 = vadd.f32 0.0, %v3053
      %3055 = vdwg.mxu0
      %v3056 = vadd.f32 %v2580, %v2938
      %v3057 = vadd.f32 %v2582, %v2940
      %v3058 = vadd.f32 %v2584, %v2942
      %v3059 = vadd.f32 %v2586, %v2944
      %v3060 = vadd.f32 %v2590, %v2948
      %v3061 = vadd.f32 %v2592, %v2950
      %v3062 = vadd.f32 %v2594, %v2952
      %v3063 = vadd.f32 %v2596, %v2954
      %v3064 = vadd.f32 %v2600, %v2958
      %v3065 = vadd.f32 %v2602, %v2960
      %v3066 = vadd.f32 %v2604, %v2962
      %v3067 = vadd.f32 %v2606, %v2964
      %v3068 = vadd.f32 %v2610, %v2968
      %v3069 = vadd.f32 %v2612, %v2970
      %v3070 = vadd.f32 %v2614, %v2972
      %v3071 = vadd.f32 %v2616, %v2974
      %v3072 = vadd.f32 %v2620, %v2978
      %v3073 = vadd.f32 %v2622, %v2980
      %v3074 = vadd.f32 %v2624, %v2982
      %v3075 = vadd.f32 %v2626, %v2984
      %v3076 = vadd.f32 %v2630, %v2988
      %v3077 = vadd.f32 %v2632, %v2990
      %v3078 = vadd.f32 %v2634, %v2992
      %v3079 = vadd.f32 %v2636, %v2994
      %v3080 = vadd.f32 %v2640, %v2998
      %v3081 = vadd.f32 %v2642, %v3000
      %v3082 = vadd.f32 %v2644, %v3002
      %v3083 = vadd.f32 %v2646, %v3004
      %v3084 = vadd.f32 %v2650, %v3008
      %v3085 = vadd.f32 %v2652, %v3010
      %v3086 = vadd.f32 %v2654, %v3012
      %v3087 = vadd.f32 %v2656, %v3014
      %v3088 = vadd.f32 %v2660, %v3018
      %v3089 = vadd.f32 %v2662, %v3020
      %v3090 = vadd.f32 %v2664, %v3022
      %v3091 = vadd.f32 %v2666, %v3024
      %v3092 = vadd.f32 %v2670, %v3028
      %v3093 = vadd.f32 %v2672, %v3030
      %v3094 = vadd.f32 %v2674, %v3032
      %v3095 = vadd.f32 %v2676, %v3034
      %v3096 = vadd.f32 %v2680, %v3038
      %v3097 = vadd.f32 %v2682, %v3040
      %v3098 = vadd.f32 %v2684, %v3042
      %v3099 = vadd.f32 %v2686, %v3044
      %v3100 = vadd.f32 %v2690, %v3048
      %v3101 = vadd.f32 %v2692, %v3050
      %v3102 = vadd.f32 %v2694, %v3052
      %v3103 = vadd.f32 %v2696, %v3054
      %3104 = vst [vmem:[#allocation4] sm:$0xff] %v3056
      %3105 = vst [vmem:[#allocation4 + $0x8] sm:$0xff] %v3057
      %3106 = vst [vmem:[#allocation4 + $0x10] sm:$0xff] %v3058
      %3107 = vst [vmem:[#allocation4 + $0x18] sm:$0xff] %v3059
      %3108 = vst [vmem:[#allocation4 + $0x20] sm:$0xff] %v3060
      %3109 = vst [vmem:[#allocation4 + $0x28] sm:$0xff] %v3061
      %3110 = vst [vmem:[#allocation4 + $0x30] sm:$0xff] %v3062
      %3111 = vst [vmem:[#allocation4 + $0x38] sm:$0xff] %v3063
      %3112 = vst [vmem:[#allocation4 + $0x40] sm:$0xff] %v3064
      %3113 = vst [vmem:[#allocation4 + $0x48] sm:$0xff] %v3065
      %3114 = vst [vmem:[#allocation4 + $0x50] sm:$0xff] %v3066
      %3115 = vst [vmem:[#allocation4 + $0x58] sm:$0xff] %v3067
      %3116 = vst [vmem:[#allocation4 + $0x60] sm:$0xff] %v3068
      %3117 = vst [vmem:[#allocation4 + $0x68] sm:$0xff] %v3069
      %3118 = vst [vmem:[#allocation4 + $0x70] sm:$0xff] %v3070
      %3119 = vst [vmem:[#allocation4 + $0x78] sm:$0xff] %v3071
      %3120 = vst [vmem:[#allocation4 + $0x80] sm:$0xff] %v3072
      %3121 = vst [vmem:[#allocation4 + $0x88] sm:$0xff] %v3073
      %3122 = vst [vmem:[#allocation4 + $0x90] sm:$0xff] %v3074
      %3123 = vst [vmem:[#allocation4 + $0x98] sm:$0xff] %v3075
      %3124 = vst [vmem:[#allocation4 + $0xa0] sm:$0xff] %v3076
      %3125 = vst [vmem:[#allocation4 + $0xa8] sm:$0xff] %v3077
      %3126 = vst [vmem:[#allocation4 + $0xb0] sm:$0xff] %v3078
      %3127 = vst [vmem:[#allocation4 + $0xb8] sm:$0xff] %v3079
      %3128 = vst [vmem:[#allocation4 + $0xc0] sm:$0xff] %v3080
      %3129 = vst [vmem:[#allocation4 + $0xc8] sm:$0xff] %v3081
      %3130 = vst [vmem:[#allocation4 + $0xd0] sm:$0xff] %v3082
      %3131 = vst [vmem:[#allocation4 + $0xd8] sm:$0xff] %v3083
      %3132 = vst [vmem:[#allocation4 + $0xe0] sm:$0xff] %v3084
      %3133 = vst [vmem:[#allocation4 + $0xe8] sm:$0xff] %v3085
      %3134 = vst [vmem:[#allocation4 + $0xf0] sm:$0xff] %v3086
      %3135 = vst [vmem:[#allocation4 + $0xf8] sm:$0xff] %v3087
      %3136 = vst [vmem:[#allocation4 + $0x100] sm:$0xff] %v3088
      %3137 = vst [vmem:[#allocation4 + $0x108] sm:$0xff] %v3089
      %3138 = vst [vmem:[#allocation4 + $0x110] sm:$0xff] %v3090
      %3139 = vst [vmem:[#allocation4 + $0x118] sm:$0xff] %v3091
      %3140 = vst [vmem:[#allocation4 + $0x120] sm:$0xff] %v3092
      %3141 = vst [vmem:[#allocation4 + $0x128] sm:$0xff] %v3093
      %3142 = vst [vmem:[#allocation4 + $0x130] sm:$0xff] %v3094
      %3143 = vst [vmem:[#allocation4 + $0x138] sm:$0xff] %v3095
      %3144 = vst [vmem:[#allocation4 + $0x140] sm:$0xff] %v3096
      %3145 = vst [vmem:[#allocation4 + $0x148] sm:$0xff] %v3097
      %3146 = vst [vmem:[#allocation4 + $0x150] sm:$0xff] %v3098
      %3147 = vst [vmem:[#allocation4 + $0x158] sm:$0xff] %v3099
      %3148 = vst [vmem:[#allocation4 + $0x160] sm:$0xff] %v3100
      %3149 = vst [vmem:[#allocation4 + $0x168] sm:$0xff] %v3101
      %3150 = vst [vmem:[#allocation4 + $0x170] sm:$0xff] %v3102
      %3151 = vst [vmem:[#allocation4 + $0x178] sm:$0xff] %v3103
      %v3152 = vld [vmem:[#allocation4] sm:$0xff]
      %v3153 = vld [vmem:[#allocation4 + $0x8] sm:$0xff]
      %v3154 = vld [vmem:[#allocation4 + $0x10] sm:$0xff]
      %v3155 = vld [vmem:[#allocation4 + $0x18] sm:$0xff]
      %v3156 = vld [vmem:[#allocation4 + $0x20] sm:$0xff]
      %v3157 = vld [vmem:[#allocation4 + $0x28] sm:$0xff]
      %v3158 = vld [vmem:[#allocation4 + $0x30] sm:$0xff]
      %v3159 = vld [vmem:[#allocation4 + $0x38] sm:$0xff]
      %v3160 = vld [vmem:[#allocation4 + $0x40] sm:$0xff]
      %v3161 = vld [vmem:[#allocation4 + $0x48] sm:$0xff]
      %v3162 = vld [vmem:[#allocation4 + $0x50] sm:$0xff]
      %v3163 = vld [vmem:[#allocation4 + $0x58] sm:$0xff]
      %v3164 = vld [vmem:[#allocation4 + $0x60] sm:$0xff]
      %v3165 = vld [vmem:[#allocation4 + $0x68] sm:$0xff]
      %v3166 = vld [vmem:[#allocation4 + $0x70] sm:$0xff]
      %v3167 = vld [vmem:[#allocation4 + $0x78] sm:$0xff]
      %v3168 = vmax.f32 %v3152, %v3160
      %v3169 = vmax.f32 %v3153, %v3161
      %v3170 = vmax.f32 %v3154, %v3162
      %v3171 = vmax.f32 %v3155, %v3163
      %v3172 = vmax.f32 %v3156, %v3164
      %v3173 = vmax.f32 %v3157, %v3165
      %v3174 = vmax.f32 %v3158, %v3166
      %v3175 = vmax.f32 %v3159, %v3167
      %v3176 = vmax.f32 %v3168, %v3169
      %v3177 = vmax.f32 %v3170, %v3171
      %v3178 = vmax.f32 %v3172, %v3173
      %v3179 = vmax.f32 %v3174, %v3175
      %v3180 = vld [vmem:[%s4] sm:$0x1]
      %v3182 = vlaneseq
      %v3183 = vshrl.u32 %v3182, 7
      %v3184 = vsub.s32 0, %v3183
      %v3185 = vrot.slane %v3180, %v3184
      %v3187 = vadd.f32 %v3176, %v3185
      %v3188 = vadd.f32 %v3177, %v3185
      %v3189 = vadd.f32 %v3178, %v3185
      %v3190 = vadd.f32 %v3179, %v3185
      %v3191 = vmax.f32 %v3187, 0.0
      %v3192 = vmax.f32 %v3188, 0.0
      %v3193 = vmax.f32 %v3189, 0.0
      %v3194 = vmax.f32 %v3190, 0.0
      %v3195 = vpack.c.bf16 %v3192, %v3191
      %v3196 = vpack.c.bf16 %v3194, %v3193
      %v3197 = vld [vmem:[%s5] sm:$0xf]
      %v3198 = vld [vmem:[%s5 + $0x4] sm:$0xf]
      %v3199 = vld [vmem:[%s5 + $0x8] sm:$0xf]
      %v3200 = vld [vmem:[%s5 + $0xc] sm:$0xf]
      %v3201 = vld [vmem:[%s5 + $0x10] sm:$0xf]
      %v3202 = vld [vmem:[%s5 + $0x14] sm:$0xf]
      %v3203 = vld [vmem:[%s5 + $0x18] sm:$0xf]
      %v3204 = vld [vmem:[%s5 + $0x1c] sm:$0xf]
      %v3205 = vld [vmem:[%s5 + $0x20] sm:$0xf]
      %v3206 = vld [vmem:[%s5 + $0x24] sm:$0xf]
      %v3207 = vld [vmem:[%s5 + $0x28] sm:$0xf]
      %v3208 = vld [vmem:[%s5 + $0x2c] sm:$0xf]
      %v3209 = vld [vmem:[%s5 + $0x30] sm:$0xf]
      %v3210 = vld [vmem:[%s5 + $0x34] sm:$0xf]
      %v3211 = vld [vmem:[%s5 + $0x38] sm:$0xf]
      %v3212 = vld [vmem:[%s5 + $0x3c] sm:$0xf]
      %v3213 = vld [vmem:[#allocation4 + $0x80] sm:$0xff]
      %v3214 = vld [vmem:[#allocation4 + $0x88] sm:$0xff]
      %v3215 = vld [vmem:[#allocation4 + $0x90] sm:$0xff]
      %v3216 = vld [vmem:[#allocation4 + $0x98] sm:$0xff]
      %v3217 = vld [vmem:[#allocation4 + $0xa0] sm:$0xff]
      %v3218 = vld [vmem:[#allocation4 + $0xa8] sm:$0xff]
      %v3219 = vld [vmem:[#allocation4 + $0xb0] sm:$0xff]
      %v3220 = vld [vmem:[#allocation4 + $0xb8] sm:$0xff]
      %v3221 = vld [vmem:[#allocation4 + $0xc0] sm:$0xff]
      %v3222 = vld [vmem:[#allocation4 + $0xc8] sm:$0xff]
      %v3223 = vld [vmem:[#allocation4 + $0xd0] sm:$0xff]
      %v3224 = vld [vmem:[#allocation4 + $0xd8] sm:$0xff]
      %v3225 = vld [vmem:[#allocation4 + $0xe0] sm:$0xff]
      %v3226 = vld [vmem:[#allocation4 + $0xe8] sm:$0xff]
      %v3227 = vld [vmem:[#allocation4 + $0xf0] sm:$0xff]
      %v3228 = vld [vmem:[#allocation4 + $0xf8] sm:$0xff]
      %v3229 = vmax.f32 %v3213, %v3221
      %v3230 = vmax.f32 %v3214, %v3222
      %v3231 = vmax.f32 %v3215, %v3223
      %v3232 = vmax.f32 %v3216, %v3224
      %v3233 = vmax.f32 %v3217, %v3225
      %v3234 = vmax.f32 %v3218, %v3226
      %v3235 = vmax.f32 %v3219, %v3227
      %v3236 = vmax.f32 %v3220, %v3228
      %v3237 = vmax.f32 %v3229, %v3230
      %v3238 = vmax.f32 %v3231, %v3232
      %v3239 = vmax.f32 %v3233, %v3234
      %v3240 = vmax.f32 %v3235, %v3236
      %v3241 = vadd.f32 %v3237, %v3185
      %v3242 = vadd.f32 %v3238, %v3185
      %v3243 = vadd.f32 %v3239, %v3185
      %v3244 = vadd.f32 %v3240, %v3185
      %v3245 = vmax.f32 %v3241, 0.0
      %v3246 = vmax.f32 %v3242, 0.0
      %v3247 = vmax.f32 %v3243, 0.0
      %v3248 = vmax.f32 %v3244, 0.0
      %v3249 = vpack.c.bf16 %v3246, %v3245
      %v3250 = vpack.c.bf16 %v3248, %v3247
      %s3251 = scalar_lea.vmem %s5, 64
      %v3252 = vld [vmem:[%s3251] sm:$0xf]
      %v3253 = vld [vmem:[%s3251 + $0x4] sm:$0xf]
      %v3254 = vld [vmem:[%s3251 + $0x8] sm:$0xf]
      %v3255 = vld [vmem:[%s3251 + $0xc] sm:$0xf]
      %v3256 = vld [vmem:[%s3251 + $0x10] sm:$0xf]
      %v3257 = vld [vmem:[%s3251 + $0x14] sm:$0xf]
      %v3258 = vld [vmem:[%s3251 + $0x18] sm:$0xf]
      %v3259 = vld [vmem:[%s3251 + $0x1c] sm:$0xf]
      %v3260 = vld [vmem:[%s3251 + $0x20] sm:$0xf]
      %v3261 = vld [vmem:[%s3251 + $0x24] sm:$0xf]
      %v3262 = vld [vmem:[%s3251 + $0x28] sm:$0xf]
      %v3263 = vld [vmem:[%s3251 + $0x2c] sm:$0xf]
      %v3264 = vld [vmem:[%s3251 + $0x30] sm:$0xf]
      %v3265 = vld [vmem:[%s3251 + $0x34] sm:$0xf]
      %v3266 = vld [vmem:[%s3251 + $0x38] sm:$0xf]
      %v3267 = vld [vmem:[%s3251 + $0x3c] sm:$0xf]
      %v3284 = vunpack.c.l.b16 %v3252
      %v3285 = vunpack.c.l.b16 %v3253
      %v3286 = vunpack.c.l.b16 %v3254
      %v3287 = vunpack.c.l.b16 %v3255
      %v3288 = vunpack.c.l.b16 %v3256
      %v3289 = vunpack.c.l.b16 %v3257
      %v3290 = vunpack.c.l.b16 %v3258
      %v3291 = vunpack.c.l.b16 %v3259
      %v3292 = vunpack.c.l.b16 %v3260
      %v3293 = vunpack.c.l.b16 %v3261
      %v3294 = vunpack.c.l.b16 %v3262
      %v3295 = vunpack.c.l.b16 %v3263
      %v3296 = vunpack.c.l.b16 %v3264
      %v3297 = vunpack.c.l.b16 %v3265
      %v3298 = vunpack.c.l.b16 %v3266
      %v3299 = vunpack.c.l.b16 %v3267
      %v3300 = vpack.c.b16 %v3285, %v3284
      %v3301 = vpack.c.b16 %v3287, %v3286
      %v3302 = vpack.c.b16 %v3289, %v3288
      %v3303 = vpack.c.b16 %v3291, %v3290
      %v3304 = vpack.c.b16 %v3293, %v3292
      %v3305 = vpack.c.b16 %v3295, %v3294
      %v3306 = vpack.c.b16 %v3297, %v3296
      %v3307 = vpack.c.b16 %v3299, %v3298
      %3316 = vmatprep.subr.bf16.mxu0 0
      %3317 = vmatpush1.bf16.msra.mxu0 %v3300
      %3318 = vmatprep.subr.bf16.mxu0 0
      %3319 = vmatpush1.bf16.msra.mxu0 %v3301
      %3320 = vmatprep.subr.bf16.mxu0 0
      %3321 = vmatpush1.bf16.msra.mxu0 %v3302
      %3322 = vmatprep.subr.bf16.mxu0 0
      %3323 = vmatpush1.bf16.msra.mxu0 %v3303
      %3324 = vmatprep.subr.bf16.mxu0 0
      %3325 = vmatpush1.bf16.msra.mxu0 %v3304
      %3326 = vmatprep.subr.bf16.mxu0 0
      %3327 = vmatpush1.bf16.msra.mxu0 %v3305
      %3328 = vmatprep.subr.bf16.mxu0 0
      %3329 = vmatpush1.bf16.msra.mxu0 %v3306
      %3330 = vmatprep.subr.bf16.mxu0 0
      %3331 = vmatpush1.bf16.msra.mxu0 %v3307
      %3332 = vmatprep.subr.bf16.mxu0 0
      %3333 = vmatpush1.bf16.msra.mxu0 0
      %3334 = vmatprep.subr.bf16.mxu0 0
      %3335 = vmatpush1.bf16.msra.mxu0 0
      %3336 = vmatprep.subr.bf16.mxu0 0
      %3337 = vmatpush1.bf16.msra.mxu0 0
      %3338 = vmatprep.subr.bf16.mxu0 0
      %3339 = vmatpush1.bf16.msra.mxu0 0
      %3340 = vmatprep.subr.bf16.mxu0 0
      %3341 = vmatpush1.bf16.msra.mxu0 0
      %3342 = vmatprep.subr.bf16.mxu0 0
      %3343 = vmatpush1.bf16.msra.mxu0 0
      %3344 = vmatprep.subr.bf16.mxu0 0
      %3345 = vmatpush1.bf16.msra.mxu0 0
      %3346 = vmatprep.subr.bf16.mxu0 0
      %3347 = vmatpush1.bf16.msra.mxu0 0
      %3348 = vmatprep.mubr.bf16.mxu0 0
      %3349 = vmatmul.mubr.bf16.gmra.mrb[0].mxu0 %v3249
      %v3350 = vpop.f32.mrb[0].mxu0
      %v3351 = vadd.f32 0.0, %v3350
      %v3352 = vpop.f32.mrb[0].mxu0
      %v3353 = vpop.f32.mrb[0].mxu0
      %v3354 = vadd.f32 0.0, %v3353
      %v3355 = vpop.f32.mrb[0].mxu0
      %3356 = vmatprep.mubr.bf16.mxu0 0
      %3357 = vmatmul.mubr.bf16.gmra.mrb[0].mxu0 %v3250
      %v3358 = vpop.f32.mrb[0].mxu0
      %v3359 = vadd.f32 0.0, %v3358
      %v3360 = vpop.f32.mrb[0].mxu0
      %v3361 = vpop.f32.mrb[0].mxu0
      %v3362 = vadd.f32 0.0, %v3361
      %v3363 = vpop.f32.mrb[0].mxu0
      %3364 = vdwg.mxu0
      %v3381 = vunpack.c.l.b16 %v3197
      %v3382 = vunpack.c.l.b16 %v3198
      %v3383 = vunpack.c.l.b16 %v3199
      %v3384 = vunpack.c.l.b16 %v3200
      %v3385 = vunpack.c.l.b16 %v3201
      %v3386 = vunpack.c.l.b16 %v3202
      %v3387 = vunpack.c.l.b16 %v3203
      %v3388 = vunpack.c.l.b16 %v3204
      %v3389 = vunpack.c.l.b16 %v3205
      %v3390 = vunpack.c.l.b16 %v3206
      %v3391 = vunpack.c.l.b16 %v3207
      %v3392 = vunpack.c.l.b16 %v3208
      %v3393 = vunpack.c.l.b16 %v3209
      %v3394 = vunpack.c.l.b16 %v3210
      %v3395 = vunpack.c.l.b16 %v3211
      %v3396 = vunpack.c.l.b16 %v3212
      %v3397 = vpack.c.b16 %v3382, %v3381
      %v3398 = vpack.c.b16 %v3384, %v3383
      %v3399 = vpack.c.b16 %v3386, %v3385
      %v3400 = vpack.c.b16 %v3388, %v3387
      %v3401 = vpack.c.b16 %v3390, %v3389
      %v3402 = vpack.c.b16 %v3392, %v3391
      %v3403 = vpack.c.b16 %v3394, %v3393
      %v3404 = vpack.c.b16 %v3396, %v3395
      %3413 = vmatprep.subr.bf16.mxu0 0
      %3414 = vmatpush1.bf16.msra.mxu0 %v3397
      %3415 = vmatprep.subr.bf16.mxu0 0
      %3416 = vmatpush1.bf16.msra.mxu0 %v3398
      %3417 = vmatprep.subr.bf16.mxu0 0
      %3418 = vmatpush1.bf16.msra.mxu0 %v3399
      %3419 = vmatprep.subr.bf16.mxu0 0
      %3420 = vmatpush1.bf16.msra.mxu0 %v3400
      %3421 = vmatprep.subr.bf16.mxu0 0
      %3422 = vmatpush1.bf16.msra.mxu0 %v3401
      %3423 = vmatprep.subr.bf16.mxu0 0
      %3424 = vmatpush1.bf16.msra.mxu0 %v3402
      %3425 = vmatprep.subr.bf16.mxu0 0
      %3426 = vmatpush1.bf16.msra.mxu0 %v3403
      %3427 = vmatprep.subr.bf16.mxu0 0
      %3428 = vmatpush1.bf16.msra.mxu0 %v3404
      %3429 = vmatprep.subr.bf16.mxu0 0
      %3430 = vmatpush1.bf16.msra.mxu0 0
      %3431 = vmatprep.subr.bf16.mxu0 0
      %3432 = vmatpush1.bf16.msra.mxu0 0
      %3433 = vmatprep.subr.bf16.mxu0 0
      %3434 = vmatpush1.bf16.msra.mxu0 0
      %3435 = vmatprep.subr.bf16.mxu0 0
      %3436 = vmatpush1.bf16.msra.mxu0 0
      %3437 = vmatprep.subr.bf16.mxu0 0
      %3438 = vmatpush1.bf16.msra.mxu0 0
      %3439 = vmatprep.subr.bf16.mxu0 0
      %3440 = vmatpush1.bf16.msra.mxu0 0
      %3441 = vmatprep.subr.bf16.mxu0 0
      %3442 = vmatpush1.bf16.msra.mxu0 0
      %3443 = vmatprep.subr.bf16.mxu0 0
      %3444 = vmatpush1.bf16.msra.mxu0 0
      %3445 = vmatprep.mubr.bf16.mxu0 0
      %3446 = vmatmul.mubr.bf16.gmra.mrb[0].mxu0 %v3195
      %v3447 = vpop.f32.mrb[0].mxu0
      %v3448 = vadd.f32 %v3351, %v3447
      %v3449 = vpop.f32.mrb[0].mxu0
      %v3450 = vpop.f32.mrb[0].mxu0
      %v3451 = vadd.f32 %v3354, %v3450
      %v3452 = vpop.f32.mrb[0].mxu0
      %3453 = vmatprep.mubr.bf16.mxu0 0
      %3454 = vmatmul.mubr.bf16.gmra.mrb[0].mxu0 %v3196
      %v3455 = vpop.f32.mrb[0].mxu0
      %v3456 = vadd.f32 %v3359, %v3455
      %v3457 = vpop.f32.mrb[0].mxu0
      %v3458 = vpop.f32.mrb[0].mxu0
      %v3459 = vadd.f32 %v3362, %v3458
      %v3460 = vpop.f32.mrb[0].mxu0
      %3461 = vdwg.mxu0
      %v3462 = vld [vmem:[#allocation4 + $0x100] sm:$0xff]
      %v3463 = vld [vmem:[#allocation4 + $0x108] sm:$0xff]
      %v3464 = vld [vmem:[#allocation4 + $0x110] sm:$0xff]
      %v3465 = vld [vmem:[#allocation4 + $0x118] sm:$0xff]
      %v3466 = vld [vmem:[#allocation4 + $0x120] sm:$0xff]
      %v3467 = vld [vmem:[#allocation4 + $0x128] sm:$0xff]
      %v3468 = vld [vmem:[#allocation4 + $0x130] sm:$0xff]
      %v3469 = vld [vmem:[#allocation4 + $0x138] sm:$0xff]
      %v3470 = vld [vmem:[#allocation4 + $0x140] sm:$0xff]
      %v3471 = vld [vmem:[#allocation4 + $0x148] sm:$0xff]
      %v3472 = vld [vmem:[#allocation4 + $0x150] sm:$0xff]
      %v3473 = vld [vmem:[#allocation4 + $0x158] sm:$0xff]
      %v3474 = vld [vmem:[#allocation4 + $0x160] sm:$0xff]
      %v3475 = vld [vmem:[#allocation4 + $0x168] sm:$0xff]
      %v3476 = vld [vmem:[#allocation4 + $0x170] sm:$0xff]
      %v3477 = vld [vmem:[#allocation4 + $0x178] sm:$0xff]
      %v3478 = vmax.f32 %v3462, %v3470
      %v3479 = vmax.f32 %v3463, %v3471
      %v3480 = vmax.f32 %v3464, %v3472
      %v3481 = vmax.f32 %v3465, %v3473
      %v3482 = vmax.f32 %v3466, %v3474
      %v3483 = vmax.f32 %v3467, %v3475
      %v3484 = vmax.f32 %v3468, %v3476
      %v3485 = vmax.f32 %v3469, %v3477
      %v3486 = vmax.f32 %v3478, %v3479
      %v3487 = vmax.f32 %v3480, %v3481
      %v3488 = vmax.f32 %v3482, %v3483
      %v3489 = vmax.f32 %v3484, %v3485
      %v3490 = vadd.f32 %v3486, %v3185
      %v3491 = vadd.f32 %v3487, %v3185
      %v3492 = vadd.f32 %v3488, %v3185
      %v3493 = vadd.f32 %v3489, %v3185
      %v3494 = vmax.f32 %v3490, 0.0
      %v3495 = vmax.f32 %v3491, 0.0
      %v3496 = vmax.f32 %v3492, 0.0
      %v3497 = vmax.f32 %v3493, 0.0
      %v3498 = vpack.c.bf16 %v3495, %v3494
      %v3499 = vpack.c.bf16 %v3497, %v3496
      %s3500 = scalar_lea.vmem %s5, 128
      %v3501 = vld [vmem:[%s3500] sm:$0xf]
      %v3502 = vld [vmem:[%s3500 + $0x4] sm:$0xf]
      %v3503 = vld [vmem:[%s3500 + $0x8] sm:$0xf]
      %v3504 = vld [vmem:[%s3500 + $0xc] sm:$0xf]
      %v3505 = vld [vmem:[%s3500 + $0x10] sm:$0xf]
      %v3506 = vld [vmem:[%s3500 + $0x14] sm:$0xf]
      %v3507 = vld [vmem:[%s3500 + $0x18] sm:$0xf]
      %v3508 = vld [vmem:[%s3500 + $0x1c] sm:$0xf]
      %v3509 = vld [vmem:[%s3500 + $0x20] sm:$0xf]
      %v3510 = vld [vmem:[%s3500 + $0x24] sm:$0xf]
      %v3511 = vld [vmem:[%s3500 + $0x28] sm:$0xf]
      %v3512 = vld [vmem:[%s3500 + $0x2c] sm:$0xf]
      %v3513 = vld [vmem:[%s3500 + $0x30] sm:$0xf]
      %v3514 = vld [vmem:[%s3500 + $0x34] sm:$0xf]
      %v3515 = vld [vmem:[%s3500 + $0x38] sm:$0xf]
      %v3516 = vld [vmem:[%s3500 + $0x3c] sm:$0xf]
      %v3533 = vunpack.c.l.b16 %v3501
      %v3534 = vunpack.c.l.b16 %v3502
      %v3535 = vunpack.c.l.b16 %v3503
      %v3536 = vunpack.c.l.b16 %v3504
      %v3537 = vunpack.c.l.b16 %v3505
      %v3538 = vunpack.c.l.b16 %v3506
      %v3539 = vunpack.c.l.b16 %v3507
      %v3540 = vunpack.c.l.b16 %v3508
      %v3541 = vunpack.c.l.b16 %v3509
      %v3542 = vunpack.c.l.b16 %v3510
      %v3543 = vunpack.c.l.b16 %v3511
      %v3544 = vunpack.c.l.b16 %v3512
      %v3545 = vunpack.c.l.b16 %v3513
      %v3546 = vunpack.c.l.b16 %v3514
      %v3547 = vunpack.c.l.b16 %v3515
      %v3548 = vunpack.c.l.b16 %v3516
      %v3549 = vpack.c.b16 %v3534, %v3533
      %v3550 = vpack.c.b16 %v3536, %v3535
      %v3551 = vpack.c.b16 %v3538, %v3537
      %v3552 = vpack.c.b16 %v3540, %v3539
      %v3553 = vpack.c.b16 %v3542, %v3541
      %v3554 = vpack.c.b16 %v3544, %v3543
      %v3555 = vpack.c.b16 %v3546, %v3545
      %v3556 = vpack.c.b16 %v3548, %v3547
      %3565 = vmatprep.subr.bf16.mxu0 0
      %3566 = vmatpush1.bf16.msra.mxu0 %v3549
      %3567 = vmatprep.subr.bf16.mxu0 0
      %3568 = vmatpush1.bf16.msra.mxu0 %v3550
      %3569 = vmatprep.subr.bf16.mxu0 0
      %3570 = vmatpush1.bf16.msra.mxu0 %v3551
      %3571 = vmatprep.subr.bf16.mxu0 0
      %3572 = vmatpush1.bf16.msra.mxu0 %v3552
      %3573 = vmatprep.subr.bf16.mxu0 0
      %3574 = vmatpush1.bf16.msra.mxu0 %v3553
      %3575 = vmatprep.subr.bf16.mxu0 0
      %3576 = vmatpush1.bf16.msra.mxu0 %v3554
      %3577 = vmatprep.subr.bf16.mxu0 0
      %3578 = vmatpush1.bf16.msra.mxu0 %v3555
      %3579 = vmatprep.subr.bf16.mxu0 0
      %3580 = vmatpush1.bf16.msra.mxu0 %v3556
      %3581 = vmatprep.subr.bf16.mxu0 0
      %3582 = vmatpush1.bf16.msra.mxu0 0
      %3583 = vmatprep.subr.bf16.mxu0 0
      %3584 = vmatpush1.bf16.msra.mxu0 0
      %3585 = vmatprep.subr.bf16.mxu0 0
      %3586 = vmatpush1.bf16.msra.mxu0 0
      %3587 = vmatprep.subr.bf16.mxu0 0
      %3588 = vmatpush1.bf16.msra.mxu0 0
      %3589 = vmatprep.subr.bf16.mxu0 0
      %3590 = vmatpush1.bf16.msra.mxu0 0
      %3591 = vmatprep.subr.bf16.mxu0 0
      %3592 = vmatpush1.bf16.msra.mxu0 0
      %3593 = vmatprep.subr.bf16.mxu0 0
      %3594 = vmatpush1.bf16.msra.mxu0 0
      %3595 = vmatprep.subr.bf16.mxu0 0
      %3596 = vmatpush1.bf16.msra.mxu0 0
      %3597 = vmatprep.mubr.bf16.mxu0 0
      %3598 = vmatmul.mubr.bf16.gmra.mrb[0].mxu0 %v3498
      %v3599 = vpop.f32.mrb[0].mxu0
      %v3600 = vadd.f32 0.0, %v3599
      %v3601 = vpop.f32.mrb[0].mxu0
      %v3602 = vpop.f32.mrb[0].mxu0
      %v3603 = vadd.f32 0.0, %v3602
      %v3604 = vpop.f32.mrb[0].mxu0
      %3605 = vmatprep.mubr.bf16.mxu0 0
      %3606 = vmatmul.mubr.bf16.gmra.mrb[0].mxu0 %v3499
      %v3607 = vpop.f32.mrb[0].mxu0
      %v3608 = vadd.f32 0.0, %v3607
      %v3609 = vpop.f32.mrb[0].mxu0
      %v3610 = vpop.f32.mrb[0].mxu0
      %v3611 = vadd.f32 0.0, %v3610
      %v3612 = vpop.f32.mrb[0].mxu0
      %3613 = vdwg.mxu0
      %v3614 = vadd.f32 %v3448, %v3600
      %v3615 = vadd.f32 %v3451, %v3603
      %v3616 = vadd.f32 %v3456, %v3608
      %v3617 = vadd.f32 %v3459, %v3611
      %v3618 = vld [vmem:[%s6] sm:$0x1]
      %v3620 = vlaneseq
      %v3621 = vshrl.u32 %v3620, 7
      %v3622 = vsub.s32 0, %v3621
      %v3623 = vrot.slane %v3618, %v3622
      %v3625 = vadd.f32 %v3614, %v3623
      %v3626 = vadd.f32 %v3615, %v3623
      %v3627 = vadd.f32 %v3616, %v3623
      %v3628 = vadd.f32 %v3617, %v3623
      %v3629 = vpack.c.bf16 %v3626, %v3625
      %v3630 = vpack.c.bf16 %v3628, %v3627
      %v3631 = vld [vmem:[%s7] sm:$0xf]
      %v3632 = vld [vmem:[%s7 + $0x4] sm:$0xf]
      %v3633 = vld [vmem:[%s7 + $0x8] sm:$0xf]
      %v3634 = vld [vmem:[%s7 + $0xc] sm:$0xf]
      %v3635 = vld [vmem:[%s7 + $0x10] sm:$0xf]
      %v3636 = vld [vmem:[%s7 + $0x14] sm:$0xf]
      %v3637 = vld [vmem:[%s7 + $0x18] sm:$0xf]
      %v3638 = vld [vmem:[%s7 + $0x1c] sm:$0xf]
      %v3639 = vld [vmem:[%s7 + $0x20] sm:$0xf]
      %v3640 = vld [vmem:[%s7 + $0x24] sm:$0xf]
      %v3641 = vld [vmem:[%s7 + $0x28] sm:$0xf]
      %v3642 = vld [vmem:[%s7 + $0x2c] sm:$0xf]
      %v3643 = vld [vmem:[%s7 + $0x30] sm:$0xf]
      %v3644 = vld [vmem:[%s7 + $0x34] sm:$0xf]
      %v3645 = vld [vmem:[%s7 + $0x38] sm:$0xf]
      %v3646 = vld [vmem:[%s7 + $0x3c] sm:$0xf]
      %v3647 = vld [vmem:[%s8] sm:$0x1]
      %v3649 = vlaneseq
      %v3650 = vshrl.u32 %v3649, 7
      %v3651 = vsub.s32 0, %v3650
      %v3652 = vrot.slane %v3647, %v3651
      %v3670 = vunpack.c.l.b16 %v3631
      %v3671 = vunpack.c.l.b16 %v3632
      %v3672 = vunpack.c.l.b16 %v3633
      %v3673 = vunpack.c.l.b16 %v3634
      %v3674 = vunpack.c.l.b16 %v3635
      %v3675 = vunpack.c.l.b16 %v3636
      %v3676 = vunpack.c.l.b16 %v3637
      %v3677 = vunpack.c.l.b16 %v3638
      %v3678 = vunpack.c.l.b16 %v3639
      %v3679 = vunpack.c.l.b16 %v3640
      %v3680 = vunpack.c.l.b16 %v3641
      %v3681 = vunpack.c.l.b16 %v3642
      %v3682 = vunpack.c.l.b16 %v3643
      %v3683 = vunpack.c.l.b16 %v3644
      %v3684 = vunpack.c.l.b16 %v3645
      %v3685 = vunpack.c.l.b16 %v3646
      %v3686 = vpack.c.b16 %v3671, %v3670
      %v3687 = vpack.c.b16 %v3673, %v3672
      %v3688 = vpack.c.b16 %v3675, %v3674
      %v3689 = vpack.c.b16 %v3677, %v3676
      %v3690 = vpack.c.b16 %v3679, %v3678
      %v3691 = vpack.c.b16 %v3681, %v3680
      %v3692 = vpack.c.b16 %v3683, %v3682
      %v3693 = vpack.c.b16 %v3685, %v3684
      %3702 = vmatprep.subr.bf16.mxu0 0
      %3703 = vmatpush1.bf16.msra.mxu0 %v3686
      %3704 = vmatprep.subr.bf16.mxu0 0
      %3705 = vmatpush1.bf16.msra.mxu0 %v3687
      %3706 = vmatprep.subr.bf16.mxu0 0
      %3707 = vmatpush1.bf16.msra.mxu0 %v3688
      %3708 = vmatprep.subr.bf16.mxu0 0
      %3709 = vmatpush1.bf16.msra.mxu0 %v3689
      %3710 = vmatprep.subr.bf16.mxu0 0
      %3711 = vmatpush1.bf16.msra.mxu0 %v3690
      %3712 = vmatprep.subr.bf16.mxu0 0
      %3713 = vmatpush1.bf16.msra.mxu0 %v3691
      %3714 = vmatprep.subr.bf16.mxu0 0
      %3715 = vmatpush1.bf16.msra.mxu0 %v3692
      %3716 = vmatprep.subr.bf16.mxu0 0
      %3717 = vmatpush1.bf16.msra.mxu0 %v3693
      %3718 = vmatprep.subr.bf16.mxu0 0
      %3719 = vmatpush1.bf16.msra.mxu0 0
      %3720 = vmatprep.subr.bf16.mxu0 0
      %3721 = vmatpush1.bf16.msra.mxu0 0
      %3722 = vmatprep.subr.bf16.mxu0 0
      %3723 = vmatpush1.bf16.msra.mxu0 0
      %3724 = vmatprep.subr.bf16.mxu0 0
      %3725 = vmatpush1.bf16.msra.mxu0 0
      %3726 = vmatprep.subr.bf16.mxu0 0
      %3727 = vmatpush1.bf16.msra.mxu0 0
      %3728 = vmatprep.subr.bf16.mxu0 0
      %3729 = vmatpush1.bf16.msra.mxu0 0
      %3730 = vmatprep.subr.bf16.mxu0 0
      %3731 = vmatpush1.bf16.msra.mxu0 0
      %3732 = vmatprep.subr.bf16.mxu0 0
      %3733 = vmatpush1.bf16.msra.mxu0 0
      %3734 = vmatprep.mubr.bf16.mxu0 0
      %3735 = vmatmul.mubr.bf16.gmra.mrb[0].mxu0 %v3629
      %v3736 = vpop.f32.mrb[0].mxu0
      %v3737 = vadd.f32 %v3652, %v3736
      %v3738 = vpop.f32.mrb[0].mxu0
      %v3739 = vpop.f32.mrb[0].mxu0
      %v3740 = vadd.f32 %v3652, %v3739
      %v3741 = vpop.f32.mrb[0].mxu0
      %3742 = vmatprep.mubr.bf16.mxu0 0
      %3743 = vmatmul.mubr.bf16.gmra.mrb[0].mxu0 %v3630
      %v3744 = vpop.f32.mrb[0].mxu0
      %v3745 = vadd.f32 %v3652, %v3744
      %v3746 = vpop.f32.mrb[0].mxu0
      %v3747 = vpop.f32.mrb[0].mxu0
      %v3748 = vadd.f32 %v3652, %v3747
      %v3749 = vpop.f32.mrb[0].mxu0
      %3750 = vdwg.mxu0
      %3751 = vst [vmem:[%s332] sm:$0xff] %v3737
      %3752 = vst [vmem:[%s332 + $0x8] sm:$0xff] %v3740
      %3753 = vst [vmem:[%s332 + $0x10] sm:$0xff] %v3745
      %3754 = vst [vmem:[%s332 + $0x18] sm:$0xff] %v3748
      %p3755 = scmp.lt.s32.totalorder %s20, 1
      %s3756 = scalar_select %p3755, %s20, 1
      %s3757 = smul.addr %s3756, 4
      %s3758 = smul.addr %s3757, 8
      %s3759 = scalar_lea.vmem %s9, %s3758
      // Predicated region
      $region57: #{mynet_forward.1} parent=55 // pred_check
        %p3760 = pneg %p232
      $region58: #{mynet_forward.1} parent=55 // pred_check_branch
        %3762 = sbr.rel (%p3760) target = $region60
      $region59: #{mynet_forward.1} parent=55 // pred_region
        _
      $region60: #{mynet_forward.1} parent=55 // pred_fallthru
        _
    $region56: #{mynet_forward.1} parent=5 // pred_fallthru
      _
    %p3763 = scmp.le.s32.totalorder 2, %s15
    // Predicated region
    $region61: #{mynet_forward.1} parent=5 // pred_check
      %p3764 = pneg %p3763
    $region62: #{mynet_forward.1} parent=5 // pred_check_branch
      %3766 = sbr.rel (%p3764) target = $region64
    $region63: #{mynet_forward.1} parent=5 // pred_region
      %s3767 = ssub.s32 %s15, 2
      // Predicated region
      $region65: #{mynet_forward.1} parent=63 // pred_check
        %p3768 = pneg %p238
      $region66: #{mynet_forward.1} parent=63 // pred_check_branch
        %3770 = sbr.rel (%p3768) target = $region68
      $region67: #{mynet_forward.1} parent=63 // pred_region
        %p3771 = scmp.lt.s32.totalorder %s21, 1
        %s3772 = scalar_select %p3771, %s21, 1
        %s3773 = smul.addr %s3772, 4
        %s3774 = smul.addr %s3773, 8
        %s3775 = scalar_lea.vmem %s9, %s3774
      $region68: #{mynet_forward.1} parent=63 // pred_fallthru
        _
    $region64: #{mynet_forward.1} parent=5 // pred_fallthru
      _
  $region6: #{mynet_forward.1} parent=0 // loop_footer
    %s19 = sadd.s32 1, %s15
  $region7: #{mynet_forward.1} parent=0 // loop_footer_branch
    %14 = sbr.rel target = $region3
  $region8: #{mynet_forward.1} parent=0 // loop_exit
    _

</llo_original>
